<compile_context>
chip_gen: v7x
topology: tpu7x:2x2x1
jax: 0.10.0
libtpu: 0.0.40
codegen_flags: <defaults>
</compile_context>

<pallas_src>
import functools

import jax
import jax.numpy as jnp
from jax.experimental import pallas as pl
from jax.experimental.pallas import tpu as pltpu


VMEM_LIMIT = 32 * 1024 * 1024   # safe scoped-VMEM budget on v5e/v6e/v7x
_TM = 256                       # row tile for all projection matmuls
_TQ = 128                       # query tile for attention
_LN_EPS = 1e-6                  # torchvision VisionTransformer LayerNorm eps


# ----------------------------- Pallas kernels ------------------------------

def _linear_kernel(x_ref, w_ref, b_ref, o_ref):
    # o = x @ w + b   (bf16 MXU operands, f32 accumulate)
    y = jnp.dot(x_ref[...].astype(jnp.bfloat16), w_ref[...],
                preferred_element_type=jnp.float32)
    o_ref[...] = (y + b_ref[...]).astype(o_ref.dtype)


def _linear_resid_kernel(x_ref, w_ref, b_ref, r_ref, o_ref):
    # o = x @ w + b + resid  (residual add fused into the matmul epilogue,
    # residual stream stored bf16, accumulate f32)
    y = jnp.dot(x_ref[...].astype(jnp.bfloat16), w_ref[...],
                preferred_element_type=jnp.float32)
    o_ref[...] = (y + b_ref[...] + r_ref[...].astype(jnp.float32)).astype(o_ref.dtype)


def _ln_linear_kernel(x_ref, g_ref, beta_ref, w_ref, b_ref, o_ref, *, eps, act):
    # o = act(LayerNorm(x) @ w + b)   (LN fused into the matmul prologue)
    x = x_ref[...].astype(jnp.float32)
    mean = jnp.mean(x, axis=-1, keepdims=True)
    var = jnp.mean(jnp.square(x - mean), axis=-1, keepdims=True)
    xn = (x - mean) * jax.lax.rsqrt(var + eps)
    xn = xn * g_ref[...] + beta_ref[...]
    y = jnp.dot(xn.astype(jnp.bfloat16), w_ref[...],
                preferred_element_type=jnp.float32)
    y = y + b_ref[...]
    if act == "gelu":
        # TODO(synk): torchvision MLPBlock uses exact erf-GELU; the tanh
        # approximation is used here for guaranteed EUP lowering (~1e-3 diff).
        y = jax.nn.gelu(y, approximate=True)
    o_ref[...] = y.astype(o_ref.dtype)


def _layernorm_kernel(x_ref, g_ref, b_ref, o_ref, *, eps):
    x = x_ref[...].astype(jnp.float32)
    mean = jnp.mean(x, axis=-1, keepdims=True)
    var = jnp.mean(jnp.square(x - mean), axis=-1, keepdims=True)
    y = (x - mean) * jax.lax.rsqrt(var + eps)
    o_ref[...] = (y * g_ref[...] + b_ref[...]).astype(o_ref.dtype)


def _attention_kernel(q_ref, kv_ref, o_ref, *, heads, dh, d, scale, s_valid):
    # One (batch, query-tile) per grid step; all heads handled in-kernel by
    # slicing the fused QKV block directly from the VMEM refs.  Each head's
    # output is stored into o_ref immediately (no trailing concatenate).
    s_pad = kv_ref.shape[1]
    if s_valid < s_pad:
        col = jax.lax.broadcasted_iota(jnp.int32, (1, s_pad), 1)
        key_bias = jnp.where(col < s_valid, 0.0, -1e30).astype(jnp.float32)

    for h in range(heads):                                  # static unroll
        q = q_ref[0, :, h * dh:(h + 1) * dh]                # [tq, dh] bf16
        k = kv_ref[0, :, d + h * dh: d + (h + 1) * dh]      # [S_pad, dh] bf16
        v = kv_ref[0, :, 2 * d + h * dh: 2 * d + (h + 1) * dh]
        # scores = q @ k^T without materializing a transposed k
        s = jax.lax.dot_general(q, k, (((1,), (1,)), ((), ())),
                                preferred_element_type=jnp.float32) * scale
        if s_valid < s_pad:
            s = s + key_bias                                # mask padded keys
        s = s - jnp.max(s, axis=-1, keepdims=True)
        p = jnp.exp(s)
        p = p * pl.reciprocal(jnp.sum(p, axis=-1, keepdims=True), approx=True)
        o = jnp.dot(p.astype(v.dtype), v, preferred_element_type=jnp.float32)
        o_ref[0, :, h * dh:(h + 1) * dh] = o.astype(o_ref.dtype)


# ------------------------------ thin wrappers -------------------------------

def _mm_setup(M):
    tm = min(_TM, M)                        # M is always a multiple of 8 here
    grid = (pl.cdiv(M, tm),)
    cp = pltpu.CompilerParams(dimension_semantics=("parallel",),
                              vmem_limit_bytes=VMEM_LIMIT)
    return tm, grid, cp


def pallas_linear(x, w, b, out_dtype=jnp.bfloat16):
    M, K = x.shape
    N = w.shape[1]
    tm, grid, cp = _mm_setup(M)
    return pl.pallas_call(
        _linear_kernel,
        out_shape=jax.ShapeDtypeStruct((M, N), out_dtype),
        grid=grid,
        in_specs=[pl.BlockSpec((tm, K), lambda i: (i, 0)),
                  pl.BlockSpec((K, N), lambda i: (0, 0)),    # weight resident
                  pl.BlockSpec((1, N), lambda i: (0, 0))],
        out_specs=pl.BlockSpec((tm, N), lambda i: (i, 0)),
        compiler_params=cp,
    )(x, w, b)


def pallas_linear_residual(x, w, b, resid, out_dtype=jnp.bfloat16):
    M, K = x.shape
    N = w.shape[1]
    tm, grid, cp = _mm_setup(M)
    return pl.pallas_call(
        _linear_resid_kernel,
        out_shape=jax.ShapeDtypeStruct((M, N), out_dtype),
        grid=grid,
        in_specs=[pl.BlockSpec((tm, K), lambda i: (i, 0)),
                  pl.BlockSpec((K, N), lambda i: (0, 0)),    # weight resident
                  pl.BlockSpec((1, N), lambda i: (0, 0)),
                  pl.BlockSpec((tm, N), lambda i: (i, 0))],
        out_specs=pl.BlockSpec((tm, N), lambda i: (i, 0)),
        compiler_params=cp,
    )(x, w, b, resid)


def pallas_ln_linear(x, g, beta, w, b, *, act=None, eps=_LN_EPS,
                     out_dtype=jnp.bfloat16):
    M, K = x.shape
    N = w.shape[1]
    tm, grid, cp = _mm_setup(M)
    kern = functools.partial(_ln_linear_kernel, eps=eps, act=act)
    return pl.pallas_call(
        kern,
        out_shape=jax.ShapeDtypeStruct((M, N), out_dtype),
        grid=grid,
        in_specs=[pl.BlockSpec((tm, K), lambda i: (i, 0)),
                  pl.BlockSpec((1, K), lambda i: (0, 0)),
                  pl.BlockSpec((1, K), lambda i: (0, 0)),
                  pl.BlockSpec((K, N), lambda i: (0, 0)),    # weight resident
                  pl.BlockSpec((1, N), lambda i: (0, 0))],
        out_specs=pl.BlockSpec((tm, N), lambda i: (i, 0)),
        compiler_params=cp,
    )(x, g, beta, w, b)


def pallas_layernorm(x, g, b, eps=_LN_EPS):
    return pl.pallas_call(
        functools.partial(_layernorm_kernel, eps=eps),
        out_shape=jax.ShapeDtypeStruct(x.shape, jnp.float32),
    )(x, g, b)


def pallas_attention(qkv, heads, s_valid):
    B, S_pad, threeD = qkv.shape
    D = threeD // 3
    dh = D // heads
    tq = min(_TQ, S_pad)
    n_q = pl.cdiv(S_pad, tq)
    kern = functools.partial(_attention_kernel, heads=heads, dh=dh, d=D,
                             scale=dh ** -0.5, s_valid=s_valid)
    return pl.pallas_call(
        kern,
        out_shape=jax.ShapeDtypeStruct((B, S_pad, D), qkv.dtype),
        grid=(B, n_q),
        in_specs=[
            # query rows for this tile (full 3D columns -> no lane constraints)
            pl.BlockSpec((1, tq, threeD), lambda b, qi: (b, qi, 0)),
            # all keys/values for this batch element; block index ignores qi so
            # the K/V block stays VMEM-resident across query tiles.
            pl.BlockSpec((1, S_pad, threeD), lambda b, qi: (b, 0, 0)),
        ],
        out_specs=pl.BlockSpec((1, tq, D), lambda b, qi: (b, qi, 0)),
        compiler_params=pltpu.CompilerParams(
            dimension_semantics=("parallel", "parallel"),
            vmem_limit_bytes=VMEM_LIMIT),
    )(qkv, qkv)


# ---------------------------- ViT forward pass -------------------------------

def hipt_patch_forward(params, pixel_values, cfg):
    """VisionTransformer(image, patch, layers, heads, hidden, mlp), heads=Identity."""
    B, C, H, W = pixel_values.shape
    p = cfg["patch"]
    D = cfg["hidden"]
    heads = cfg["heads"]
    Hp, Wp = H // p, W // p
    Np = Hp * Wp
    S = Np + 1
    S_pad = -(-S // 8) * 8                      # pad tokens to a multiple of 8

    # --- conv_proj (Conv2d C->D, k=p, s=p, bias) as a tiled matmul ---
    # TODO(synk): the NCHW->patch rearrangement is still an XLA transpose; it
    # could be folded into the conv_proj pallas_call via an (B,Hp,Wp) index_map.
    x = pixel_values.reshape(B, C, Hp, p, Wp, p)
    x = x.transpose(0, 2, 4, 1, 3, 5).reshape(B * Np, C * p * p)   # (c,kh,kw) order
    patches = pallas_linear(x, params["patch_w"], params["patch_b"],
                            out_dtype=jnp.bfloat16).reshape(B, Np, D)

    # --- class token + position embedding (residual stream kept bf16) ---
    cls = jnp.broadcast_to(params["class_emb"].reshape(1, 1, D), (B, 1, D))
    h = jnp.concatenate([cls, patches.astype(jnp.float32)], axis=1)
    h = (h + params["pos_emb"][None]).astype(jnp.bfloat16)
    if S_pad > S:
        h = jnp.pad(h, ((0, 0), (0, S_pad - S), (0, 0)))           # zero pad rows

    M = B * S_pad
    for layer in params["layers"]:
        h2 = h.reshape(M, D)
        # LN1 + fused QKV projection (one [D, 3D] matmul), bf16 intermediate
        qkv = pallas_ln_linear(h2, layer["ln1_g"], layer["ln1_b"],
                               layer["qkv_w"], layer["qkv_b"],
                               act=None, out_dtype=jnp.bfloat16)
        # multi-head self-attention (heads split in VMEM, padded keys masked)
        attn = pallas_attention(qkv.reshape(B, S_pad, 3 * D), heads, S)
        # out projection with fused residual add (bf16 residual stream)
        h2 = pallas_linear_residual(attn.reshape(M, D),
                                    layer["o_w"], layer["o_b"], h2)
        # LN2 + fc1 + GELU fused, bf16 intermediate
        m = pallas_ln_linear(h2, layer["ln2_g"], layer["ln2_b"],
                             layer["fc1_w"], layer["fc1_b"],
                             act="gelu", out_dtype=jnp.bfloat16)
        # fc2 with fused residual add
        h2 = pallas_linear_residual(m, layer["fc2_w"], layer["fc2_b"], h2)
        h = h2.reshape(B, S_pad, D)

    # --- final encoder LayerNorm applied to the class token only (equivalent) ---
    pooled = h[:, 0, :]                                            # [B, D] bf16
    return pallas_layernorm(pooled, params["ln_g"], params["ln_b"])  # heads=Identity


# ------------------------------ param init ----------------------------------

def init_params(key, cfg):
    C, p, D = cfg["channels"], cfg["patch"], cfg["hidden"]
    Np = (cfg["image"] // p) ** 2
    S = Np + 1
    mlp = cfg["mlp"]

    def nrm(k, shape, s=0.02, dtype=jnp.float32):
        return (jax.random.normal(k, shape, dtype=jnp.float32) * s).astype(dtype)

    keys = iter(jax.random.split(key, 4 + cfg["layers"] * 8))
    params = {
        "patch_w": nrm(next(keys), (C * p * p, D), dtype=jnp.bfloat16),
        "patch_b": nrm(next(keys), (1, D)),
        "class_emb": nrm(next(keys), (D,)),
        "pos_emb": nrm(next(keys), (S, D)),
        "ln_g": jnp.ones((1, D), jnp.float32),
        "ln_b": jnp.zeros((1, D), jnp.float32),
        "layers": [],
    }
    for _ in range(cfg["layers"]):
        params["layers"].append({
            "ln1_g": jnp.ones((1, D), jnp.float32),
            "ln1_b": jnp.zeros((1, D), jnp.float32),
            "qkv_w": nrm(next(keys), (D, 3 * D), dtype=jnp.bfloat16),
            "qkv_b": nrm(next(keys), (1, 3 * D)),
            "o_w": nrm(next(keys), (D, D), dtype=jnp.bfloat16),
            "o_b": nrm(next(keys), (1, D)),
            "ln2_g": jnp.ones((1, D), jnp.float32),
            "ln2_b": jnp.zeros((1, D), jnp.float32),
            "fc1_w": nrm(next(keys), (D, mlp), dtype=jnp.bfloat16),
            "fc1_b": nrm(next(keys), (1, mlp)),
            "fc2_w": nrm(next(keys), (mlp, D), dtype=jnp.bfloat16),
            "fc2_b": nrm(next(keys), (1, D)),
        })
    return params


# --------------------------------- main --------------------------------------

if __name__ == "__main__":
    # HIPT patch-level model is ViT-S/16: image 256, patch 16, 12 layers,
    # 6 heads, hidden 384, mlp 1536.  Demo uses a scaled-down config with the
    # same structure and the same per-head dim (dh = 64), mlp = 4*hidden.
    cfg = dict(channels=3, image=32, patch=8, hidden=128, heads=2, layers=2,
               mlp=512)

    key = jax.random.PRNGKey(0)
    k_params, k_x = jax.random.split(key)
    params = init_params(k_params, cfg)

    # PatchLevelHIPTFeatureExtractor.forward(x): x is NCHW pixel values
    x = jax.random.normal(k_x, (2, cfg["channels"], cfg["image"], cfg["image"]),
                          dtype=jnp.float32)

    fwd = jax.jit(lambda prm, img: hipt_patch_forward(prm, img, cfg))
    feats = jax.block_until_ready(fwd(params, x))
    assert feats.shape == (2, cfg["hidden"])
    print("KERNEL_OK")
</pallas_src>

<mosaic_0001>
module attributes {stable_mosaic.version = 11 : i64} {
  func.func @_linear_kernel(%arg0: i32, %arg1: memref<32x192xf32, #tpu.memory_space<vmem>>, %arg2: memref<192x128xbf16, #tpu.memory_space<vmem>>, %arg3: memref<1x128xf32, #tpu.memory_space<vmem>>, %arg4: memref<32x128xbf16, #tpu.memory_space<vmem>>) attributes {dimension_semantics = [#tpu.dimension_semantics<parallel>], iteration_bounds = array<i64: 1>, scalar_prefetch = 0 : i64, scratch_operands = 0 : i64, tpu.core_type = #tpu.core_type<tc>, window_params = [{transform_indices = @transform_0, window_bounds = array<i64: 32, 192>}, {pipeline_mode = #tpu.pipeline_mode<synchronous>, transform_indices = @transform_1, window_bounds = array<i64: 192, 128>}, {pipeline_mode = #tpu.pipeline_mode<synchronous>, transform_indices = @transform_2, window_bounds = array<i64: 1, 128>}, {transform_indices = @transform_3, window_bounds = array<i64: 32, 128>}]} {
    %c0 = arith.constant 0 : index
    %c0_0 = arith.constant 0 : index
    %0 = vector.load %arg1[%c0, %c0_0] : memref<32x192xf32, #tpu.memory_space<vmem>>, vector<32x192xf32>
    %1 = arith.truncf %0 : vector<32x192xf32> to vector<32x192xbf16>
    %c0_1 = arith.constant 0 : index
    %c0_2 = arith.constant 0 : index
    %2 = vector.load %arg2[%c0_1, %c0_2] : memref<192x128xbf16, #tpu.memory_space<vmem>>, vector<192x128xbf16>
    %cst = arith.constant dense<0.000000e+00> : vector<32x128xf32>
    %3 = tpu.matmul %1, %2, %cst {dimension_numbers = #tpu.dot_dimension_numbers<[1], [0], [0], [1], [0, 0, 1, 1], [], []>} : vector<32x192xbf16>, vector<192x128xbf16>, vector<32x128xf32> -> vector<32x128xf32>
    %c0_3 = arith.constant 0 : index
    %c0_4 = arith.constant 0 : index
    %4 = vector.load %arg3[%c0_3, %c0_4] : memref<1x128xf32, #tpu.memory_space<vmem>>, vector<1x128xf32>
    %5 = vector.broadcast %4 : vector<1x128xf32> to vector<32x128xf32>
    %6 = arith.addf %3, %5 : vector<32x128xf32>
    %7 = arith.truncf %6 : vector<32x128xf32> to vector<32x128xbf16>
    %c0_5 = arith.constant 0 : index
    %c0_6 = arith.constant 0 : index
    %8 = vector.load %arg4[%c0_5, %c0_6] : memref<32x128xbf16, #tpu.memory_space<vmem>>, vector<32x128xbf16>
    tpu.vector_store %arg4[%c0_5, %c0_6], %7 {strides = array<i32>} : memref<32x128xbf16, #tpu.memory_space<vmem>>, vector<32x128xbf16>,
    return
  }
  func.func @transform_0(%arg0: i32) -> (i32, i32) {
    %c0_i32 = arith.constant 0 : i32
    %c0_i32_0 = arith.constant 0 : i32
    return %arg0, %c0_i32 : i32, i32
  }
  func.func @transform_1(%arg0: i32) -> (i32, i32) {
    %c0_i32 = arith.constant 0 : i32
    %c0_i32_0 = arith.constant 0 : i32
    %c0_i32_1 = arith.constant 0 : i32
    return %c0_i32, %c0_i32_0 : i32, i32
  }
  func.func @transform_2(%arg0: i32) -> (i32, i32) {
    %c0_i32 = arith.constant 0 : i32
    %c0_i32_0 = arith.constant 0 : i32
    %c0_i32_1 = arith.constant 0 : i32
    return %c0_i32, %c0_i32_0 : i32, i32
  }
  func.func @transform_3(%arg0: i32) -> (i32, i32) {
    %c0_i32 = arith.constant 0 : i32
    %c0_i32_0 = arith.constant 0 : i32
    return %arg0, %c0_i32 : i32, i32
  }
}

module attributes {stable_mosaic.version = 11 : i64} {
  func.func @_ln_linear_kernel(%arg0: i32, %arg1: memref<48x128xbf16, #tpu.memory_space<vmem>>, %arg2: memref<1x128xf32, #tpu.memory_space<vmem>>, %arg3: memref<1x128xf32, #tpu.memory_space<vmem>>, %arg4: memref<128x384xbf16, #tpu.memory_space<vmem>>, %arg5: memref<1x384xf32, #tpu.memory_space<vmem>>, %arg6: memref<48x384xbf16, #tpu.memory_space<vmem>>) attributes {dimension_semantics = [#tpu.dimension_semantics<parallel>], iteration_bounds = array<i64: 1>, scalar_prefetch = 0 : i64, scratch_operands = 0 : i64, tpu.core_type = #tpu.core_type<tc>, window_params = [{transform_indices = @transform_0, window_bounds = array<i64: 48, 128>}, {pipeline_mode = #tpu.pipeline_mode<synchronous>, transform_indices = @transform_1, window_bounds = array<i64: 1, 128>}, {pipeline_mode = #tpu.pipeline_mode<synchronous>, transform_indices = @transform_2, window_bounds = array<i64: 1, 128>}, {pipeline_mode = #tpu.pipeline_mode<synchronous>, transform_indices = @transform_3, window_bounds = array<i64: 128, 384>}, {pipeline_mode = #tpu.pipeline_mode<synchronous>, transform_indices = @transform_4, window_bounds = array<i64: 1, 384>}, {transform_indices = @transform_5, window_bounds = array<i64: 48, 384>}]} {
    %c0 = arith.constant 0 : index
    %c0_0 = arith.constant 0 : index
    %0 = vector.load %arg1[%c0, %c0_0] : memref<48x128xbf16, #tpu.memory_space<vmem>>, vector<48x128xbf16>
    %1 = arith.extf %0 : vector<48x128xbf16> to vector<48x128xf32>
    %cst = arith.constant dense<0.000000e+00> : vector<48xf32>
    %2 = vector.multi_reduction <add>, %1, %cst [1] : vector<48x128xf32> to vector<48xf32>
    %3 = vector.shape_cast %2 : vector<48xf32> to vector<48x1xf32>
    %cst_1 = arith.constant 1.280000e+02 : f32
    %4 = vector.broadcast %cst_1 : f32 to vector<48x1xf32>
    %5 = arith.divf %3, %4 : vector<48x1xf32>
    %6 = vector.broadcast %5 : vector<48x1xf32> to vector<48x128xf32>
    %7 = arith.subf %1, %6 : vector<48x128xf32>
    %8 = arith.mulf %7, %7 : vector<48x128xf32>
    %cst_2 = arith.constant dense<0.000000e+00> : vector<48xf32>
    %9 = vector.multi_reduction <add>, %8, %cst_2 [1] : vector<48x128xf32> to vector<48xf32>
    %10 = vector.shape_cast %9 : vector<48xf32> to vector<48x1xf32>
    %cst_3 = arith.constant 1.280000e+02 : f32
    %11 = vector.broadcast %cst_3 : f32 to vector<48x1xf32>
    %12 = arith.divf %10, %11 : vector<48x1xf32>
    %13 = vector.broadcast %5 : vector<48x1xf32> to vector<48x128xf32>
    %14 = arith.subf %1, %13 : vector<48x128xf32>
    %cst_4 = arith.constant 9.99999997E-7 : f32
    %15 = vector.broadcast %cst_4 : f32 to vector<48x1xf32>
    %16 = arith.addf %12, %15 : vector<48x1xf32>
    %17 = math.rsqrt %16 : vector<48x1xf32>
    %18 = vector.broadcast %17 : vector<48x1xf32> to vector<48x128xf32>
    %19 = arith.mulf %14, %18 : vector<48x128xf32>
    %c0_5 = arith.constant 0 : index
    %c0_6 = arith.constant 0 : index
    %20 = vector.load %arg2[%c0_5, %c0_6] : memref<1x128xf32, #tpu.memory_space<vmem>>, vector<1x128xf32>
    %21 = vector.broadcast %20 : vector<1x128xf32> to vector<48x128xf32>
    %22 = arith.mulf %19, %21 : vector<48x128xf32>
    %c0_7 = arith.constant 0 : index
    %c0_8 = arith.constant 0 : index
    %23 = vector.load %arg3[%c0_7, %c0_8] : memref<1x128xf32, #tpu.memory_space<vmem>>, vector<1x128xf32>
    %24 = vector.broadcast %23 : vector<1x128xf32> to vector<48x128xf32>
    %25 = arith.addf %22, %24 : vector<48x128xf32>
    %26 = arith.truncf %25 : vector<48x128xf32> to vector<48x128xbf16>
    %c0_9 = arith.constant 0 : index
    %c0_10 = arith.constant 0 : index
    %27 = vector.load %arg4[%c0_9, %c0_10] : memref<128x384xbf16, #tpu.memory_space<vmem>>, vector<128x384xbf16>
    %cst_11 = arith.constant dense<0.000000e+00> : vector<48x384xf32>
    %28 = tpu.matmul %26, %27, %cst_11 {dimension_numbers = #tpu.dot_dimension_numbers<[1], [0], [0], [1], [0, 0, 1, 1], [], []>} : vector<48x128xbf16>, vector<128x384xbf16>, vector<48x384xf32> -> vector<48x384xf32>
    %c0_12 = arith.constant 0 : index
    %c0_13 = arith.constant 0 : index
    %29 = vector.load %arg5[%c0_12, %c0_13] : memref<1x384xf32, #tpu.memory_space<vmem>>, vector<1x384xf32>
    %30 = vector.broadcast %29 : vector<1x384xf32> to vector<48x384xf32>
    %31 = arith.addf %28, %30 : vector<48x384xf32>
    %32 = arith.truncf %31 : vector<48x384xf32> to vector<48x384xbf16>
    %c0_14 = arith.constant 0 : index
    %c0_15 = arith.constant 0 : index
    %33 = vector.load %arg6[%c0_14, %c0_15] : memref<48x384xbf16, #tpu.memory_space<vmem>>, vector<48x384xbf16>
    tpu.vector_store %arg6[%c0_14, %c0_15], %32 {strides = array<i32>} : memref<48x384xbf16, #tpu.memory_space<vmem>>, vector<48x384xbf16>,
    return
  }
  func.func @transform_0(%arg0: i32) -> (i32, i32) {
    %c0_i32 = arith.constant 0 : i32
    %c0_i32_0 = arith.constant 0 : i32
    return %arg0, %c0_i32 : i32, i32
  }
  func.func @transform_1(%arg0: i32) -> (i32, i32) {
    %c0_i32 = arith.constant 0 : i32
    %c0_i32_0 = arith.constant 0 : i32
    %c0_i32_1 = arith.constant 0 : i32
    return %c0_i32, %c0_i32_0 : i32, i32
  }
  func.func @transform_2(%arg0: i32) -> (i32, i32) {
    %c0_i32 = arith.constant 0 : i32
    %c0_i32_0 = arith.constant 0 : i32
    %c0_i32_1 = arith.constant 0 : i32
    return %c0_i32, %c0_i32_0 : i32, i32
  }
  func.func @transform_3(%arg0: i32) -> (i32, i32) {
    %c0_i32 = arith.constant 0 : i32
    %c0_i32_0 = arith.constant 0 : i32
    %c0_i32_1 = arith.constant 0 : i32
    return %c0_i32, %c0_i32_0 : i32, i32
  }
  func.func @transform_4(%arg0: i32) -> (i32, i32) {
    %c0_i32 = arith.constant 0 : i32
    %c0_i32_0 = arith.constant 0 : i32
    %c0_i32_1 = arith.constant 0 : i32
    return %c0_i32, %c0_i32_0 : i32, i32
  }
  func.func @transform_5(%arg0: i32) -> (i32, i32) {
    %c0_i32 = arith.constant 0 : i32
    %c0_i32_0 = arith.constant 0 : i32
    return %arg0, %c0_i32 : i32, i32
  }
}

module attributes {stable_mosaic.version = 11 : i64} {
  func.func @_attention_kernel(%arg0: i32, %arg1: i32, %arg2: memref<1x24x384xbf16, #tpu.memory_space<vmem>>, %arg3: memref<1x24x384xbf16, #tpu.memory_space<vmem>>, %arg4: memref<1x24x128xbf16, #tpu.memory_space<vmem>>) attributes {dimension_semantics = [#tpu.dimension_semantics<parallel>, #tpu.dimension_semantics<parallel>], iteration_bounds = array<i64: 2, 1>, scalar_prefetch = 0 : i64, scratch_operands = 0 : i64, tpu.core_type = #tpu.core_type<tc>, window_params = [{transform_indices = @transform_0, window_bounds = array<i64: 1, 24, 384>}, {transform_indices = @transform_1, window_bounds = array<i64: 1, 24, 384>}, {transform_indices = @transform_2, window_bounds = array<i64: 1, 24, 128>}]} {
    %0 = tpu.iota {dimensions = array<i32: 1>} : vector<1x24xi32>
    %c17_i32 = arith.constant 17 : i32
    %1 = vector.broadcast %c17_i32 : i32 to vector<1x24xi32>
    %2 = arith.cmpi slt, %0, %1 : vector<1x24xi32>
    %cst = arith.constant 0.000000e+00 : f32
    %cst_0 = arith.constant -1.000000e+30 : f32
    %3 = vector.broadcast %cst : f32 to vector<1x24xf32>
    %4 = vector.broadcast %cst_0 : f32 to vector<1x24xf32>
    %5 = arith.select %2, %3, %4 : vector<1x24xi1>, vector<1x24xf32>
    %c0 = arith.constant 0 : index
    %c0_1 = arith.constant 0 : index
    %c0_2 = arith.constant 0 : index
    %6 = vector.load %arg2[%c0, %c0_1, %c0_2] : memref<1x24x384xbf16, #tpu.memory_space<vmem>>, vector<1x24x64xbf16>
    %7 = vector.shape_cast %6 : vector<1x24x64xbf16> to vector<24x64xbf16>
    %c0_3 = arith.constant 0 : index
    %c0_4 = arith.constant 0 : index
    %c128 = arith.constant 128 : index
    %8 = vector.load %arg3[%c0_3, %c0_4, %c128] : memref<1x24x384xbf16, #tpu.memory_space<vmem>>, vector<1x24x64xbf16>
    %9 = vector.shape_cast %8 : vector<1x24x64xbf16> to vector<24x64xbf16>
    %c0_5 = arith.constant 0 : index
    %c0_6 = arith.constant 0 : index
    %c256 = arith.constant 256 : index
    %10 = vector.load %arg3[%c0_5, %c0_6, %c256] : memref<1x24x384xbf16, #tpu.memory_space<vmem>>, vector<1x24x64xbf16>
    %11 = vector.shape_cast %10 : vector<1x24x64xbf16> to vector<24x64xbf16>
    %cst_7 = arith.constant dense<0.000000e+00> : vector<24x24xf32>
    %12 = tpu.matmul %7, %9, %cst_7 {dimension_numbers = #tpu.dot_dimension_numbers<[1], [1], [0], [0], [0, 0, 1, 0], [], []>} : vector<24x64xbf16>, vector<24x64xbf16>, vector<24x24xf32> -> vector<24x24xf32>
    %cst_8 = arith.constant 1.250000e-01 : f32
    %13 = vector.broadcast %cst_8 : f32 to vector<24x24xf32>
    %14 = arith.mulf %12, %13 : vector<24x24xf32>
    %15 = vector.broadcast %5 : vector<1x24xf32> to vector<24x24xf32>
    %16 = arith.addf %14, %15 : vector<24x24xf32>
    %cst_9 = arith.constant dense<0xFF800000> : vector<24xf32>
    %17 = vector.multi_reduction <maximumf>, %16, %cst_9 [1] : vector<24x24xf32> to vector<24xf32>
    %18 = vector.shape_cast %17 : vector<24xf32> to vector<24x1xf32>
    %19 = vector.broadcast %18 : vector<24x1xf32> to vector<24x24xf32>
    %20 = arith.subf %16, %19 : vector<24x24xf32>
    %21 = math.exp %20 : vector<24x24xf32>
    %cst_10 = arith.constant dense<0.000000e+00> : vector<24xf32>
    %22 = vector.multi_reduction <add>, %21, %cst_10 [1] : vector<24x24xf32> to vector<24xf32>
    %23 = vector.shape_cast %22 : vector<24xf32> to vector<24x1xf32>
    %24 = tpu.reciprocal %23 {approx = true} : vector<24x1xf32> -> vector<24x1xf32>
    %25 = vector.broadcast %24 : vector<24x1xf32> to vector<24x24xf32>
    %26 = arith.mulf %21, %25 : vector<24x24xf32>
    %27 = arith.truncf %26 : vector<24x24xf32> to vector<24x24xbf16>
    %cst_11 = arith.constant dense<0.000000e+00> : vector<24x64xf32>
    %28 = tpu.matmul %27, %11, %cst_11 {dimension_numbers = #tpu.dot_dimension_numbers<[1], [0], [0], [1], [0, 0, 1, 1], [], []>} : vector<24x24xbf16>, vector<24x64xbf16>, vector<24x64xf32> -> vector<24x64xf32>
    %29 = arith.truncf %28 : vector<24x64xf32> to vector<24x64xbf16>
    %c0_12 = arith.constant 0 : index
    %c0_13 = arith.constant 0 : index
    %c0_14 = arith.constant 0 : index
    %30 = vector.load %arg4[%c0_12, %c0_13, %c0_14] : memref<1x24x128xbf16, #tpu.memory_space<vmem>>, vector<1x24x64xbf16>
    %31 = vector.shape_cast %30 : vector<1x24x64xbf16> to vector<24x64xbf16>
    %32 = vector.shape_cast %29 : vector<24x64xbf16> to vector<1x24x64xbf16>
    tpu.vector_store %arg4[%c0_12, %c0_13, %c0_14], %32 {strides = array<i32>} : memref<1x24x128xbf16, #tpu.memory_space<vmem>>, vector<1x24x64xbf16>,
    %c0_15 = arith.constant 0 : index
    %c0_16 = arith.constant 0 : index
    %c64 = arith.constant 64 : index
    %33 = vector.load %arg2[%c0_15, %c0_16, %c64] : memref<1x24x384xbf16, #tpu.memory_space<vmem>>, vector<1x24x64xbf16>
    %34 = vector.shape_cast %33 : vector<1x24x64xbf16> to vector<24x64xbf16>
    %c0_17 = arith.constant 0 : index
    %c0_18 = arith.constant 0 : index
    %c192 = arith.constant 192 : index
    %35 = vector.load %arg3[%c0_17, %c0_18, %c192] : memref<1x24x384xbf16, #tpu.memory_space<vmem>>, vector<1x24x64xbf16>
    %36 = vector.shape_cast %35 : vector<1x24x64xbf16> to vector<24x64xbf16>
    %c0_19 = arith.constant 0 : index
    %c0_20 = arith.constant 0 : index
    %c320 = arith.constant 320 : index
    %37 = vector.load %arg3[%c0_19, %c0_20, %c320] : memref<1x24x384xbf16, #tpu.memory_space<vmem>>, vector<1x24x64xbf16>
    %38 = vector.shape_cast %37 : vector<1x24x64xbf16> to vector<24x64xbf16>
    %cst_21 = arith.constant dense<0.000000e+00> : vector<24x24xf32>
    %39 = tpu.matmul %34, %36, %cst_21 {dimension_numbers = #tpu.dot_dimension_numbers<[1], [1], [0], [0], [0, 0, 1, 0], [], []>} : vector<24x64xbf16>, vector<24x64xbf16>, vector<24x24xf32> -> vector<24x24xf32>
    %cst_22 = arith.constant 1.250000e-01 : f32
    %40 = vector.broadcast %cst_22 : f32 to vector<24x24xf32>
    %41 = arith.mulf %39, %40 : vector<24x24xf32>
    %42 = vector.broadcast %5 : vector<1x24xf32> to vector<24x24xf32>
    %43 = arith.addf %41, %42 : vector<24x24xf32>
    %cst_23 = arith.constant dense<0xFF800000> : vector<24xf32>
    %44 = vector.multi_reduction <maximumf>, %43, %cst_23 [1] : vector<24x24xf32> to vector<24xf32>
    %45 = vector.shape_cast %44 : vector<24xf32> to vector<24x1xf32>
    %46 = vector.broadcast %45 : vector<24x1xf32> to vector<24x24xf32>
    %47 = arith.subf %43, %46 : vector<24x24xf32>
    %48 = math.exp %47 : vector<24x24xf32>
    %cst_24 = arith.constant dense<0.000000e+00> : vector<24xf32>
    %49 = vector.multi_reduction <add>, %48, %cst_24 [1] : vector<24x24xf32> to vector<24xf32>
    %50 = vector.shape_cast %49 : vector<24xf32> to vector<24x1xf32>
    %51 = tpu.reciprocal %50 {approx = true} : vector<24x1xf32> -> vector<24x1xf32>
    %52 = vector.broadcast %51 : vector<24x1xf32> to vector<24x24xf32>
    %53 = arith.mulf %48, %52 : vector<24x24xf32>
    %54 = arith.truncf %53 : vector<24x24xf32> to vector<24x24xbf16>
    %cst_25 = arith.constant dense<0.000000e+00> : vector<24x64xf32>
    %55 = tpu.matmul %54, %38, %cst_25 {dimension_numbers = #tpu.dot_dimension_numbers<[1], [0], [0], [1], [0, 0, 1, 1], [], []>} : vector<24x24xbf16>, vector<24x64xbf16>, vector<24x64xf32> -> vector<24x64xf32>
    %56 = arith.truncf %55 : vector<24x64xf32> to vector<24x64xbf16>
    %c0_26 = arith.constant 0 : index
    %c0_27 = arith.constant 0 : index
    %c64_28 = arith.constant 64 : index
    %57 = vector.load %arg4[%c0_26, %c0_27, %c64_28] : memref<1x24x128xbf16, #tpu.memory_space<vmem>>, vector<1x24x64xbf16>
    %58 = vector.shape_cast %57 : vector<1x24x64xbf16> to vector<24x64xbf16>
    %59 = vector.shape_cast %56 : vector<24x64xbf16> to vector<1x24x64xbf16>
    tpu.vector_store %arg4[%c0_26, %c0_27, %c64_28], %59 {strides = array<i32>} : memref<1x24x128xbf16, #tpu.memory_space<vmem>>, vector<1x24x64xbf16>,
    return
  }
  func.func @transform_0(%arg0: i32, %arg1: i32) -> (i32, i32, i32) {
    %c0_i32 = arith.constant 0 : i32
    %c0_i32_0 = arith.constant 0 : i32
    return %arg0, %arg1, %c0_i32 : i32, i32, i32
  }
  func.func @transform_1(%arg0: i32, %arg1: i32) -> (i32, i32, i32) {
    %c0_i32 = arith.constant 0 : i32
    %c0_i32_0 = arith.constant 0 : i32
    %c0_i32_1 = arith.constant 0 : i32
    return %arg0, %c0_i32, %c0_i32_0 : i32, i32, i32
  }
  func.func @transform_2(%arg0: i32, %arg1: i32) -> (i32, i32, i32) {
    %c0_i32 = arith.constant 0 : i32
    %c0_i32_0 = arith.constant 0 : i32
    return %arg0, %arg1, %c0_i32 : i32, i32, i32
  }
}

module attributes {stable_mosaic.version = 11 : i64} {
  func.func @_linear_resid_kernel(%arg0: i32, %arg1: memref<48x128xbf16, #tpu.memory_space<vmem>>, %arg2: memref<128x128xbf16, #tpu.memory_space<vmem>>, %arg3: memref<1x128xf32, #tpu.memory_space<vmem>>, %arg4: memref<48x128xbf16, #tpu.memory_space<vmem>>, %arg5: memref<48x128xbf16, #tpu.memory_space<vmem>>) attributes {dimension_semantics = [#tpu.dimension_semantics<parallel>], iteration_bounds = array<i64: 1>, scalar_prefetch = 0 : i64, scratch_operands = 0 : i64, tpu.core_type = #tpu.core_type<tc>, window_params = [{transform_indices = @transform_0, window_bounds = array<i64: 48, 128>}, {pipeline_mode = #tpu.pipeline_mode<synchronous>, transform_indices = @transform_1, window_bounds = array<i64: 128, 128>}, {pipeline_mode = #tpu.pipeline_mode<synchronous>, transform_indices = @transform_2, window_bounds = array<i64: 1, 128>}, {transform_indices = @transform_3, window_bounds = array<i64: 48, 128>}, {transform_indices = @transform_4, window_bounds = array<i64: 48, 128>}]} {
    %c0 = arith.constant 0 : index
    %c0_0 = arith.constant 0 : index
    %0 = vector.load %arg1[%c0, %c0_0] : memref<48x128xbf16, #tpu.memory_space<vmem>>, vector<48x128xbf16>
    %c0_1 = arith.constant 0 : index
    %c0_2 = arith.constant 0 : index
    %1 = vector.load %arg2[%c0_1, %c0_2] : memref<128x128xbf16, #tpu.memory_space<vmem>>, vector<128x128xbf16>
    %cst = arith.constant dense<0.000000e+00> : vector<48x128xf32>
    %2 = tpu.matmul %0, %1, %cst {dimension_numbers = #tpu.dot_dimension_numbers<[1], [0], [0], [1], [0, 0, 1, 1], [], []>} : vector<48x128xbf16>, vector<128x128xbf16>, vector<48x128xf32> -> vector<48x128xf32>
    %c0_3 = arith.constant 0 : index
    %c0_4 = arith.constant 0 : index
    %3 = vector.load %arg3[%c0_3, %c0_4] : memref<1x128xf32, #tpu.memory_space<vmem>>, vector<1x128xf32>
    %4 = vector.broadcast %3 : vector<1x128xf32> to vector<48x128xf32>
    %5 = arith.addf %2, %4 : vector<48x128xf32>
    %c0_5 = arith.constant 0 : index
    %c0_6 = arith.constant 0 : index
    %6 = vector.load %arg4[%c0_5, %c0_6] : memref<48x128xbf16, #tpu.memory_space<vmem>>, vector<48x128xbf16>
    %7 = arith.extf %6 : vector<48x128xbf16> to vector<48x128xf32>
    %8 = arith.addf %5, %7 : vector<48x128xf32>
    %9 = arith.truncf %8 : vector<48x128xf32> to vector<48x128xbf16>
    %c0_7 = arith.constant 0 : index
    %c0_8 = arith.constant 0 : index
    %10 = vector.load %arg5[%c0_7, %c0_8] : memref<48x128xbf16, #tpu.memory_space<vmem>>, vector<48x128xbf16>
    tpu.vector_store %arg5[%c0_7, %c0_8], %9 {strides = array<i32>} : memref<48x128xbf16, #tpu.memory_space<vmem>>, vector<48x128xbf16>,
    return
  }
  func.func @transform_0(%arg0: i32) -> (i32, i32) {
    %c0_i32 = arith.constant 0 : i32
    %c0_i32_0 = arith.constant 0 : i32
    return %arg0, %c0_i32 : i32, i32
  }
  func.func @transform_1(%arg0: i32) -> (i32, i32) {
    %c0_i32 = arith.constant 0 : i32
    %c0_i32_0 = arith.constant 0 : i32
    %c0_i32_1 = arith.constant 0 : i32
    return %c0_i32, %c0_i32_0 : i32, i32
  }
  func.func @transform_2(%arg0: i32) -> (i32, i32) {
    %c0_i32 = arith.constant 0 : i32
    %c0_i32_0 = arith.constant 0 : i32
    %c0_i32_1 = arith.constant 0 : i32
    return %c0_i32, %c0_i32_0 : i32, i32
  }
  func.func @transform_3(%arg0: i32) -> (i32, i32) {
    %c0_i32 = arith.constant 0 : i32
    %c0_i32_0 = arith.constant 0 : i32
    return %arg0, %c0_i32 : i32, i32
  }
  func.func @transform_4(%arg0: i32) -> (i32, i32) {
    %c0_i32 = arith.constant 0 : i32
    %c0_i32_0 = arith.constant 0 : i32
    return %arg0, %c0_i32 : i32, i32
  }
}

module attributes {stable_mosaic.version = 11 : i64} {
  func.func @_ln_linear_kernel(%arg0: i32, %arg1: memref<48x128xbf16, #tpu.memory_space<vmem>>, %arg2: memref<1x128xf32, #tpu.memory_space<vmem>>, %arg3: memref<1x128xf32, #tpu.memory_space<vmem>>, %arg4: memref<128x512xbf16, #tpu.memory_space<vmem>>, %arg5: memref<1x512xf32, #tpu.memory_space<vmem>>, %arg6: memref<48x512xbf16, #tpu.memory_space<vmem>>) attributes {dimension_semantics = [#tpu.dimension_semantics<parallel>], iteration_bounds = array<i64: 1>, scalar_prefetch = 0 : i64, scratch_operands = 0 : i64, tpu.core_type = #tpu.core_type<tc>, window_params = [{transform_indices = @transform_0, window_bounds = array<i64: 48, 128>}, {pipeline_mode = #tpu.pipeline_mode<synchronous>, transform_indices = @transform_1, window_bounds = array<i64: 1, 128>}, {pipeline_mode = #tpu.pipeline_mode<synchronous>, transform_indices = @transform_2, window_bounds = array<i64: 1, 128>}, {pipeline_mode = #tpu.pipeline_mode<synchronous>, transform_indices = @transform_3, window_bounds = array<i64: 128, 512>}, {pipeline_mode = #tpu.pipeline_mode<synchronous>, transform_indices = @transform_4, window_bounds = array<i64: 1, 512>}, {transform_indices = @transform_5, window_bounds = array<i64: 48, 512>}]} {
    %c0 = arith.constant 0 : index
    %c0_0 = arith.constant 0 : index
    %0 = vector.load %arg1[%c0, %c0_0] : memref<48x128xbf16, #tpu.memory_space<vmem>>, vector<48x128xbf16>
    %1 = arith.extf %0 : vector<48x128xbf16> to vector<48x128xf32>
    %cst = arith.constant dense<0.000000e+00> : vector<48xf32>
    %2 = vector.multi_reduction <add>, %1, %cst [1] : vector<48x128xf32> to vector<48xf32>
    %3 = vector.shape_cast %2 : vector<48xf32> to vector<48x1xf32>
    %cst_1 = arith.constant 1.280000e+02 : f32
    %4 = vector.broadcast %cst_1 : f32 to vector<48x1xf32>
    %5 = arith.divf %3, %4 : vector<48x1xf32>
    %6 = vector.broadcast %5 : vector<48x1xf32> to vector<48x128xf32>
    %7 = arith.subf %1, %6 : vector<48x128xf32>
    %8 = arith.mulf %7, %7 : vector<48x128xf32>
    %cst_2 = arith.constant dense<0.000000e+00> : vector<48xf32>
    %9 = vector.multi_reduction <add>, %8, %cst_2 [1] : vector<48x128xf32> to vector<48xf32>
    %10 = vector.shape_cast %9 : vector<48xf32> to vector<48x1xf32>
    %cst_3 = arith.constant 1.280000e+02 : f32
    %11 = vector.broadcast %cst_3 : f32 to vector<48x1xf32>
    %12 = arith.divf %10, %11 : vector<48x1xf32>
    %13 = vector.broadcast %5 : vector<48x1xf32> to vector<48x128xf32>
    %14 = arith.subf %1, %13 : vector<48x128xf32>
    %cst_4 = arith.constant 9.99999997E-7 : f32
    %15 = vector.broadcast %cst_4 : f32 to vector<48x1xf32>
    %16 = arith.addf %12, %15 : vector<48x1xf32>
    %17 = math.rsqrt %16 : vector<48x1xf32>
    %18 = vector.broadcast %17 : vector<48x1xf32> to vector<48x128xf32>
    %19 = arith.mulf %14, %18 : vector<48x128xf32>
    %c0_5 = arith.constant 0 : index
    %c0_6 = arith.constant 0 : index
    %20 = vector.load %arg2[%c0_5, %c0_6] : memref<1x128xf32, #tpu.memory_space<vmem>>, vector<1x128xf32>
    %21 = vector.broadcast %20 : vector<1x128xf32> to vector<48x128xf32>
    %22 = arith.mulf %19, %21 : vector<48x128xf32>
    %c0_7 = arith.constant 0 : index
    %c0_8 = arith.constant 0 : index
    %23 = vector.load %arg3[%c0_7, %c0_8] : memref<1x128xf32, #tpu.memory_space<vmem>>, vector<1x128xf32>
    %24 = vector.broadcast %23 : vector<1x128xf32> to vector<48x128xf32>
    %25 = arith.addf %22, %24 : vector<48x128xf32>
    %26 = arith.truncf %25 : vector<48x128xf32> to vector<48x128xbf16>
    %c0_9 = arith.constant 0 : index
    %c0_10 = arith.constant 0 : index
    %27 = vector.load %arg4[%c0_9, %c0_10] : memref<128x512xbf16, #tpu.memory_space<vmem>>, vector<128x512xbf16>
    %cst_11 = arith.constant dense<0.000000e+00> : vector<48x512xf32>
    %28 = tpu.matmul %26, %27, %cst_11 {dimension_numbers = #tpu.dot_dimension_numbers<[1], [0], [0], [1], [0, 0, 1, 1], [], []>} : vector<48x128xbf16>, vector<128x512xbf16>, vector<48x512xf32> -> vector<48x512xf32>
    %c0_12 = arith.constant 0 : index
    %c0_13 = arith.constant 0 : index
    %29 = vector.load %arg5[%c0_12, %c0_13] : memref<1x512xf32, #tpu.memory_space<vmem>>, vector<1x512xf32>
    %30 = vector.broadcast %29 : vector<1x512xf32> to vector<48x512xf32>
    %31 = arith.addf %28, %30 : vector<48x512xf32>
    %32 = arith.mulf %31, %31 : vector<48x512xf32>
    %33 = arith.mulf %31, %32 : vector<48x512xf32>
    %cst_14 = arith.constant 4.471500e-02 : f32
    %34 = vector.broadcast %cst_14 : f32 to vector<48x512xf32>
    %35 = arith.mulf %34, %33 : vector<48x512xf32>
    %36 = arith.addf %31, %35 : vector<48x512xf32>
    %cst_15 = arith.constant 0.797884583 : f32
    %37 = vector.broadcast %cst_15 : f32 to vector<48x512xf32>
    %38 = arith.mulf %37, %36 : vector<48x512xf32>
    %39 = math.tanh %38 : vector<48x512xf32>
    %cst_16 = arith.constant 1.000000e+00 : f32
    %40 = vector.broadcast %cst_16 : f32 to vector<48x512xf32>
    %41 = arith.addf %40, %39 : vector<48x512xf32>
    %cst_17 = arith.constant 5.000000e-01 : f32
    %42 = vector.broadcast %cst_17 : f32 to vector<48x512xf32>
    %43 = arith.mulf %42, %41 : vector<48x512xf32>
    %44 = arith.mulf %31, %43 : vector<48x512xf32>
    %45 = arith.truncf %44 : vector<48x512xf32> to vector<48x512xbf16>
    %c0_18 = arith.constant 0 : index
    %c0_19 = arith.constant 0 : index
    %46 = vector.load %arg6[%c0_18, %c0_19] : memref<48x512xbf16, #tpu.memory_space<vmem>>, vector<48x512xbf16>
    tpu.vector_store %arg6[%c0_18, %c0_19], %45 {strides = array<i32>} : memref<48x512xbf16, #tpu.memory_space<vmem>>, vector<48x512xbf16>,
    return
  }
  func.func @transform_0(%arg0: i32) -> (i32, i32) {
    %c0_i32 = arith.constant 0 : i32
    %c0_i32_0 = arith.constant 0 : i32
    return %arg0, %c0_i32 : i32, i32
  }
  func.func @transform_1(%arg0: i32) -> (i32, i32) {
    %c0_i32 = arith.constant 0 : i32
    %c0_i32_0 = arith.constant 0 : i32
    %c0_i32_1 = arith.constant 0 : i32
    return %c0_i32, %c0_i32_0 : i32, i32
  }
  func.func @transform_2(%arg0: i32) -> (i32, i32) {
    %c0_i32 = arith.constant 0 : i32
    %c0_i32_0 = arith.constant 0 : i32
    %c0_i32_1 = arith.constant 0 : i32
    return %c0_i32, %c0_i32_0 : i32, i32
  }
  func.func @transform_3(%arg0: i32) -> (i32, i32) {
    %c0_i32 = arith.constant 0 : i32
    %c0_i32_0 = arith.constant 0 : i32
    %c0_i32_1 = arith.constant 0 : i32
    return %c0_i32, %c0_i32_0 : i32, i32
  }
  func.func @transform_4(%arg0: i32) -> (i32, i32) {
    %c0_i32 = arith.constant 0 : i32
    %c0_i32_0 = arith.constant 0 : i32
    %c0_i32_1 = arith.constant 0 : i32
    return %c0_i32, %c0_i32_0 : i32, i32
  }
  func.func @transform_5(%arg0: i32) -> (i32, i32) {
    %c0_i32 = arith.constant 0 : i32
    %c0_i32_0 = arith.constant 0 : i32
    return %arg0, %c0_i32 : i32, i32
  }
}

module attributes {stable_mosaic.version = 11 : i64} {
  func.func @_layernorm_kernel(%arg0: memref<2x128xbf16, #tpu.memory_space<vmem>>, %arg1: memref<1x128xf32, #tpu.memory_space<vmem>>, %arg2: memref<1x128xf32, #tpu.memory_space<vmem>>, %arg3: memref<2x128xf32, #tpu.memory_space<vmem>>) attributes {dimension_semantics = [], scalar_prefetch = 0 : i64, scratch_operands = 0 : i64, tpu.core_type = #tpu.core_type<tc>} {
    %c0 = arith.constant 0 : index
    %c0_0 = arith.constant 0 : index
    %0 = vector.load %arg0[%c0, %c0_0] : memref<2x128xbf16, #tpu.memory_space<vmem>>, vector<2x128xbf16>
    %1 = arith.extf %0 : vector<2x128xbf16> to vector<2x128xf32>
    %cst = arith.constant dense<0.000000e+00> : vector<2xf32>
    %2 = vector.multi_reduction <add>, %1, %cst [1] : vector<2x128xf32> to vector<2xf32>
    %3 = vector.shape_cast %2 : vector<2xf32> to vector<2x1xf32>
    %cst_1 = arith.constant 1.280000e+02 : f32
    %4 = vector.broadcast %cst_1 : f32 to vector<2x1xf32>
    %5 = arith.divf %3, %4 : vector<2x1xf32>
    %6 = vector.broadcast %5 : vector<2x1xf32> to vector<2x128xf32>
    %7 = arith.subf %1, %6 : vector<2x128xf32>
    %8 = arith.mulf %7, %7 : vector<2x128xf32>
    %cst_2 = arith.constant dense<0.000000e+00> : vector<2xf32>
    %9 = vector.multi_reduction <add>, %8, %cst_2 [1] : vector<2x128xf32> to vector<2xf32>
    %10 = vector.shape_cast %9 : vector<2xf32> to vector<2x1xf32>
    %cst_3 = arith.constant 1.280000e+02 : f32
    %11 = vector.broadcast %cst_3 : f32 to vector<2x1xf32>
    %12 = arith.divf %10, %11 : vector<2x1xf32>
    %13 = vector.broadcast %5 : vector<2x1xf32> to vector<2x128xf32>
    %14 = arith.subf %1, %13 : vector<2x128xf32>
    %cst_4 = arith.constant 9.99999997E-7 : f32
    %15 = vector.broadcast %cst_4 : f32 to vector<2x1xf32>
    %16 = arith.addf %12, %15 : vector<2x1xf32>
    %17 = math.rsqrt %16 : vector<2x1xf32>
    %18 = vector.broadcast %17 : vector<2x1xf32> to vector<2x128xf32>
    %19 = arith.mulf %14, %18 : vector<2x128xf32>
    %c0_5 = arith.constant 0 : index
    %c0_6 = arith.constant 0 : index
    %20 = vector.load %arg1[%c0_5, %c0_6] : memref<1x128xf32, #tpu.memory_space<vmem>>, vector<1x128xf32>
    %21 = vector.broadcast %20 : vector<1x128xf32> to vector<2x128xf32>
    %22 = arith.mulf %19, %21 : vector<2x128xf32>
    %c0_7 = arith.constant 0 : index
    %c0_8 = arith.constant 0 : index
    %23 = vector.load %arg2[%c0_7, %c0_8] : memref<1x128xf32, #tpu.memory_space<vmem>>, vector<1x128xf32>
    %24 = vector.broadcast %23 : vector<1x128xf32> to vector<2x128xf32>
    %25 = arith.addf %22, %24 : vector<2x128xf32>
    %c0_9 = arith.constant 0 : index
    %c0_10 = arith.constant 0 : index
    %26 = vector.load %arg3[%c0_9, %c0_10] : memref<2x128xf32, #tpu.memory_space<vmem>>, vector<2x128xf32>
    tpu.vector_store %arg3[%c0_9, %c0_10], %25 {strides = array<i32>} : memref<2x128xf32, #tpu.memory_space<vmem>>, vector<2x128xf32>,
    return
  }
}

module attributes {stable_mosaic.version = 11 : i64} {
  func.func @_linear_resid_kernel(%arg0: i32, %arg1: memref<48x512xbf16, #tpu.memory_space<vmem>>, %arg2: memref<512x128xbf16, #tpu.memory_space<vmem>>, %arg3: memref<1x128xf32, #tpu.memory_space<vmem>>, %arg4: memref<48x128xbf16, #tpu.memory_space<vmem>>, %arg5: memref<48x128xbf16, #tpu.memory_space<vmem>>) attributes {dimension_semantics = [#tpu.dimension_semantics<parallel>], iteration_bounds = array<i64: 1>, scalar_prefetch = 0 : i64, scratch_operands = 0 : i64, tpu.core_type = #tpu.core_type<tc>, window_params = [{transform_indices = @transform_0, window_bounds = array<i64: 48, 512>}, {pipeline_mode = #tpu.pipeline_mode<synchronous>, transform_indices = @transform_1, window_bounds = array<i64: 512, 128>}, {pipeline_mode = #tpu.pipeline_mode<synchronous>, transform_indices = @transform_2, window_bounds = array<i64: 1, 128>}, {transform_indices = @transform_3, window_bounds = array<i64: 48, 128>}, {transform_indices = @transform_4, window_bounds = array<i64: 48, 128>}]} {
    %c0 = arith.constant 0 : index
    %c0_0 = arith.constant 0 : index
    %0 = vector.load %arg1[%c0, %c0_0] : memref<48x512xbf16, #tpu.memory_space<vmem>>, vector<48x512xbf16>
    %c0_1 = arith.constant 0 : index
    %c0_2 = arith.constant 0 : index
    %1 = vector.load %arg2[%c0_1, %c0_2] : memref<512x128xbf16, #tpu.memory_space<vmem>>, vector<512x128xbf16>
    %cst = arith.constant dense<0.000000e+00> : vector<48x128xf32>
    %2 = tpu.matmul %0, %1, %cst {dimension_numbers = #tpu.dot_dimension_numbers<[1], [0], [0], [1], [0, 0, 1, 1], [], []>} : vector<48x512xbf16>, vector<512x128xbf16>, vector<48x128xf32> -> vector<48x128xf32>
    %c0_3 = arith.constant 0 : index
    %c0_4 = arith.constant 0 : index
    %3 = vector.load %arg3[%c0_3, %c0_4] : memref<1x128xf32, #tpu.memory_space<vmem>>, vector<1x128xf32>
    %4 = vector.broadcast %3 : vector<1x128xf32> to vector<48x128xf32>
    %5 = arith.addf %2, %4 : vector<48x128xf32>
    %c0_5 = arith.constant 0 : index
    %c0_6 = arith.constant 0 : index
    %6 = vector.load %arg4[%c0_5, %c0_6] : memref<48x128xbf16, #tpu.memory_space<vmem>>, vector<48x128xbf16>
    %7 = arith.extf %6 : vector<48x128xbf16> to vector<48x128xf32>
    %8 = arith.addf %5, %7 : vector<48x128xf32>
    %9 = arith.truncf %8 : vector<48x128xf32> to vector<48x128xbf16>
    %c0_7 = arith.constant 0 : index
    %c0_8 = arith.constant 0 : index
    %10 = vector.load %arg5[%c0_7, %c0_8] : memref<48x128xbf16, #tpu.memory_space<vmem>>, vector<48x128xbf16>
    tpu.vector_store %arg5[%c0_7, %c0_8], %9 {strides = array<i32>} : memref<48x128xbf16, #tpu.memory_space<vmem>>, vector<48x128xbf16>,
    return
  }
  func.func @transform_0(%arg0: i32) -> (i32, i32) {
    %c0_i32 = arith.constant 0 : i32
    %c0_i32_0 = arith.constant 0 : i32
    return %arg0, %c0_i32 : i32, i32
  }
  func.func @transform_1(%arg0: i32) -> (i32, i32) {
    %c0_i32 = arith.constant 0 : i32
    %c0_i32_0 = arith.constant 0 : i32
    %c0_i32_1 = arith.constant 0 : i32
    return %c0_i32, %c0_i32_0 : i32, i32
  }
  func.func @transform_2(%arg0: i32) -> (i32, i32) {
    %c0_i32 = arith.constant 0 : i32
    %c0_i32_0 = arith.constant 0 : i32
    %c0_i32_1 = arith.constant 0 : i32
    return %c0_i32, %c0_i32_0 : i32, i32
  }
  func.func @transform_3(%arg0: i32) -> (i32, i32) {
    %c0_i32 = arith.constant 0 : i32
    %c0_i32_0 = arith.constant 0 : i32
    return %arg0, %c0_i32 : i32, i32
  }
  func.func @transform_4(%arg0: i32) -> (i32, i32) {
    %c0_i32 = arith.constant 0 : i32
    %c0_i32_0 = arith.constant 0 : i32
    return %arg0, %c0_i32 : i32, i32
  }
}

</mosaic_0001>

<llo_original>
// kernel: _lambda_.12
$region0: #{_lambda_.12}
  #allocation0 [shape = 'u32[]', space=smem, size = 0x4, offset = 0x4, fixed_abs, tag = 'smem constant byte address 0x4 - core index']
  #allocation1 [shape = 'u32[144,128]{1,0:T(1,128)}', space=vmem, size = 0x12000, scoped, tag = 'internal scratch']
  %s0 = inlined_call_operand.vmem [shape: f32[32,192], index: 0, kind: input, shape index: {}]
  %s1 = inlined_call_operand.vmem [shape: bf16[192,128], index: 1, kind: input, shape index: {}]
  %s2 = inlined_call_operand.vmem [shape: f32[1,128], index: 2, kind: input, shape index: {}]
  %s3 = inlined_call_operand.vmem [shape: bf16[32,128], index: 3, kind: output, shape index: {}]
  %s4 = sld [smem:[#allocation0]]
  $region22: #{_lambda_.12} parent=0
    _
  %s6 = ssub.s32 1, %s4
  %s7 = scalar_select 0, %s6, %s4
  // Predicated region
  $region2: #{_lambda_.12} parent=0 // pred_check
    _
  $region3: #{_lambda_.12} parent=0 // pred_check_branch
    %9 = sbr.rel (0) target = $region5
  $region4: #{_lambda_.12} parent=0 // pred_region
    _
  $region5: #{_lambda_.12} parent=0 // pred_fallthru
    _
  // Predicated region
  $region6: #{_lambda_.12} parent=0 // pred_check
    _
  $region7: #{_lambda_.12} parent=0 // pred_check_branch
    %11 = sbr.rel (0) target = $region9
  $region8: #{_lambda_.12} parent=0 // pred_region
    _
  $region9: #{_lambda_.12} parent=0 // pred_fallthru
    _
  // Predicated region
  $region10: #{_lambda_.12} parent=0 // pred_check
    _
  $region11: #{_lambda_.12} parent=0 // pred_check_branch
    %13 = sbr.rel (0) target = $region13
  $region12: #{_lambda_.12} parent=0 // pred_region
    _
  $region13: #{_lambda_.12} parent=0 // pred_fallthru
    _
  %v15 = vld [vmem:[%s0] sm:$0xff]
  %v16 = vld [vmem:[%s0 + $0x8] sm:$0xff]
  %v17 = vld [vmem:[%s0 + $0x10] sm:$0xff]
  %v18 = vld [vmem:[%s0 + $0x18] sm:$0xff]
  %v19 = vld [vmem:[%s0 + $0x20] sm:$0xff]
  %v20 = vld [vmem:[%s0 + $0x28] sm:$0xff]
  %v21 = vld [vmem:[%s0 + $0x30] sm:$0xff]
  %v22 = vld [vmem:[%s0 + $0x38] sm:$0xff]
  %v23 = vpack.c.bf16 %v17, %v15
  %v24 = vpack.c.bf16 %v18, %v16
  %v25 = vpack.c.bf16 %v21, %v19
  %v26 = vpack.c.bf16 %v22, %v20
  %v27 = vld [vmem:[%s1] sm:$0xf]
  %v28 = vld [vmem:[%s1 + $0x4] sm:$0xf]
  %v29 = vld [vmem:[%s1 + $0x8] sm:$0xf]
  %v30 = vld [vmem:[%s1 + $0xc] sm:$0xf]
  %v31 = vld [vmem:[%s1 + $0x10] sm:$0xf]
  %v32 = vld [vmem:[%s1 + $0x14] sm:$0xf]
  %v33 = vld [vmem:[%s1 + $0x18] sm:$0xf]
  %v34 = vld [vmem:[%s1 + $0x1c] sm:$0xf]
  %v35 = vld [vmem:[%s1 + $0x20] sm:$0xf]
  %v36 = vld [vmem:[%s1 + $0x24] sm:$0xf]
  %v37 = vld [vmem:[%s1 + $0x28] sm:$0xf]
  %v38 = vld [vmem:[%s1 + $0x2c] sm:$0xf]
  %v39 = vld [vmem:[%s1 + $0x30] sm:$0xf]
  %v40 = vld [vmem:[%s1 + $0x34] sm:$0xf]
  %v41 = vld [vmem:[%s1 + $0x38] sm:$0xf]
  %v42 = vld [vmem:[%s1 + $0x3c] sm:$0xf]
  %v43 = vld [vmem:[%s1 + $0x40] sm:$0xf]
  %v44 = vld [vmem:[%s1 + $0x44] sm:$0xf]
  %v45 = vld [vmem:[%s1 + $0x48] sm:$0xf]
  %v46 = vld [vmem:[%s1 + $0x4c] sm:$0xf]
  %v47 = vld [vmem:[%s1 + $0x50] sm:$0xf]
  %v48 = vld [vmem:[%s1 + $0x54] sm:$0xf]
  %v49 = vld [vmem:[%s1 + $0x58] sm:$0xf]
  %v50 = vld [vmem:[%s1 + $0x5c] sm:$0xf]
  %v51 = vld [vmem:[%s2] sm:$0x1]
  %v53 = vlaneseq
  %v54 = vshrl.u32 %v53, 7
  %v55 = vsub.s32 0, %v54
  %v56 = vrot.slane %v51, %v55
  %v82 = vunpack.c.l.b16 %v27
  %v83 = vunpack.c.l.b16 %v28
  %v84 = vunpack.c.l.b16 %v29
  %v85 = vunpack.c.l.b16 %v30
  %v86 = vunpack.c.l.b16 %v31
  %v87 = vunpack.c.l.b16 %v32
  %v88 = vunpack.c.l.b16 %v33
  %v89 = vunpack.c.l.b16 %v34
  %v90 = vunpack.c.l.b16 %v35
  %v91 = vunpack.c.l.b16 %v36
  %v92 = vunpack.c.l.b16 %v37
  %v93 = vunpack.c.l.b16 %v38
  %v94 = vunpack.c.l.b16 %v39
  %v95 = vunpack.c.l.b16 %v40
  %v96 = vunpack.c.l.b16 %v41
  %v97 = vunpack.c.l.b16 %v42
  %v98 = vunpack.c.l.b16 %v43
  %v99 = vunpack.c.l.b16 %v44
  %v100 = vunpack.c.l.b16 %v45
  %v101 = vunpack.c.l.b16 %v46
  %v102 = vunpack.c.l.b16 %v47
  %v103 = vunpack.c.l.b16 %v48
  %v104 = vunpack.c.l.b16 %v49
  %v105 = vunpack.c.l.b16 %v50
  %v106 = vpack.c.b16 %v83, %v82
  %v107 = vpack.c.b16 %v85, %v84
  %v108 = vpack.c.b16 %v87, %v86
  %v109 = vpack.c.b16 %v89, %v88
  %v110 = vpack.c.b16 %v91, %v90
  %v111 = vpack.c.b16 %v93, %v92
  %v112 = vpack.c.b16 %v95, %v94
  %v113 = vpack.c.b16 %v97, %v96
  %v114 = vpack.c.b16 %v99, %v98
  %v115 = vpack.c.b16 %v101, %v100
  %v116 = vpack.c.b16 %v103, %v102
  %v117 = vpack.c.b16 %v105, %v104
  %vm130 = vcmask 523264
  %v132 = vsel %vm130, %v24, 0
  %v135 = vsel %vm130, %v26, 0
  %137 = vmatprep.subr.bf16.mxu0 0
  %138 = vmatpush1.bf16.msra.mxu0 %v106
  %139 = vmatprep.subr.bf16.mxu0 0
  %140 = vmatpush1.bf16.msra.mxu0 %v107
  %141 = vmatprep.subr.bf16.mxu0 0
  %142 = vmatpush1.bf16.msra.mxu0 %v108
  %143 = vmatprep.subr.bf16.mxu0 0
  %144 = vmatpush1.bf16.msra.mxu0 %v109
  %145 = vmatprep.subr.bf16.mxu0 0
  %146 = vmatpush1.bf16.msra.mxu0 %v110
  %147 = vmatprep.subr.bf16.mxu0 0
  %148 = vmatpush1.bf16.msra.mxu0 %v111
  %149 = vmatprep.subr.bf16.mxu0 0
  %150 = vmatpush1.bf16.msra.mxu0 %v112
  %151 = vmatprep.subr.bf16.mxu0 0
  %152 = vmatpush1.bf16.msra.mxu0 %v113
  %153 = vmatprep.subr.bf16.mxu0 0
  %154 = vmatpush1.bf16.msra.mxu0 %v114
  %155 = vmatprep.subr.bf16.mxu0 0
  %156 = vmatpush1.bf16.msra.mxu0 %v115
  %157 = vmatprep.subr.bf16.mxu0 0
  %158 = vmatpush1.bf16.msra.mxu0 %v116
  %159 = vmatprep.subr.bf16.mxu0 0
  %160 = vmatpush1.bf16.msra.mxu0 %v117
  %161 = vmatprep.subr.bf16.mxu0 0
  %162 = vmatpush1.bf16.msra.mxu0 0
  %163 = vmatprep.subr.bf16.mxu0 0
  %164 = vmatpush1.bf16.msra.mxu0 0
  %165 = vmatprep.subr.bf16.mxu0 0
  %166 = vmatpush1.bf16.msra.mxu0 0
  %167 = vmatprep.subr.bf16.mxu0 0
  %168 = vmatpush1.bf16.msra.mxu0 0
  %169 = vmatprep.mubr.bf16.mxu0 %v132
  %170 = vmatmul.mubr.bf16.gmra.mrb[0].mxu0 %v23
  %v171 = vpop.f32.mrb[0].mxu0
  %v172 = vadd.f32 %v56, %v171
  %v173 = vpop.f32.mrb[0].mxu0
  %v174 = vpop.f32.mrb[0].mxu0
  %v175 = vadd.f32 %v56, %v174
  %v176 = vpop.f32.mrb[0].mxu0
  %177 = vmatprep.mubr.bf16.mxu0 %v135
  %178 = vmatmul.mubr.bf16.gmra.mrb[0].mxu0 %v25
  %v179 = vpop.f32.mrb[0].mxu0
  %v180 = vadd.f32 %v56, %v179
  %v181 = vpop.f32.mrb[0].mxu0
  %v182 = vpop.f32.mrb[0].mxu0
  %v183 = vadd.f32 %v56, %v182
  %v184 = vpop.f32.mrb[0].mxu0
  %185 = vdwg.mxu0
  %v186 = vpack.c.bf16 %v175, %v172
  %v187 = vpack.c.bf16 %v183, %v180
  %v190 = vunpack.c.l.b16 %v186
  %v191 = vunpack.c.h.b16 %v186
  %v192 = vunpack.c.l.b16 %v187
  %v193 = vunpack.c.h.b16 %v187
  %v194 = vpack.c.b16 %v190, %v190
  %v195 = vpack.c.b16 %v191, %v191
  %v196 = vpack.c.b16 %v192, %v192
  %v197 = vpack.c.b16 %v193, %v193
  %202 = vst [vmem:[%s3] sm:$0xf] %v194
  %203 = vst [vmem:[%s3 + $0x4] sm:$0xf] %v195
  %204 = vst [vmem:[%s3 + $0x8] sm:$0xf] %v196
  %205 = vst [vmem:[%s3 + $0xc] sm:$0xf] %v197
  // Predicated region
  $region14: #{_lambda_.12} parent=0 // pred_check
    _
  $region15: #{_lambda_.12} parent=0 // pred_check_branch
    %207 = sbr.rel (0) target = $region17
  $region16: #{_lambda_.12} parent=0 // pred_region
    _
  $region17: #{_lambda_.12} parent=0 // pred_fallthru
    _
  // Predicated region
  $region18: #{_lambda_.12} parent=0 // pred_check
    _
  $region19: #{_lambda_.12} parent=0 // pred_check_branch
    %209 = sbr.rel (0) target = $region21
  $region20: #{_lambda_.12} parent=0 // pred_region
    _
  $region21: #{_lambda_.12} parent=0 // pred_fallthru
    _

// kernel: _lambda_.13
$region0: #{_lambda_.13}
  #allocation0 [shape = 'u32[]', space=smem, size = 0x4, offset = 0x4, fixed_abs, tag = 'smem constant byte address 0x4 - core index']
  #allocation1 [shape = 'u32[144,128]{1,0:T(1,128)}', space=vmem, size = 0x12000, scoped, tag = 'internal scratch']
  %s0 = inlined_call_operand.vmem [shape: bf16[48,128], index: 0, kind: input, shape index: {}]
  %s1 = inlined_call_operand.vmem [shape: f32[1,128], index: 1, kind: input, shape index: {}]
  %s2 = inlined_call_operand.vmem [shape: f32[1,128], index: 2, kind: input, shape index: {}]
  %s3 = inlined_call_operand.vmem [shape: bf16[128,384], index: 3, kind: input, shape index: {}]
  %s4 = inlined_call_operand.vmem [shape: f32[1,384], index: 4, kind: input, shape index: {}]
  %s5 = inlined_call_operand.vmem [shape: bf16[48,384], index: 5, kind: output, shape index: {}]
  %s6 = sld [smem:[#allocation0]]
  $region30: #{_lambda_.13} parent=0
    _
  %s8 = ssub.s32 1, %s6
  %s9 = scalar_select 0, %s8, %s6
  // Predicated region
  $region2: #{_lambda_.13} parent=0 // pred_check
    _
  $region3: #{_lambda_.13} parent=0 // pred_check_branch
    %11 = sbr.rel (0) target = $region5
  $region4: #{_lambda_.13} parent=0 // pred_region
    _
  $region5: #{_lambda_.13} parent=0 // pred_fallthru
    _
  // Predicated region
  $region6: #{_lambda_.13} parent=0 // pred_check
    _
  $region7: #{_lambda_.13} parent=0 // pred_check_branch
    %13 = sbr.rel (0) target = $region9
  $region8: #{_lambda_.13} parent=0 // pred_region
    _
  $region9: #{_lambda_.13} parent=0 // pred_fallthru
    _
  // Predicated region
  $region10: #{_lambda_.13} parent=0 // pred_check
    _
  $region11: #{_lambda_.13} parent=0 // pred_check_branch
    %15 = sbr.rel (0) target = $region13
  $region12: #{_lambda_.13} parent=0 // pred_region
    _
  $region13: #{_lambda_.13} parent=0 // pred_fallthru
    _
  // Predicated region
  $region14: #{_lambda_.13} parent=0 // pred_check
    _
  $region15: #{_lambda_.13} parent=0 // pred_check_branch
    %17 = sbr.rel (0) target = $region17
  $region16: #{_lambda_.13} parent=0 // pred_region
    _
  $region17: #{_lambda_.13} parent=0 // pred_fallthru
    _
  // Predicated region
  $region18: #{_lambda_.13} parent=0 // pred_check
    _
  $region19: #{_lambda_.13} parent=0 // pred_check_branch
    %19 = sbr.rel (0) target = $region21
  $region20: #{_lambda_.13} parent=0 // pred_region
    _
  $region21: #{_lambda_.13} parent=0 // pred_fallthru
    _
  %v21 = vld [vmem:[%s0] sm:$0xf]
  %v22 = vld [vmem:[%s0 + $0x4] sm:$0xf]
  %v23 = vld [vmem:[%s0 + $0x8] sm:$0xf]
  %v24 = vld [vmem:[%s0 + $0xc] sm:$0xf]
  %v25 = vld [vmem:[%s0 + $0x10] sm:$0xf]
  %v26 = vld [vmem:[%s0 + $0x14] sm:$0xf]
  %v27 = vunpack.c.l.bf16 %v21
  %v28 = vunpack.c.l.bf16 %v22
  %v29 = vunpack.c.l.bf16 %v23
  %v30 = vunpack.c.l.bf16 %v24
  %v31 = vunpack.c.l.bf16 %v25
  %v32 = vunpack.c.l.bf16 %v26
  %33 = vadd.xlane.f32.xlu0 %v27
  %v34 = vpop.xlane.xlu0 %33
  %35 = vadd.xlane.f32.xlu0 %v28
  %v36 = vpop.xlane.xlu0 %35
  %37 = vadd.xlane.f32.xlu0 %v29
  %v38 = vpop.xlane.xlu0 %37
  %39 = vadd.xlane.f32.xlu0 %v30
  %v40 = vpop.xlane.xlu0 %39
  %41 = vadd.xlane.f32.xlu0 %v31
  %v42 = vpop.xlane.xlu0 %41
  %43 = vadd.xlane.f32.xlu0 %v32
  %v44 = vpop.xlane.xlu0 %43
  %v45 = vrcp.pop 128.0
  %v46 = vmul.f32 %v34, %v45
  %v47 = vmul.f32 %v36, %v45
  %v48 = vmul.f32 %v38, %v45
  %v49 = vmul.f32 %v40, %v45
  %v50 = vmul.f32 %v42, %v45
  %v51 = vmul.f32 %v44, %v45
  %v52 = vsub.f32 %v27, %v46
  %v53 = vsub.f32 %v28, %v47
  %v54 = vsub.f32 %v29, %v48
  %v55 = vsub.f32 %v30, %v49
  %v56 = vsub.f32 %v31, %v50
  %v57 = vsub.f32 %v32, %v51
  %v58 = vmul.f32 %v52, %v52
  %v59 = vmul.f32 %v53, %v53
  %v60 = vmul.f32 %v54, %v54
  %v61 = vmul.f32 %v55, %v55
  %v62 = vmul.f32 %v56, %v56
  %v63 = vmul.f32 %v57, %v57
  %64 = vadd.xlane.f32.xlu0 %v58
  %v65 = vpop.xlane.xlu0 %64
  %66 = vadd.xlane.f32.xlu0 %v59
  %v67 = vpop.xlane.xlu0 %66
  %68 = vadd.xlane.f32.xlu0 %v60
  %v69 = vpop.xlane.xlu0 %68
  %70 = vadd.xlane.f32.xlu0 %v61
  %v71 = vpop.xlane.xlu0 %70
  %72 = vadd.xlane.f32.xlu0 %v62
  %v73 = vpop.xlane.xlu0 %72
  %74 = vadd.xlane.f32.xlu0 %v63
  %v75 = vpop.xlane.xlu0 %74
  %v76 = vmul.f32 %v65, %v45
  %v77 = vmul.f32 %v67, %v45
  %v78 = vmul.f32 %v69, %v45
  %v79 = vmul.f32 %v71, %v45
  %v80 = vmul.f32 %v73, %v45
  %v81 = vmul.f32 %v75, %v45
  %v82 = vadd.f32 %v76, 1e-06
  %v83 = vadd.f32 %v77, 1e-06
  %v84 = vadd.f32 %v78, 1e-06
  %v85 = vadd.f32 %v79, 1e-06
  %v86 = vadd.f32 %v80, 1e-06
  %v87 = vadd.f32 %v81, 1e-06
  %v88 = vrsqrt.pop %v82
  %v89 = vrsqrt.pop %v83
  %v90 = vrsqrt.pop %v84
  %v91 = vrsqrt.pop %v85
  %v92 = vrsqrt.pop %v86
  %v93 = vrsqrt.pop %v87
  %v94 = vmul.f32 %v52, %v88
  %v95 = vmul.f32 %v53, %v89
  %v96 = vmul.f32 %v54, %v90
  %v97 = vmul.f32 %v55, %v91
  %v98 = vmul.f32 %v56, %v92
  %v99 = vmul.f32 %v57, %v93
  %v100 = vld [vmem:[%s1] sm:$0x1]
  %v102 = vlaneseq
  %v103 = vshrl.u32 %v102, 7
  %v104 = vsub.s32 0, %v103
  %v105 = vrot.slane %v100, %v104
  %v107 = vmul.f32 %v94, %v105
  %v108 = vmul.f32 %v95, %v105
  %v109 = vmul.f32 %v96, %v105
  %v110 = vmul.f32 %v97, %v105
  %v111 = vmul.f32 %v98, %v105
  %v112 = vmul.f32 %v99, %v105
  %v113 = vld [vmem:[%s2] sm:$0x1]
  %v115 = vlaneseq
  %v116 = vshrl.u32 %v115, 7
  %v117 = vsub.s32 0, %v116
  %v118 = vrot.slane %v113, %v117
  %v120 = vadd.f32 %v107, %v118
  %v121 = vadd.f32 %v108, %v118
  %v122 = vadd.f32 %v109, %v118
  %v123 = vadd.f32 %v110, %v118
  %v124 = vadd.f32 %v111, %v118
  %v125 = vadd.f32 %v112, %v118
  %v126 = vpack.c.bf16 %v121, %v120
  %v127 = vpack.c.bf16 %v123, %v122
  %v128 = vpack.c.bf16 %v125, %v124
  %v129 = vld [vmem:[%s3] sm:$0xff]
  %v130 = vld [vmem:[%s3 + $0x8] sm:$0xf]
  %v131 = vld [vmem:[%s3 + $0xc] sm:$0xff]
  %v132 = vld [vmem:[%s3 + $0x14] sm:$0xf]
  %v133 = vld [vmem:[%s3 + $0x18] sm:$0xff]
  %v134 = vld [vmem:[%s3 + $0x20] sm:$0xf]
  %v135 = vld [vmem:[%s3 + $0x24] sm:$0xff]
  %v136 = vld [vmem:[%s3 + $0x2c] sm:$0xf]
  %v137 = vld [vmem:[%s3 + $0x30] sm:$0xff]
  %v138 = vld [vmem:[%s3 + $0x38] sm:$0xf]
  %v139 = vld [vmem:[%s3 + $0x3c] sm:$0xff]
  %v140 = vld [vmem:[%s3 + $0x44] sm:$0xf]
  %v141 = vld [vmem:[%s3 + $0x48] sm:$0xff]
  %v142 = vld [vmem:[%s3 + $0x50] sm:$0xf]
  %v143 = vld [vmem:[%s3 + $0x54] sm:$0xff]
  %v144 = vld [vmem:[%s3 + $0x5c] sm:$0xf]
  %v145 = vld [vmem:[%s3 + $0x60] sm:$0xff]
  %v146 = vld [vmem:[%s3 + $0x68] sm:$0xf]
  %v147 = vld [vmem:[%s3 + $0x6c] sm:$0xff]
  %v148 = vld [vmem:[%s3 + $0x74] sm:$0xf]
  %v149 = vld [vmem:[%s3 + $0x78] sm:$0xff]
  %v150 = vld [vmem:[%s3 + $0x80] sm:$0xf]
  %v151 = vld [vmem:[%s3 + $0x84] sm:$0xff]
  %v152 = vld [vmem:[%s3 + $0x8c] sm:$0xf]
  %v153 = vld [vmem:[%s3 + $0x90] sm:$0xff]
  %v154 = vld [vmem:[%s3 + $0x98] sm:$0xf]
  %v155 = vld [vmem:[%s3 + $0x9c] sm:$0xff]
  %v156 = vld [vmem:[%s3 + $0xa4] sm:$0xf]
  %v157 = vld [vmem:[%s3 + $0xa8] sm:$0xff]
  %v158 = vld [vmem:[%s3 + $0xb0] sm:$0xf]
  %v159 = vld [vmem:[%s3 + $0xb4] sm:$0xff]
  %v160 = vld [vmem:[%s3 + $0xbc] sm:$0xf]
  %v161 = vld [vmem:[%s4] sm:$0x7]
  %v163 = vlaneseq
  %v164 = vshrl.u32 %v163, 7
  %v165 = vsub.s32 0, %v164
  %v166 = vrot.slane %v161, %v165
  %v167 = vlaneseq
  %v168 = vshrl.u32 %v167, 7
  %v169 = vsub.s32 1, %v168
  %v170 = vrot.slane %v161, %v169
  %v171 = vlaneseq
  %v172 = vshrl.u32 %v171, 7
  %v173 = vsub.s32 2, %v172
  %v174 = vrot.slane %v161, %v173
  %v210 = vunpack.c.l.b16 %v129
  %v211 = vunpack.c.h.b16 %v129
  %v212 = vunpack.c.l.b16 %v130
  %v213 = vunpack.c.l.b16 %v131
  %v214 = vunpack.c.h.b16 %v131
  %v215 = vunpack.c.l.b16 %v132
  %v216 = vunpack.c.l.b16 %v133
  %v217 = vunpack.c.h.b16 %v133
  %v218 = vunpack.c.l.b16 %v134
  %v219 = vunpack.c.l.b16 %v135
  %v220 = vunpack.c.h.b16 %v135
  %v221 = vunpack.c.l.b16 %v136
  %v222 = vunpack.c.l.b16 %v137
  %v223 = vunpack.c.h.b16 %v137
  %v224 = vunpack.c.l.b16 %v138
  %v225 = vunpack.c.l.b16 %v139
  %v226 = vunpack.c.h.b16 %v139
  %v227 = vunpack.c.l.b16 %v140
  %v228 = vunpack.c.l.b16 %v141
  %v229 = vunpack.c.h.b16 %v141
  %v230 = vunpack.c.l.b16 %v142
  %v231 = vunpack.c.l.b16 %v143
  %v232 = vunpack.c.h.b16 %v143
  %v233 = vunpack.c.l.b16 %v144
  %v234 = vunpack.c.l.b16 %v145
  %v235 = vunpack.c.h.b16 %v145
  %v236 = vunpack.c.l.b16 %v146
  %v237 = vunpack.c.l.b16 %v147
  %v238 = vunpack.c.h.b16 %v147
  %v239 = vunpack.c.l.b16 %v148
  %v240 = vunpack.c.l.b16 %v149
  %v241 = vunpack.c.h.b16 %v149
  %v242 = vunpack.c.l.b16 %v150
  %v243 = vunpack.c.l.b16 %v151
  %v244 = vunpack.c.h.b16 %v151
  %v245 = vunpack.c.l.b16 %v152
  %v246 = vunpack.c.l.b16 %v153
  %v247 = vunpack.c.h.b16 %v153
  %v248 = vunpack.c.l.b16 %v154
  %v249 = vunpack.c.l.b16 %v155
  %v250 = vunpack.c.h.b16 %v155
  %v251 = vunpack.c.l.b16 %v156
  %v252 = vunpack.c.l.b16 %v157
  %v253 = vunpack.c.h.b16 %v157
  %v254 = vunpack.c.l.b16 %v158
  %v255 = vunpack.c.l.b16 %v159
  %v256 = vunpack.c.h.b16 %v159
  %v257 = vunpack.c.l.b16 %v160
  %v258 = vpack.c.b16 %v213, %v210
  %v259 = vpack.c.b16 %v214, %v211
  %v260 = vpack.c.b16 %v215, %v212
  %v261 = vpack.c.b16 %v219, %v216
  %v262 = vpack.c.b16 %v220, %v217
  %v263 = vpack.c.b16 %v221, %v218
  %v264 = vpack.c.b16 %v225, %v222
  %v265 = vpack.c.b16 %v226, %v223
  %v266 = vpack.c.b16 %v227, %v224
  %v267 = vpack.c.b16 %v231, %v228
  %v268 = vpack.c.b16 %v232, %v229
  %v269 = vpack.c.b16 %v233, %v230
  %v270 = vpack.c.b16 %v237, %v234
  %v271 = vpack.c.b16 %v238, %v235
  %v272 = vpack.c.b16 %v239, %v236
  %v273 = vpack.c.b16 %v243, %v240
  %v274 = vpack.c.b16 %v244, %v241
  %v275 = vpack.c.b16 %v245, %v242
  %v276 = vpack.c.b16 %v249, %v246
  %v277 = vpack.c.b16 %v250, %v247
  %v278 = vpack.c.b16 %v251, %v248
  %v279 = vpack.c.b16 %v255, %v252
  %v280 = vpack.c.b16 %v256, %v253
  %v281 = vpack.c.b16 %v257, %v254
  %306 = vmatprep.subr.bf16.mxu0 %v259
  %307 = vmatpush1.bf16.msra.mxu0 %v258
  %308 = vmatprep.subr.bf16.mxu0 %v262
  %309 = vmatpush1.bf16.msra.mxu0 %v261
  %310 = vmatprep.subr.bf16.mxu0 %v265
  %311 = vmatpush1.bf16.msra.mxu0 %v264
  %312 = vmatprep.subr.bf16.mxu0 %v268
  %313 = vmatpush1.bf16.msra.mxu0 %v267
  %314 = vmatprep.subr.bf16.mxu0 %v271
  %315 = vmatpush1.bf16.msra.mxu0 %v270
  %316 = vmatprep.subr.bf16.mxu0 %v274
  %317 = vmatpush1.bf16.msra.mxu0 %v273
  %318 = vmatprep.subr.bf16.mxu0 %v277
  %319 = vmatpush1.bf16.msra.mxu0 %v276
  %320 = vmatprep.subr.bf16.mxu0 %v280
  %321 = vmatpush1.bf16.msra.mxu0 %v279
  %322 = vmatprep.subr.bf16.mxu0 0
  %323 = vmatpush1.bf16.msra.mxu0 0
  %324 = vmatprep.subr.bf16.mxu0 0
  %325 = vmatpush1.bf16.msra.mxu0 0
  %326 = vmatprep.subr.bf16.mxu0 0
  %327 = vmatpush1.bf16.msra.mxu0 0
  %328 = vmatprep.subr.bf16.mxu0 0
  %329 = vmatpush1.bf16.msra.mxu0 0
  %330 = vmatprep.subr.bf16.mxu0 0
  %331 = vmatpush1.bf16.msra.mxu0 0
  %332 = vmatprep.subr.bf16.mxu0 0
  %333 = vmatpush1.bf16.msra.mxu0 0
  %334 = vmatprep.subr.bf16.mxu0 0
  %335 = vmatpush1.bf16.msra.mxu0 0
  %336 = vmatprep.subr.bf16.mxu0 0
  %337 = vmatpush1.bf16.msra.mxu0 0
  %338 = vmatprep.mubr.bf16.mxu0 0
  %339 = vmatmul.mubr.bf16.gmra.mrb[0].mxu0 %v126
  %v340 = vpop.f32.mrb[0].mxu0
  %v341 = vadd.f32 %v166, %v340
  %v342 = vpop.f32.mrb[0].mxu0
  %v343 = vadd.f32 %v170, %v342
  %v344 = vpop.f32.mrb[0].mxu0
  %v345 = vadd.f32 %v166, %v344
  %v346 = vpop.f32.mrb[0].mxu0
  %v347 = vadd.f32 %v170, %v346
  %348 = vmatprep.mubr.bf16.mxu0 0
  %349 = vmatmul.mubr.bf16.gmra.mrb[0].mxu0 %v127
  %v350 = vpop.f32.mrb[0].mxu0
  %v351 = vadd.f32 %v166, %v350
  %v352 = vpop.f32.mrb[0].mxu0
  %v353 = vadd.f32 %v170, %v352
  %v354 = vpop.f32.mrb[0].mxu0
  %v355 = vadd.f32 %v166, %v354
  %v356 = vpop.f32.mrb[0].mxu0
  %v357 = vadd.f32 %v170, %v356
  %358 = vmatprep.mubr.bf16.mxu0 0
  %359 = vmatmul.mubr.bf16.gmra.mrb[0].mxu0 %v128
  %v360 = vpop.f32.mrb[0].mxu0
  %v361 = vadd.f32 %v166, %v360
  %v362 = vpop.f32.mrb[0].mxu0
  %v363 = vadd.f32 %v170, %v362
  %v364 = vpop.f32.mrb[0].mxu0
  %v365 = vadd.f32 %v166, %v364
  %v366 = vpop.f32.mrb[0].mxu0
  %v367 = vadd.f32 %v170, %v366
  %368 = vdwg.mxu0
  %369 = vmatprep.subr.bf16.mxu0 0
  %370 = vmatpush1.bf16.msra.mxu0 %v260
  %371 = vmatprep.subr.bf16.mxu0 0
  %372 = vmatpush1.bf16.msra.mxu0 %v263
  %373 = vmatprep.subr.bf16.mxu0 0
  %374 = vmatpush1.bf16.msra.mxu0 %v266
  %375 = vmatprep.subr.bf16.mxu0 0
  %376 = vmatpush1.bf16.msra.mxu0 %v269
  %377 = vmatprep.subr.bf16.mxu0 0
  %378 = vmatpush1.bf16.msra.mxu0 %v272
  %379 = vmatprep.subr.bf16.mxu0 0
  %380 = vmatpush1.bf16.msra.mxu0 %v275
  %381 = vmatprep.subr.bf16.mxu0 0
  %382 = vmatpush1.bf16.msra.mxu0 %v278
  %383 = vmatprep.subr.bf16.mxu0 0
  %384 = vmatpush1.bf16.msra.mxu0 %v281
  %385 = vmatprep.subr.bf16.mxu0 0
  %386 = vmatpush1.bf16.msra.mxu0 0
  %387 = vmatprep.subr.bf16.mxu0 0
  %388 = vmatpush1.bf16.msra.mxu0 0
  %389 = vmatprep.subr.bf16.mxu0 0
  %390 = vmatpush1.bf16.msra.mxu0 0
  %391 = vmatprep.subr.bf16.mxu0 0
  %392 = vmatpush1.bf16.msra.mxu0 0
  %393 = vmatprep.subr.bf16.mxu0 0
  %394 = vmatpush1.bf16.msra.mxu0 0
  %395 = vmatprep.subr.bf16.mxu0 0
  %396 = vmatpush1.bf16.msra.mxu0 0
  %397 = vmatprep.subr.bf16.mxu0 0
  %398 = vmatpush1.bf16.msra.mxu0 0
  %399 = vmatprep.subr.bf16.mxu0 0
  %400 = vmatpush1.bf16.msra.mxu0 0
  %401 = vmatprep.mubr.bf16.mxu0 0
  %402 = vmatmul.mubr.bf16.gmra.mrb[0].mxu0 %v126
  %v403 = vpop.f32.mrb[0].mxu0
  %v404 = vadd.f32 %v174, %v403
  %v405 = vpop.f32.mrb[0].mxu0
  %v406 = vpop.f32.mrb[0].mxu0
  %v407 = vadd.f32 %v174, %v406
  %v408 = vpop.f32.mrb[0].mxu0
  %409 = vmatprep.mubr.bf16.mxu0 0
  %410 = vmatmul.mubr.bf16.gmra.mrb[0].mxu0 %v127
  %v411 = vpop.f32.mrb[0].mxu0
  %v412 = vadd.f32 %v174, %v411
  %v413 = vpop.f32.mrb[0].mxu0
  %v414 = vpop.f32.mrb[0].mxu0
  %v415 = vadd.f32 %v174, %v414
  %v416 = vpop.f32.mrb[0].mxu0
  %417 = vmatprep.mubr.bf16.mxu0 0
  %418 = vmatmul.mubr.bf16.gmra.mrb[0].mxu0 %v128
  %v419 = vpop.f32.mrb[0].mxu0
  %v420 = vadd.f32 %v174, %v419
  %v421 = vpop.f32.mrb[0].mxu0
  %v422 = vpop.f32.mrb[0].mxu0
  %v423 = vadd.f32 %v174, %v422
  %v424 = vpop.f32.mrb[0].mxu0
  %425 = vdwg.mxu0
  %v426 = vpack.c.bf16 %v345, %v341
  %v427 = vpack.c.bf16 %v347, %v343
  %v428 = vpack.c.bf16 %v407, %v404
  %v429 = vpack.c.bf16 %v355, %v351
  %v430 = vpack.c.bf16 %v357, %v353
  %v431 = vpack.c.bf16 %v415, %v412
  %v432 = vpack.c.bf16 %v365, %v361
  %v433 = vpack.c.bf16 %v367, %v363
  %v434 = vpack.c.bf16 %v423, %v420
  %v444 = vunpack.c.l.b16 %v426
  %v445 = vunpack.c.l.b16 %v427
  %v446 = vunpack.c.l.b16 %v428
  %v447 = vunpack.c.h.b16 %v426
  %v448 = vunpack.c.h.b16 %v427
  %v449 = vunpack.c.h.b16 %v428
  %v450 = vunpack.c.l.b16 %v429
  %v451 = vunpack.c.l.b16 %v430
  %v452 = vunpack.c.l.b16 %v431
  %v453 = vunpack.c.h.b16 %v429
  %v454 = vunpack.c.h.b16 %v430
  %v455 = vunpack.c.h.b16 %v431
  %v456 = vunpack.c.l.b16 %v432
  %v457 = vunpack.c.l.b16 %v433
  %v458 = vunpack.c.l.b16 %v434
  %v459 = vunpack.c.h.b16 %v432
  %v460 = vunpack.c.h.b16 %v433
  %v461 = vunpack.c.h.b16 %v434
  %v462 = vpack.c.b16 %v445, %v444
  %v463 = vpack.c.b16 %v446, %v446
  %v464 = vpack.c.b16 %v448, %v447
  %v465 = vpack.c.b16 %v449, %v449
  %v466 = vpack.c.b16 %v451, %v450
  %v467 = vpack.c.b16 %v452, %v452
  %v468 = vpack.c.b16 %v454, %v453
  %v469 = vpack.c.b16 %v455, %v455
  %v470 = vpack.c.b16 %v457, %v456
  %v471 = vpack.c.b16 %v458, %v458
  %v472 = vpack.c.b16 %v460, %v459
  %v473 = vpack.c.b16 %v461, %v461
  %486 = vst [vmem:[%s5] sm:$0xff] %v462
  %487 = vst [vmem:[%s5 + $0x8] sm:$0xf] %v463
  %488 = vst [vmem:[%s5 + $0xc] sm:$0xff] %v464
  %489 = vst [vmem:[%s5 + $0x14] sm:$0xf] %v465
  %490 = vst [vmem:[%s5 + $0x18] sm:$0xff] %v466
  %491 = vst [vmem:[%s5 + $0x20] sm:$0xf] %v467
  %492 = vst [vmem:[%s5 + $0x24] sm:$0xff] %v468
  %493 = vst [vmem:[%s5 + $0x2c] sm:$0xf] %v469
  %494 = vst [vmem:[%s5 + $0x30] sm:$0xff] %v470
  %495 = vst [vmem:[%s5 + $0x38] sm:$0xf] %v471
  %496 = vst [vmem:[%s5 + $0x3c] sm:$0xff] %v472
  %497 = vst [vmem:[%s5 + $0x44] sm:$0xf] %v473
  // Predicated region
  $region22: #{_lambda_.13} parent=0 // pred_check
    _
  $region23: #{_lambda_.13} parent=0 // pred_check_branch
    %499 = sbr.rel (0) target = $region25
  $region24: #{_lambda_.13} parent=0 // pred_region
    _
  $region25: #{_lambda_.13} parent=0 // pred_fallthru
    _
  // Predicated region
  $region26: #{_lambda_.13} parent=0 // pred_check
    _
  $region27: #{_lambda_.13} parent=0 // pred_check_branch
    %501 = sbr.rel (0) target = $region29
  $region28: #{_lambda_.13} parent=0 // pred_region
    _
  $region29: #{_lambda_.13} parent=0 // pred_fallthru
    _

// kernel: _lambda_.14
$region0: #{_lambda_.14}
  #allocation0 [shape = 'u32[]', space=smem, size = 0x4, offset = 0x4, fixed_abs, tag = 'smem constant byte address 0x4 - core index']
  #allocation1 [shape = 'u32[144,128]{1,0:T(1,128)}', space=vmem, size = 0x12000, scoped, tag = 'internal scratch']
  %s0 = inlined_call_operand.vmem [shape: bf16[2,24,384], index: 0, kind: input, shape index: {}, may-alias: {0,1}]
  %s1 = inlined_call_operand.vmem [shape: bf16[2,24,384], index: 1, kind: input, shape index: {}, may-alias: {0,1}]
  %s2 = inlined_call_operand.vmem [shape: bf16[2,24,128], index: 2, kind: output, shape index: {}]
  %s3 = sld [smem:[#allocation0]]
  $region41: #{_lambda_.14} parent=0
    _
  %s5 = ssub.s32 1, %s3
  %s6 = scalar_select 0, %s5, %s3
  loop: start=0, step=1, limit=4
  $region2: #{_lambda_.14} parent=0 // loop_pre_header
    _
  $region3: #{_lambda_.14} parent=0 // loop_header
    %s8 = sphi 0, %s12
    %p9 = scmp.ge.s32.totalorder %s8, 4
    %s15 = sphi 0, %s27
    %s16 = sphi 0, %s23
    %s17 = sphi 0, %s15
    %s18 = sphi 0, %s16
    %s19 = sphi 0, %s17
    %s20 = sphi 0, %s18
    %s32 = sphi 0, %s34
    %s35 = sphi 0, %s32
    %s36 = sphi 0, %s35
    %s52 = sphi 0, %s36
    %s58 = sphi 0, %s60
    %s61 = sphi 0, %s58
    %s62 = sphi 0, %s61
    %s78 = sphi 0, %s62
    %s86 = sphi 0, %s88
    %s89 = sphi 0, %s86
    %s90 = sphi 0, %s89
    %s106 = sphi 0, %s90
  $region4: #{_lambda_.14} parent=0 // loop_header_branch
    %11 = sbr.rel (%p9) target = $region8
  $region5: #{_lambda_.14} parent=0 // loop_body
    %s13 = ssub.s32 %s8, 1
    %s14 = ssub.s32 %s8, 2
    %s21 = sadd.s32 1, %s16
    %p22 = scmp.ge.s32.totalorder %s21, 1
    %s23 = scalar_select %p22, 0, %s21
    %s24 = sadd.s32 1, %s15
    %s25 = scalar_select %p22, %s24, %s15
    %p26 = scmp.ge.s32.totalorder %s25, 2
    %s27 = scalar_select %p26, 0, %s25
    %s28 = ssub.s32 %s15, %s27
    %s29 = ssub.s32 %s16, %s23
    %s30 = sor.u32 %s28, %s29
    %p31 = scmp.eq.s32.totalorder %s30, 0
    %s33 = sadd.s32 %s32, 1
    %s34 = scalar_select %p31, %s32, %s33
    %p37 = pneg %p31
    %p38 = scmp.eq.s32.totalorder %s8, 1
    %p39 = por %p37, %p38
    %p40 = scmp.ne.s32.totalorder %s32, %s35
    %p41 = scmp.eq.s32.totalorder %s8, 0
    %p42 = por %p40, %p41
    %p43 = scmp.ne.s32.totalorder %s32, %s35
    %p44 = scmp.eq.s32.totalorder %s13, 1
    %p45 = por %p43, %p44
    %p46 = scmp.ne.s32.totalorder %s35, %s36
    %p47 = scmp.eq.s32.totalorder %s13, 0
    %p48 = por %p46, %p47
    %p49 = scmp.ne.s32.totalorder %s35, %s36
    %p50 = scmp.eq.s32.totalorder %s14, 1
    %p51 = por %p49, %p50
    %p53 = scmp.ne.s32.totalorder %s36, %s52
    %p54 = scmp.eq.s32.totalorder %s14, 0
    %p55 = por %p53, %p54
    %s56 = ssub.s32 %s15, %s27
    %p57 = scmp.eq.s32.totalorder %s56, 0
    %s59 = sadd.s32 %s58, 1
    %s60 = scalar_select %p57, %s58, %s59
    %p63 = pneg %p57
    %p64 = scmp.eq.s32.totalorder %s8, 1
    %p65 = por %p63, %p64
    %p66 = scmp.ne.s32.totalorder %s58, %s61
    %p67 = scmp.eq.s32.totalorder %s8, 0
    %p68 = por %p66, %p67
    %p69 = scmp.ne.s32.totalorder %s58, %s61
    %p70 = scmp.eq.s32.totalorder %s13, 1
    %p71 = por %p69, %p70
    %p72 = scmp.ne.s32.totalorder %s61, %s62
    %p73 = scmp.eq.s32.totalorder %s13, 0
    %p74 = por %p72, %p73
    %p75 = scmp.ne.s32.totalorder %s61, %s62
    %p76 = scmp.eq.s32.totalorder %s14, 1
    %p77 = por %p75, %p76
    %p79 = scmp.ne.s32.totalorder %s62, %s78
    %p80 = scmp.eq.s32.totalorder %s14, 0
    %p81 = por %p79, %p80
    %s82 = ssub.s32 %s15, %s27
    %s83 = ssub.s32 %s16, %s23
    %s84 = sor.u32 %s82, %s83
    %p85 = scmp.eq.s32.totalorder %s84, 0
    %s87 = sadd.s32 %s86, 1
    %s88 = scalar_select %p85, %s86, %s87
    %p91 = pneg %p85
    %p92 = scmp.eq.s32.totalorder %s8, 1
    %p93 = por %p91, %p92
    %p94 = scmp.ne.s32.totalorder %s86, %s89
    %p95 = scmp.eq.s32.totalorder %s8, 0
    %p96 = por %p94, %p95
    %p97 = scmp.ne.s32.totalorder %s86, %s89
    %p98 = scmp.eq.s32.totalorder %s13, 1
    %p99 = por %p97, %p98
    %p100 = scmp.ne.s32.totalorder %s89, %s90
    %p101 = scmp.eq.s32.totalorder %s13, 0
    %p102 = por %p100, %p101
    %p103 = scmp.ne.s32.totalorder %s89, %s90
    %p104 = scmp.eq.s32.totalorder %s14, 1
    %p105 = por %p103, %p104
    %p107 = scmp.ne.s32.totalorder %s90, %s106
    %p108 = scmp.eq.s32.totalorder %s14, 0
    %p109 = por %p107, %p108
    %p110 = scmp.le.s32.totalorder 1, %s8
    %p111 = scmp.lt.s32.totalorder %s8, 3
    %p112 = pnand %p110, %p111
    %p113 = pneg %p112
    // Predicated region
    $region9: #{_lambda_.14} parent=5 // pred_check
      _
    $region10: #{_lambda_.14} parent=5 // pred_check_branch
      %115 = sbr.rel (%p112) target = $region12
    $region11: #{_lambda_.14} parent=5 // pred_region
      %s116 = ssub.s32 %s8, 1
    $region12: #{_lambda_.14} parent=5 // pred_fallthru
      _
    %p117 = scmp.lt.s32.totalorder %s8, 2
    // Predicated region
    $region13: #{_lambda_.14} parent=5 // pred_check
      %p118 = pneg %p117
    $region14: #{_lambda_.14} parent=5 // pred_check_branch
      %120 = sbr.rel (%p118) target = $region16
    $region15: #{_lambda_.14} parent=5 // pred_region
      // Predicated region
      $region17: #{_lambda_.14} parent=15 // pred_check
        %p121 = pneg %p42
      $region18: #{_lambda_.14} parent=15 // pred_check_branch
        %123 = sbr.rel (%p121) target = $region20
      $region19: #{_lambda_.14} parent=15 // pred_region
        %s124 = smul.u32 3, %s16
        %p125 = scmp.lt.s32.totalorder %s15, 1
        %s126 = scalar_select %p125, %s15, 1
        %p127 = scmp.lt.s32.totalorder %s124, 2
        %s128 = scalar_select %p127, %s124, 2
        %s129 = smul.addr %s128, 3
        %s130 = smul.addr %s126, 9
        %s131 = sadd.s32 %s129, %s130
        %s132 = smul.addr %s131, 4
        %s133 = scalar_lea.vmem %s0, %s132
        %s134 = smul.u32 3, %s16
      $region20: #{_lambda_.14} parent=15 // pred_fallthru
        _
      // Predicated region
      $region21: #{_lambda_.14} parent=15 // pred_check
        %p135 = pneg %p68
      $region22: #{_lambda_.14} parent=15 // pred_check_branch
        %137 = sbr.rel (%p135) target = $region24
      $region23: #{_lambda_.14} parent=15 // pred_region
        %p138 = scmp.lt.s32.totalorder %s15, 1
        %s139 = scalar_select %p138, %s15, 1
        %s140 = smul.addr %s139, 9
        %s141 = smul.addr %s140, 4
        %s142 = scalar_lea.vmem %s1, %s141
      $region24: #{_lambda_.14} parent=15 // pred_fallthru
        _
    $region16: #{_lambda_.14} parent=5 // pred_fallthru
      _
    %p143 = scmp.le.s32.totalorder 1, %s8
    %p144 = scmp.lt.s32.totalorder %s8, 3
    %p145 = pnand %p143, %p144
    %p146 = pneg %p145
    // Predicated region
    $region25: #{_lambda_.14} parent=5 // pred_check
      _
    $region26: #{_lambda_.14} parent=5 // pred_check_branch
      %148 = sbr.rel (%p145) target = $region28
    $region27: #{_lambda_.14} parent=5 // pred_region
      %s149 = ssub.s32 %s8, 1
      %s150 = smul.u32 3, %s18
      %p151 = scmp.lt.s32.totalorder %s17, 1
      %s152 = scalar_select %p151, %s17, 1
      %p153 = scmp.lt.s32.totalorder %s150, 2
      %s154 = scalar_select %p153, %s150, 2
      %s155 = smul.addr %s154, 3
      %s156 = smul.addr %s152, 9
      %s157 = sadd.s32 %s155, %s156
      %s158 = smul.addr %s157, 4
      %s159 = scalar_lea.vmem %s0, %s158
      %p160 = pneg %p48
      %p161 = pneg %p45
      %p162 = scmp.lt.s32.totalorder %s17, 1
      %s163 = scalar_select %p162, %s17, 1
      %s164 = smul.addr %s163, 9
      %s165 = smul.addr %s164, 4
      %s166 = scalar_lea.vmem %s1, %s165
      %p167 = pneg %p74
      %p168 = pneg %p71
      %p169 = pneg %p102
      %p170 = pneg %p99
      %s171 = smul.u32 3, %s18
      %p172 = scmp.lt.s32.totalorder %s17, 1
      %s173 = scalar_select %p172, %s17, 1
      %p174 = scmp.lt.s32.totalorder %s171, 2
      %s175 = scalar_select %p174, %s171, 2
      %s176 = smul.addr %s173, 3
      %s177 = sadd.s32 %s175, %s176
      %s178 = smul.addr %s177, 4
      %s179 = scalar_lea.vmem %s2, %s178
      %s180 = smul.u32 3, %s18
      %p181 = scmp.lt.s32.totalorder %s17, 1
      %s182 = scalar_select %p181, %s17, 1
      %p183 = scmp.lt.s32.totalorder %s180, 2
      %s184 = scalar_select %p183, %s180, 2
      %s185 = smul.addr %s184, 3
      %s186 = smul.addr %s182, 9
      %s187 = sadd.s32 %s185, %s186
      %s188 = smul.addr %s187, 4
      %s189 = scalar_lea.vmem %s0, %s188
      %s190 = smul.u32 3, %s18
      %p191 = scmp.lt.s32.totalorder %s17, 1
      %s192 = scalar_select %p191, %s17, 1
      %s193 = smul.addr %s192, 9
      %s194 = smul.addr %s193, 4
      %s195 = scalar_lea.vmem %s1, %s194
      %s196 = smul.u32 3, %s18
      %p197 = scmp.lt.s32.totalorder %s17, 1
      %s198 = scalar_select %p197, %s17, 1
      %p199 = scmp.lt.s32.totalorder %s196, 2
      %s200 = scalar_select %p199, %s196, 2
      %s201 = smul.addr %s198, 3
      %s202 = sadd.s32 %s200, %s201
      %s203 = smul.addr %s202, 4
      %s204 = scalar_lea.vmem %s2, %s203
      %s205 = smul.u32 3, %s18
      %v207 = vlaneseq
      %v208 = vand.u32 %v207, 127
      %vm209 = vcmp.lt.s32.totalorder %v208, 17
      %v210 = vsel %vm209, 0.0, -1e+30
      %v211 = vld [vmem:[%s189] sm:$0xf]
      %v212 = vld [vmem:[%s189 + $0xc] sm:$0xf]
      %v213 = vld [vmem:[%s189 + $0x18] sm:$0xf]
      %v214 = vld [vmem:[%s195 + $0x4] sm:$0xf]
      %v215 = vld [vmem:[%s195 + $0x10] sm:$0xf]
      %v216 = vld [vmem:[%s195 + $0x1c] sm:$0xf]
      %v217 = vld [vmem:[%s195 + $0x8] sm:$0xf]
      %v218 = vld [vmem:[%s195 + $0x14] sm:$0xf]
      %v219 = vld [vmem:[%s195 + $0x20] sm:$0xf]
      %v223 = vunpack.c.l.b16 %v211
      %v224 = vunpack.c.l.b16 %v212
      %v225 = vunpack.c.l.b16 %v213
      %v226 = vpack.c.b16 %v224, %v223
      %v227 = vpack.c.b16 %v225, %v225
      %v231 = vunpack.c.l.b16 %v214
      %v232 = vunpack.c.l.b16 %v215
      %v233 = vunpack.c.l.b16 %v216
      %v234 = vpack.c.b16 %v232, %v231
      %v235 = vpack.c.b16 %v233, %v233
      %vm236 = vcmask 523264
      %v238 = vsel %vm236, %v226, 0
      %v241 = vsel %vm236, %v227, 0
      %v244 = vsel %vm236, %v234, 0
      %v247 = vsel %vm236, %v235, 0
      %249 = vmatprep.subr.bf16.mxu0 0
      %250 = vmatpush1.bf16.xpose.msra.mxu0 %v244
      %251 = vmatprep.subr.bf16.mxu0 0
      %252 = vmatpush1.bf16.xpose.msra.mxu0 %v247
      %253 = vmatprep.subr.bf16.mxu0 0
      %254 = vmatpush1.bf16.xpose.msra.mxu0 0
      %255 = vmatprep.subr.bf16.mxu0 0
      %256 = vmatpush1.bf16.xpose.msra.mxu0 0
      %257 = vmatprep.subr.bf16.mxu0 0
      %258 = vmatpush1.bf16.xpose.msra.mxu0 0
      %259 = vmatprep.subr.bf16.mxu0 0
      %260 = vmatpush1.bf16.xpose.msra.mxu0 0
      %261 = vmatprep.subr.bf16.mxu0 0
      %262 = vmatpush1.bf16.xpose.msra.mxu0 0
      %263 = vmatprep.subr.bf16.mxu0 0
      %264 = vmatpush1.bf16.xpose.msra.mxu0 0
      %265 = vmatprep.subr.bf16.mxu0 0
      %266 = vmatpush1.bf16.xpose.msra.mxu0 0
      %267 = vmatprep.subr.bf16.mxu0 0
      %268 = vmatpush1.bf16.xpose.msra.mxu0 0
      %269 = vmatprep.subr.bf16.mxu0 0
      %270 = vmatpush1.bf16.xpose.msra.mxu0 0
      %271 = vmatprep.subr.bf16.mxu0 0
      %272 = vmatpush1.bf16.xpose.msra.mxu0 0
      %273 = vmatprep.subr.bf16.mxu0 0
      %274 = vmatpush1.bf16.xpose.msra.mxu0 0
      %275 = vmatprep.subr.bf16.mxu0 0
      %276 = vmatpush1.bf16.xpose.msra.mxu0 0
      %277 = vmatprep.subr.bf16.mxu0 0
      %278 = vmatpush1.bf16.xpose.msra.mxu0 0
      %279 = vmatprep.subr.bf16.mxu0 0
      %280 = vmatpush1.bf16.xpose.msra.mxu0 0
      %281 = vmatprep.mubr.bf16.mxu0 0
      %282 = vmatmul.mubr.bf16.gmra.mrb[0].mxu0 %v238
      %v283 = vpop.f32.mrb[0].mxu0
      %v284 = vadd.f32 0.0, %v283
      %v285 = vpop.f32.mrb[0].mxu0
      %v286 = vpop.f32.mrb[0].mxu0
      %v287 = vadd.f32 0.0, %v286
      %v288 = vpop.f32.mrb[0].mxu0
      %289 = vmatprep.mubr.bf16.mxu0 0
      %290 = vmatmul.mubr.bf16.gmra.mrb[0].mxu0 %v241
      %v291 = vpop.f32.mrb[0].mxu0
      %v292 = vadd.f32 0.0, %v291
      %v293 = vpop.f32.mrb[0].mxu0
      %v294 = vpop.f32.mrb[0].mxu0
      %v295 = vpop.f32.mrb[0].mxu0
      %296 = vdwg.mxu0
      %v297 = vmul.f32 %v284, 0.125
      %v298 = vmul.f32 %v287, 0.125
      %v299 = vmul.f32 %v292, 0.125
      %v300 = vadd.f32 %v297, %v210
      %v301 = vadd.f32 %v298, %v210
      %v302 = vadd.f32 %v299, %v210
      %vm303 = vcmask 195584
      %v304 = vsel %vm303, %v300, -inf
      %305 = vmax.xlane.f32.xlu0 %v304
      %v306 = vpop.xlane.xlu0 %305
      %v307 = vsel %vm303, %v301, -inf
      %308 = vmax.xlane.f32.xlu0 %v307
      %v309 = vpop.xlane.xlu0 %308
      %v310 = vsel %vm303, %v302, -inf
      %311 = vmax.xlane.f32.xlu0 %v310
      %v312 = vpop.xlane.xlu0 %311
      %v313 = vsub.f32 %v300, %v306
      %v314 = vsub.f32 %v301, %v309
      %v315 = vsub.f32 %v302, %v312
      %v316 = vmul.f32 %v313, 1.442695
      %v317 = vpow.pop %v316
      %v318 = vmul.f32 %v314, 1.442695
      %v319 = vpow.pop %v318
      %v320 = vmul.f32 %v315, 1.442695
      %v321 = vpow.pop %v320
      %v322 = vsel %vm303, %v317, 0.0
      %323 = vadd.xlane.f32.xlu0 %v322
      %v324 = vpop.xlane.xlu0 %323
      %v325 = vsel %vm303, %v319, 0.0
      %326 = vadd.xlane.f32.xlu0 %v325
      %v327 = vpop.xlane.xlu0 %326
      %v328 = vsel %vm303, %v321, 0.0
      %329 = vadd.xlane.f32.xlu0 %v328
      %v330 = vpop.xlane.xlu0 %329
      %v331 = vrcp.pop %v324
      %v332 = vrcp.pop %v327
      %v333 = vrcp.pop %v330
      %v334 = vmul.f32 %v317, %v331
      %v335 = vmul.f32 %v319, %v332
      %v336 = vmul.f32 %v321, %v333
      %v337 = vpack.c.bf16 %v335, %v334
      %v338 = vpack.c.bf16 %v336, %v336
      %v342 = vunpack.c.l.b16 %v217
      %v343 = vunpack.c.l.b16 %v218
      %v344 = vunpack.c.l.b16 %v219
      %v345 = vpack.c.b16 %v343, %v342
      %v346 = vpack.c.b16 %v344, %v344
      %v349 = vsel %vm303, %v337, 0
      %v352 = vsel %vm303, %v338, 0
      %vm354 = vcmask 1043456
      %v356 = vsel %vm354, %v346, 0
      %358 = vmatprep.subr.bf16.mxu0 0
      %359 = vmatpush1.bf16.msra.mxu0 %v345
      %360 = vmatprep.subr.bf16.mxu0 0
      %361 = vmatpush1.bf16.msra.mxu0 %v356
      %362 = vmatprep.subr.bf16.mxu0 0
      %363 = vmatpush1.bf16.msra.mxu0 0
      %364 = vmatprep.subr.bf16.mxu0 0
      %365 = vmatpush1.bf16.msra.mxu0 0
      %366 = vmatprep.subr.bf16.mxu0 0
      %367 = vmatpush1.bf16.msra.mxu0 0
      %368 = vmatprep.subr.bf16.mxu0 0
      %369 = vmatpush1.bf16.msra.mxu0 0
      %370 = vmatprep.subr.bf16.mxu0 0
      %371 = vmatpush1.bf16.msra.mxu0 0
      %372 = vmatprep.subr.bf16.mxu0 0
      %373 = vmatpush1.bf16.msra.mxu0 0
      %374 = vmatprep.subr.bf16.mxu0 0
      %375 = vmatpush1.bf16.msra.mxu0 0
      %376 = vmatprep.subr.bf16.mxu0 0
      %377 = vmatpush1.bf16.msra.mxu0 0
      %378 = vmatprep.subr.bf16.mxu0 0
      %379 = vmatpush1.bf16.msra.mxu0 0
      %380 = vmatprep.subr.bf16.mxu0 0
      %381 = vmatpush1.bf16.msra.mxu0 0
      %382 = vmatprep.subr.bf16.mxu0 0
      %383 = vmatpush1.bf16.msra.mxu0 0
      %384 = vmatprep.subr.bf16.mxu0 0
      %385 = vmatpush1.bf16.msra.mxu0 0
      %386 = vmatprep.subr.bf16.mxu0 0
      %387 = vmatpush1.bf16.msra.mxu0 0
      %388 = vmatprep.subr.bf16.mxu0 0
      %389 = vmatpush1.bf16.msra.mxu0 0
      %390 = vmatprep.mubr.bf16.mxu0 0
      %391 = vmatmul.mubr.bf16.gmra.mrb[0].mxu0 %v349
      %v392 = vpop.f32.mrb[0].mxu0
      %v393 = vadd.f32 0.0, %v392
      %v394 = vpop.f32.mrb[0].mxu0
      %v395 = vpop.f32.mrb[0].mxu0
      %v396 = vadd.f32 0.0, %v395
      %v397 = vpop.f32.mrb[0].mxu0
      %398 = vmatprep.mubr.bf16.mxu0 0
      %399 = vmatmul.mubr.bf16.gmra.mrb[0].mxu0 %v352
      %v400 = vpop.f32.mrb[0].mxu0
      %v401 = vadd.f32 0.0, %v400
      %v402 = vpop.f32.mrb[0].mxu0
      %v403 = vpop.f32.mrb[0].mxu0
      %v404 = vpop.f32.mrb[0].mxu0
      %405 = vdwg.mxu0
      %v406 = vpack.c.bf16 %v396, %v393
      %v407 = vpack.c.bf16 %v401, %v401
      %v410 = vunpack.c.l.b16 %v406
      %v411 = vunpack.c.h.b16 %v406
      %v412 = vunpack.c.l.b16 %v407
      %v413 = vpack.c.b16 %v410, %v410
      %v414 = vpack.c.b16 %v411, %v411
      %v415 = vpack.c.b16 %v412, %v412
      %vm419 = vcmask 519168
      %420 = vst.msk [vmem:[%s204] sm:$0xf] %vm419, %v413
      %421 = vst.msk [vmem:[%s204 + $0x4] sm:$0xf] %vm419, %v414
      %422 = vst.msk [vmem:[%s204 + $0x8] sm:$0xf] %vm419, %v415
      %v423 = vld [vmem:[%s189] sm:$0xf]
      %v424 = vld [vmem:[%s189 + $0xc] sm:$0xf]
      %v425 = vld [vmem:[%s189 + $0x18] sm:$0xf]
      %v426 = vld [vmem:[%s195 + $0x4] sm:$0xf]
      %v427 = vld [vmem:[%s195 + $0x10] sm:$0xf]
      %v428 = vld [vmem:[%s195 + $0x1c] sm:$0xf]
      %v429 = vld [vmem:[%s195 + $0x8] sm:$0xf]
      %v430 = vld [vmem:[%s195 + $0x14] sm:$0xf]
      %v431 = vld [vmem:[%s195 + $0x20] sm:$0xf]
      %v435 = vunpack.c.l.b16 %v423
      %v436 = vunpack.c.l.b16 %v424
      %v437 = vunpack.c.l.b16 %v425
      %v438 = vpack.c.b16 %v436, %v435
      %v439 = vpack.c.b16 %v437, %v437
      %440 = vrot.lane.b32.xlu0 %v438, 64
      %v441 = vpop.permute.xlu0 %440
      %442 = vrot.lane.b32.xlu0 %v439, 64
      %v443 = vpop.permute.xlu0 %442
      %v447 = vunpack.c.l.b16 %v426
      %v448 = vunpack.c.l.b16 %v427
      %v449 = vunpack.c.l.b16 %v428
      %v450 = vpack.c.b16 %v448, %v447
      %v451 = vpack.c.b16 %v449, %v449
      %452 = vrot.lane.b32.xlu0 %v450, 64
      %v453 = vpop.permute.xlu0 %452
      %454 = vrot.lane.b32.xlu0 %v451, 64
      %v455 = vpop.permute.xlu0 %454
      %v457 = vsel %vm236, %v441, 0
      %v460 = vsel %vm236, %v443, 0
      %v463 = vsel %vm236, %v453, 0
      %v466 = vsel %vm236, %v455, 0
      %468 = vmatprep.subr.bf16.mxu0 0
      %469 = vmatpush1.bf16.xpose.msra.mxu0 %v463
      %470 = vmatprep.subr.bf16.mxu0 0
      %471 = vmatpush1.bf16.xpose.msra.mxu0 %v466
      %472 = vmatprep.subr.bf16.mxu0 0
      %473 = vmatpush1.bf16.xpose.msra.mxu0 0
      %474 = vmatprep.subr.bf16.mxu0 0
      %475 = vmatpush1.bf16.xpose.msra.mxu0 0
      %476 = vmatprep.subr.bf16.mxu0 0
      %477 = vmatpush1.bf16.xpose.msra.mxu0 0
      %478 = vmatprep.subr.bf16.mxu0 0
      %479 = vmatpush1.bf16.xpose.msra.mxu0 0
      %480 = vmatprep.subr.bf16.mxu0 0
      %481 = vmatpush1.bf16.xpose.msra.mxu0 0
      %482 = vmatprep.subr.bf16.mxu0 0
      %483 = vmatpush1.bf16.xpose.msra.mxu0 0
      %484 = vmatprep.subr.bf16.mxu0 0
      %485 = vmatpush1.bf16.xpose.msra.mxu0 0
      %486 = vmatprep.subr.bf16.mxu0 0
      %487 = vmatpush1.bf16.xpose.msra.mxu0 0
      %488 = vmatprep.subr.bf16.mxu0 0
      %489 = vmatpush1.bf16.xpose.msra.mxu0 0
      %490 = vmatprep.subr.bf16.mxu0 0
      %491 = vmatpush1.bf16.xpose.msra.mxu0 0
      %492 = vmatprep.subr.bf16.mxu0 0
      %493 = vmatpush1.bf16.xpose.msra.mxu0 0
      %494 = vmatprep.subr.bf16.mxu0 0
      %495 = vmatpush1.bf16.xpose.msra.mxu0 0
      %496 = vmatprep.subr.bf16.mxu0 0
      %497 = vmatpush1.bf16.xpose.msra.mxu0 0
      %498 = vmatprep.subr.bf16.mxu0 0
      %499 = vmatpush1.bf16.xpose.msra.mxu0 0
      %500 = vmatprep.mubr.bf16.mxu0 0
      %501 = vmatmul.mubr.bf16.gmra.mrb[0].mxu0 %v457
      %v502 = vpop.f32.mrb[0].mxu0
      %v503 = vadd.f32 0.0, %v502
      %v504 = vpop.f32.mrb[0].mxu0
      %v505 = vpop.f32.mrb[0].mxu0
      %v506 = vadd.f32 0.0, %v505
      %v507 = vpop.f32.mrb[0].mxu0
      %508 = vmatprep.mubr.bf16.mxu0 0
      %509 = vmatmul.mubr.bf16.gmra.mrb[0].mxu0 %v460
      %v510 = vpop.f32.mrb[0].mxu0
      %v511 = vadd.f32 0.0, %v510
      %v512 = vpop.f32.mrb[0].mxu0
      %v513 = vpop.f32.mrb[0].mxu0
      %v514 = vpop.f32.mrb[0].mxu0
      %515 = vdwg.mxu0
      %v516 = vmul.f32 %v503, 0.125
      %v517 = vmul.f32 %v506, 0.125
      %v518 = vmul.f32 %v511, 0.125
      %v519 = vadd.f32 %v516, %v210
      %v520 = vadd.f32 %v517, %v210
      %v521 = vadd.f32 %v518, %v210
      %v522 = vsel %vm303, %v519, -inf
      %523 = vmax.xlane.f32.xlu0 %v522
      %v524 = vpop.xlane.xlu0 %523
      %v525 = vsel %vm303, %v520, -inf
      %526 = vmax.xlane.f32.xlu0 %v525
      %v527 = vpop.xlane.xlu0 %526
      %v528 = vsel %vm303, %v521, -inf
      %529 = vmax.xlane.f32.xlu0 %v528
      %v530 = vpop.xlane.xlu0 %529
      %v531 = vsub.f32 %v519, %v524
      %v532 = vsub.f32 %v520, %v527
      %v533 = vsub.f32 %v521, %v530
      %v534 = vmul.f32 %v531, 1.442695
      %v535 = vpow.pop %v534
      %v536 = vmul.f32 %v532, 1.442695
      %v537 = vpow.pop %v536
      %v538 = vmul.f32 %v533, 1.442695
      %v539 = vpow.pop %v538
      %v540 = vsel %vm303, %v535, 0.0
      %541 = vadd.xlane.f32.xlu0 %v540
      %v542 = vpop.xlane.xlu0 %541
      %v543 = vsel %vm303, %v537, 0.0
      %544 = vadd.xlane.f32.xlu0 %v543
      %v545 = vpop.xlane.xlu0 %544
      %v546 = vsel %vm303, %v539, 0.0
      %547 = vadd.xlane.f32.xlu0 %v546
      %v548 = vpop.xlane.xlu0 %547
      %v549 = vrcp.pop %v542
      %v550 = vrcp.pop %v545
      %v551 = vrcp.pop %v548
      %v552 = vmul.f32 %v535, %v549
      %v553 = vmul.f32 %v537, %v550
      %v554 = vmul.f32 %v539, %v551
      %v555 = vpack.c.bf16 %v553, %v552
      %v556 = vpack.c.bf16 %v554, %v554
      %v560 = vunpack.c.l.b16 %v429
      %v561 = vunpack.c.l.b16 %v430
      %v562 = vunpack.c.l.b16 %v431
      %v563 = vpack.c.b16 %v561, %v560
      %v564 = vpack.c.b16 %v562, %v562
      %565 = vrot.lane.b32.xlu0 %v563, 64
      %v566 = vpop.permute.xlu0 %565
      %567 = vrot.lane.b32.xlu0 %v564, 64
      %v568 = vpop.permute.xlu0 %567
      %v571 = vsel %vm303, %v555, 0
      %v574 = vsel %vm303, %v556, 0
      %v577 = vsel %vm354, %v568, 0
      %579 = vmatprep.subr.bf16.mxu0 0
      %580 = vmatpush1.bf16.msra.mxu0 %v566
      %581 = vmatprep.subr.bf16.mxu0 0
      %582 = vmatpush1.bf16.msra.mxu0 %v577
      %583 = vmatprep.subr.bf16.mxu0 0
      %584 = vmatpush1.bf16.msra.mxu0 0
      %585 = vmatprep.subr.bf16.mxu0 0
      %586 = vmatpush1.bf16.msra.mxu0 0
      %587 = vmatprep.subr.bf16.mxu0 0
      %588 = vmatpush1.bf16.msra.mxu0 0
      %589 = vmatprep.subr.bf16.mxu0 0
      %590 = vmatpush1.bf16.msra.mxu0 0
      %591 = vmatprep.subr.bf16.mxu0 0
      %592 = vmatpush1.bf16.msra.mxu0 0
      %593 = vmatprep.subr.bf16.mxu0 0
      %594 = vmatpush1.bf16.msra.mxu0 0
      %595 = vmatprep.subr.bf16.mxu0 0
      %596 = vmatpush1.bf16.msra.mxu0 0
      %597 = vmatprep.subr.bf16.mxu0 0
      %598 = vmatpush1.bf16.msra.mxu0 0
      %599 = vmatprep.subr.bf16.mxu0 0
      %600 = vmatpush1.bf16.msra.mxu0 0
      %601 = vmatprep.subr.bf16.mxu0 0
      %602 = vmatpush1.bf16.msra.mxu0 0
      %603 = vmatprep.subr.bf16.mxu0 0
      %604 = vmatpush1.bf16.msra.mxu0 0
      %605 = vmatprep.subr.bf16.mxu0 0
      %606 = vmatpush1.bf16.msra.mxu0 0
      %607 = vmatprep.subr.bf16.mxu0 0
      %608 = vmatpush1.bf16.msra.mxu0 0
      %609 = vmatprep.subr.bf16.mxu0 0
      %610 = vmatpush1.bf16.msra.mxu0 0
      %611 = vmatprep.mubr.bf16.mxu0 0
      %612 = vmatmul.mubr.bf16.gmra.mrb[0].mxu0 %v571
      %v613 = vpop.f32.mrb[0].mxu0
      %v614 = vadd.f32 0.0, %v613
      %v615 = vpop.f32.mrb[0].mxu0
      %v616 = vpop.f32.mrb[0].mxu0
      %v617 = vadd.f32 0.0, %v616
      %v618 = vpop.f32.mrb[0].mxu0
      %619 = vmatprep.mubr.bf16.mxu0 0
      %620 = vmatmul.mubr.bf16.gmra.mrb[0].mxu0 %v574
      %v621 = vpop.f32.mrb[0].mxu0
      %v622 = vadd.f32 0.0, %v621
      %v623 = vpop.f32.mrb[0].mxu0
      %v624 = vpop.f32.mrb[0].mxu0
      %v625 = vpop.f32.mrb[0].mxu0
      %626 = vdwg.mxu0
      %v627 = vpack.c.bf16 %v617, %v614
      %v628 = vpack.c.bf16 %v622, %v622
      %v631 = vunpack.c.l.b16 %v627
      %v632 = vunpack.c.h.b16 %v627
      %v633 = vunpack.c.l.b16 %v628
      %v634 = vpack.c.b16 %v631, %v631
      %v635 = vpack.c.b16 %v632, %v632
      %v636 = vpack.c.b16 %v633, %v633
      %637 = vrot.lane.b32.xlu0 %v634, 64
      %v638 = vpop.permute.xlu0 %637
      %639 = vrot.lane.b32.xlu0 %v635, 64
      %v640 = vpop.permute.xlu0 %639
      %641 = vrot.lane.b32.xlu0 %v636, 64
      %v642 = vpop.permute.xlu0 %641
      %vm646 = vcmask 1043968
      %647 = vst.msk [vmem:[%s204] sm:$0xf] %vm646, %v638
      %648 = vst.msk [vmem:[%s204 + $0x4] sm:$0xf] %vm646, %v640
      %649 = vst.msk [vmem:[%s204 + $0x8] sm:$0xf] %vm646, %v642
      %s650 = smul.u32 3, %s18
      %p651 = scmp.lt.s32.totalorder %s17, 1
      %s652 = scalar_select %p651, %s17, 1
      %p653 = scmp.lt.s32.totalorder %s650, 2
      %s654 = scalar_select %p653, %s650, 2
      %s655 = smul.addr %s652, 3
      %s656 = sadd.s32 %s654, %s655
      %s657 = smul.addr %s656, 4
      %s658 = scalar_lea.vmem %s2, %s657
      // Predicated region
      $region29: #{_lambda_.14} parent=27 // pred_check
        %p659 = pneg %p99
      $region30: #{_lambda_.14} parent=27 // pred_check_branch
        %661 = sbr.rel (%p659) target = $region32
      $region31: #{_lambda_.14} parent=27 // pred_region
        %s662 = smul.u32 3, %s18
      $region32: #{_lambda_.14} parent=27 // pred_fallthru
        _
    $region28: #{_lambda_.14} parent=5 // pred_fallthru
      _
    %p663 = scmp.le.s32.totalorder 2, %s8
    // Predicated region
    $region33: #{_lambda_.14} parent=5 // pred_check
      %p664 = pneg %p663
    $region34: #{_lambda_.14} parent=5 // pred_check_branch
      %666 = sbr.rel (%p664) target = $region36
    $region35: #{_lambda_.14} parent=5 // pred_region
      %s667 = ssub.s32 %s8, 2
      // Predicated region
      $region37: #{_lambda_.14} parent=35 // pred_check
        %p668 = pneg %p105
      $region38: #{_lambda_.14} parent=35 // pred_check_branch
        %670 = sbr.rel (%p668) target = $region40
      $region39: #{_lambda_.14} parent=35 // pred_region
        %s671 = smul.u32 3, %s20
        %p672 = scmp.lt.s32.totalorder %s19, 1
        %s673 = scalar_select %p672, %s19, 1
        %p674 = scmp.lt.s32.totalorder %s671, 2
        %s675 = scalar_select %p674, %s671, 2
        %s676 = smul.addr %s673, 3
        %s677 = sadd.s32 %s675, %s676
        %s678 = smul.addr %s677, 4
        %s679 = scalar_lea.vmem %s2, %s678
      $region40: #{_lambda_.14} parent=35 // pred_fallthru
        _
    $region36: #{_lambda_.14} parent=5 // pred_fallthru
      _
  $region6: #{_lambda_.14} parent=0 // loop_footer
    %s12 = sadd.s32 1, %s8
  $region7: #{_lambda_.14} parent=0 // loop_footer_branch
    %7 = sbr.rel target = $region3
  $region8: #{_lambda_.14} parent=0 // loop_exit
    _

// kernel: _lambda_.15
$region0: #{_lambda_.15}
  #allocation0 [shape = 'u32[]', space=smem, size = 0x4, offset = 0x4, fixed_abs, tag = 'smem constant byte address 0x4 - core index']
  #allocation1 [shape = 'u32[144,128]{1,0:T(1,128)}', space=vmem, size = 0x12000, scoped, tag = 'internal scratch']
  %s0 = inlined_call_operand.vmem [shape: bf16[48,128], index: 0, kind: input, shape index: {}]
  %s1 = inlined_call_operand.vmem [shape: bf16[128,128], index: 1, kind: input, shape index: {}]
  %s2 = inlined_call_operand.vmem [shape: f32[1,128], index: 2, kind: input, shape index: {}]
  %s3 = inlined_call_operand.vmem [shape: bf16[48,128], index: 3, kind: input, shape index: {}]
  %s4 = inlined_call_operand.vmem [shape: bf16[48,128], index: 4, kind: output, shape index: {}]
  %s5 = sld [smem:[#allocation0]]
  $region26: #{_lambda_.15} parent=0
    _
  %s7 = ssub.s32 1, %s5
  %s8 = scalar_select 0, %s7, %s5
  // Predicated region
  $region2: #{_lambda_.15} parent=0 // pred_check
    _
  $region3: #{_lambda_.15} parent=0 // pred_check_branch
    %10 = sbr.rel (0) target = $region5
  $region4: #{_lambda_.15} parent=0 // pred_region
    _
  $region5: #{_lambda_.15} parent=0 // pred_fallthru
    _
  // Predicated region
  $region6: #{_lambda_.15} parent=0 // pred_check
    _
  $region7: #{_lambda_.15} parent=0 // pred_check_branch
    %12 = sbr.rel (0) target = $region9
  $region8: #{_lambda_.15} parent=0 // pred_region
    _
  $region9: #{_lambda_.15} parent=0 // pred_fallthru
    _
  // Predicated region
  $region10: #{_lambda_.15} parent=0 // pred_check
    _
  $region11: #{_lambda_.15} parent=0 // pred_check_branch
    %14 = sbr.rel (0) target = $region13
  $region12: #{_lambda_.15} parent=0 // pred_region
    _
  $region13: #{_lambda_.15} parent=0 // pred_fallthru
    _
  // Predicated region
  $region14: #{_lambda_.15} parent=0 // pred_check
    _
  $region15: #{_lambda_.15} parent=0 // pred_check_branch
    %16 = sbr.rel (0) target = $region17
  $region16: #{_lambda_.15} parent=0 // pred_region
    _
  $region17: #{_lambda_.15} parent=0 // pred_fallthru
    _
  %v18 = vld [vmem:[%s0] sm:$0xf]
  %v19 = vld [vmem:[%s0 + $0x4] sm:$0xf]
  %v20 = vld [vmem:[%s0 + $0x8] sm:$0xf]
  %v21 = vld [vmem:[%s0 + $0xc] sm:$0xf]
  %v22 = vld [vmem:[%s0 + $0x10] sm:$0xf]
  %v23 = vld [vmem:[%s0 + $0x14] sm:$0xf]
  %v24 = vld [vmem:[%s1] sm:$0xf]
  %v25 = vld [vmem:[%s1 + $0x4] sm:$0xf]
  %v26 = vld [vmem:[%s1 + $0x8] sm:$0xf]
  %v27 = vld [vmem:[%s1 + $0xc] sm:$0xf]
  %v28 = vld [vmem:[%s1 + $0x10] sm:$0xf]
  %v29 = vld [vmem:[%s1 + $0x14] sm:$0xf]
  %v30 = vld [vmem:[%s1 + $0x18] sm:$0xf]
  %v31 = vld [vmem:[%s1 + $0x1c] sm:$0xf]
  %v32 = vld [vmem:[%s1 + $0x20] sm:$0xf]
  %v33 = vld [vmem:[%s1 + $0x24] sm:$0xf]
  %v34 = vld [vmem:[%s1 + $0x28] sm:$0xf]
  %v35 = vld [vmem:[%s1 + $0x2c] sm:$0xf]
  %v36 = vld [vmem:[%s1 + $0x30] sm:$0xf]
  %v37 = vld [vmem:[%s1 + $0x34] sm:$0xf]
  %v38 = vld [vmem:[%s1 + $0x38] sm:$0xf]
  %v39 = vld [vmem:[%s1 + $0x3c] sm:$0xf]
  %v40 = vld [vmem:[%s2] sm:$0x1]
  %v42 = vlaneseq
  %v43 = vshrl.u32 %v42, 7
  %v44 = vsub.s32 0, %v43
  %v45 = vrot.slane %v40, %v44
  %v53 = vunpack.c.l.b16 %v18
  %v54 = vunpack.c.l.b16 %v19
  %v55 = vunpack.c.l.b16 %v20
  %v56 = vunpack.c.l.b16 %v21
  %v57 = vunpack.c.l.b16 %v22
  %v58 = vunpack.c.l.b16 %v23
  %v59 = vpack.c.b16 %v54, %v53
  %v60 = vpack.c.b16 %v56, %v55
  %v61 = vpack.c.b16 %v58, %v57
  %v81 = vunpack.c.l.b16 %v24
  %v82 = vunpack.c.l.b16 %v25
  %v83 = vunpack.c.l.b16 %v26
  %v84 = vunpack.c.l.b16 %v27
  %v85 = vunpack.c.l.b16 %v28
  %v86 = vunpack.c.l.b16 %v29
  %v87 = vunpack.c.l.b16 %v30
  %v88 = vunpack.c.l.b16 %v31
  %v89 = vunpack.c.l.b16 %v32
  %v90 = vunpack.c.l.b16 %v33
  %v91 = vunpack.c.l.b16 %v34
  %v92 = vunpack.c.l.b16 %v35
  %v93 = vunpack.c.l.b16 %v36
  %v94 = vunpack.c.l.b16 %v37
  %v95 = vunpack.c.l.b16 %v38
  %v96 = vunpack.c.l.b16 %v39
  %v97 = vpack.c.b16 %v82, %v81
  %v98 = vpack.c.b16 %v84, %v83
  %v99 = vpack.c.b16 %v86, %v85
  %v100 = vpack.c.b16 %v88, %v87
  %v101 = vpack.c.b16 %v90, %v89
  %v102 = vpack.c.b16 %v92, %v91
  %v103 = vpack.c.b16 %v94, %v93
  %v104 = vpack.c.b16 %v96, %v95
  %113 = vmatprep.subr.bf16.mxu0 0
  %114 = vmatpush1.bf16.msra.mxu0 %v97
  %115 = vmatprep.subr.bf16.mxu0 0
  %116 = vmatpush1.bf16.msra.mxu0 %v98
  %117 = vmatprep.subr.bf16.mxu0 0
  %118 = vmatpush1.bf16.msra.mxu0 %v99
  %119 = vmatprep.subr.bf16.mxu0 0
  %120 = vmatpush1.bf16.msra.mxu0 %v100
  %121 = vmatprep.subr.bf16.mxu0 0
  %122 = vmatpush1.bf16.msra.mxu0 %v101
  %123 = vmatprep.subr.bf16.mxu0 0
  %124 = vmatpush1.bf16.msra.mxu0 %v102
  %125 = vmatprep.subr.bf16.mxu0 0
  %126 = vmatpush1.bf16.msra.mxu0 %v103
  %127 = vmatprep.subr.bf16.mxu0 0
  %128 = vmatpush1.bf16.msra.mxu0 %v104
  %129 = vmatprep.subr.bf16.mxu0 0
  %130 = vmatpush1.bf16.msra.mxu0 0
  %131 = vmatprep.subr.bf16.mxu0 0
  %132 = vmatpush1.bf16.msra.mxu0 0
  %133 = vmatprep.subr.bf16.mxu0 0
  %134 = vmatpush1.bf16.msra.mxu0 0
  %135 = vmatprep.subr.bf16.mxu0 0
  %136 = vmatpush1.bf16.msra.mxu0 0
  %137 = vmatprep.subr.bf16.mxu0 0
  %138 = vmatpush1.bf16.msra.mxu0 0
  %139 = vmatprep.subr.bf16.mxu0 0
  %140 = vmatpush1.bf16.msra.mxu0 0
  %141 = vmatprep.subr.bf16.mxu0 0
  %142 = vmatpush1.bf16.msra.mxu0 0
  %143 = vmatprep.subr.bf16.mxu0 0
  %144 = vmatpush1.bf16.msra.mxu0 0
  %145 = vmatprep.mubr.bf16.mxu0 0
  %146 = vmatmul.mubr.bf16.gmra.mrb[0].mxu0 %v59
  %v147 = vpop.f32.mrb[0].mxu0
  %v148 = vadd.f32 %v45, %v147
  %v149 = vpop.f32.mrb[0].mxu0
  %v150 = vpop.f32.mrb[0].mxu0
  %v151 = vadd.f32 %v45, %v150
  %v152 = vpop.f32.mrb[0].mxu0
  %153 = vmatprep.mubr.bf16.mxu0 0
  %154 = vmatmul.mubr.bf16.gmra.mrb[0].mxu0 %v60
  %v155 = vpop.f32.mrb[0].mxu0
  %v156 = vadd.f32 %v45, %v155
  %v157 = vpop.f32.mrb[0].mxu0
  %v158 = vpop.f32.mrb[0].mxu0
  %v159 = vadd.f32 %v45, %v158
  %v160 = vpop.f32.mrb[0].mxu0
  %161 = vmatprep.mubr.bf16.mxu0 0
  %162 = vmatmul.mubr.bf16.gmra.mrb[0].mxu0 %v61
  %v163 = vpop.f32.mrb[0].mxu0
  %v164 = vadd.f32 %v45, %v163
  %v165 = vpop.f32.mrb[0].mxu0
  %v166 = vpop.f32.mrb[0].mxu0
  %v167 = vadd.f32 %v45, %v166
  %v168 = vpop.f32.mrb[0].mxu0
  %169 = vdwg.mxu0
  %v170 = vld [vmem:[%s3] sm:$0xf]
  %v171 = vld [vmem:[%s3 + $0x4] sm:$0xf]
  %v172 = vld [vmem:[%s3 + $0x8] sm:$0xf]
  %v173 = vld [vmem:[%s3 + $0xc] sm:$0xf]
  %v174 = vld [vmem:[%s3 + $0x10] sm:$0xf]
  %v175 = vld [vmem:[%s3 + $0x14] sm:$0xf]
  %v176 = vunpack.c.l.bf16 %v170
  %v177 = vunpack.c.l.bf16 %v171
  %v178 = vunpack.c.l.bf16 %v172
  %v179 = vunpack.c.l.bf16 %v173
  %v180 = vunpack.c.l.bf16 %v174
  %v181 = vunpack.c.l.bf16 %v175
  %v182 = vadd.f32 %v148, %v176
  %v183 = vadd.f32 %v151, %v177
  %v184 = vadd.f32 %v156, %v178
  %v185 = vadd.f32 %v159, %v179
  %v186 = vadd.f32 %v164, %v180
  %v187 = vadd.f32 %v167, %v181
  %v188 = vpack.c.bf16 %v183, %v182
  %v189 = vpack.c.bf16 %v185, %v184
  %v190 = vpack.c.bf16 %v187, %v186
  %v194 = vunpack.c.l.b16 %v188
  %v195 = vunpack.c.h.b16 %v188
  %v196 = vunpack.c.l.b16 %v189
  %v197 = vunpack.c.h.b16 %v189
  %v198 = vunpack.c.l.b16 %v190
  %v199 = vunpack.c.h.b16 %v190
  %v200 = vpack.c.b16 %v194, %v194
  %v201 = vpack.c.b16 %v195, %v195
  %v202 = vpack.c.b16 %v196, %v196
  %v203 = vpack.c.b16 %v197, %v197
  %v204 = vpack.c.b16 %v198, %v198
  %v205 = vpack.c.b16 %v199, %v199
  %212 = vst [vmem:[%s4] sm:$0xf] %v200
  %213 = vst [vmem:[%s4 + $0x4] sm:$0xf] %v201
  %214 = vst [vmem:[%s4 + $0x8] sm:$0xf] %v202
  %215 = vst [vmem:[%s4 + $0xc] sm:$0xf] %v203
  %216 = vst [vmem:[%s4 + $0x10] sm:$0xf] %v204
  %217 = vst [vmem:[%s4 + $0x14] sm:$0xf] %v205
  // Predicated region
  $region18: #{_lambda_.15} parent=0 // pred_check
    _
  $region19: #{_lambda_.15} parent=0 // pred_check_branch
    %219 = sbr.rel (0) target = $region21
  $region20: #{_lambda_.15} parent=0 // pred_region
    _
  $region21: #{_lambda_.15} parent=0 // pred_fallthru
    _
  // Predicated region
  $region22: #{_lambda_.15} parent=0 // pred_check
    _
  $region23: #{_lambda_.15} parent=0 // pred_check_branch
    %221 = sbr.rel (0) target = $region25
  $region24: #{_lambda_.15} parent=0 // pred_region
    _
  $region25: #{_lambda_.15} parent=0 // pred_fallthru
    _

// kernel: _lambda_.23
$region0: #{_lambda_.23}
  #allocation0 [shape = 'u32[]', space=smem, size = 0x4, offset = 0x4, fixed_abs, tag = 'smem constant byte address 0x4 - core index']
  #allocation1 [shape = 'u32[144,128]{1,0:T(1,128)}', space=vmem, size = 0x12000, scoped, tag = 'internal scratch']
  %s0 = inlined_call_operand.vmem [shape: bf16[2,128], index: 0, kind: input, shape index: {}]
  %s1 = inlined_call_operand.vmem [shape: f32[1,128], index: 1, kind: input, shape index: {}]
  %s2 = inlined_call_operand.vmem [shape: f32[1,128], index: 2, kind: input, shape index: {}]
  %s3 = inlined_call_operand.hbm [shape: f32[2,128], index: 3, kind: output, shape index: {}]
  %s4 = sld [smem:[#allocation0]]
  $region22: #{_lambda_.23} parent=0
    _
  %s6 = ssub.s32 1, %s4
  %s7 = scalar_select 0, %s6, %s4
  $region1: #{_lambda_.23} parent=0
    #allocation2 [shape = 'u8[1024]{0}', space=vmem, size = 0x400, scoped, tag = 'output window, operand 0, single buffered']
    #allocation3 [shape = 's32[1]{0}', space=sflag, size = 0x4, scoped, tag = 'scoped memory for _lambda_.23']
    %8 = vsyncpa [#allocation3], 0
    // Predicated region
    $region2: #{_lambda_.23} parent=1 // pred_check
      _
    $region3: #{_lambda_.23} parent=1 // pred_check_branch
      %10 = sbr.rel (0) target = $region5
    $region4: #{_lambda_.23} parent=1 // pred_region
      _
    $region5: #{_lambda_.23} parent=1 // pred_fallthru
      _
    // Predicated region
    $region6: #{_lambda_.23} parent=1 // pred_check
      _
    $region7: #{_lambda_.23} parent=1 // pred_check_branch
      %12 = sbr.rel (0) target = $region9
    $region8: #{_lambda_.23} parent=1 // pred_region
      _
    $region9: #{_lambda_.23} parent=1 // pred_fallthru
      _
    // Predicated region
    $region10: #{_lambda_.23} parent=1 // pred_check
      _
    $region11: #{_lambda_.23} parent=1 // pred_check_branch
      %14 = sbr.rel (0) target = $region13
    $region12: #{_lambda_.23} parent=1 // pred_region
      _
    $region13: #{_lambda_.23} parent=1 // pred_fallthru
      _
    %v15 = vld [vmem:[%s0] sm:$0x1]
    %v16 = vunpack.c.l.bf16 %v15
    %vm17 = vcmask 1041408
    %v18 = vsel %vm17, %v16, 0.0
    %19 = vadd.xlane.f32.xlu0 %v18
    %v20 = vpop.xlane.xlu0 %19
    %v21 = vrcp.pop 128.0
    %v22 = vmul.f32 %v20, %v21
    %v23 = vsub.f32 %v16, %v22
    %v24 = vmul.f32 %v23, %v23
    %v25 = vsel %vm17, %v24, 0.0
    %26 = vadd.xlane.f32.xlu0 %v25
    %v27 = vpop.xlane.xlu0 %26
    %v28 = vmul.f32 %v27, %v21
    %v29 = vadd.f32 %v28, 1e-06
    %v30 = vrsqrt.pop %v29
    %v31 = vmul.f32 %v23, %v30
    %v32 = vld [vmem:[%s1] sm:$0x1]
    %v34 = vlaneseq
    %v35 = vshrl.u32 %v34, 7
    %v36 = vsub.s32 0, %v35
    %v37 = vrot.slane %v32, %v36
    %v39 = vmul.f32 %v31, %v37
    %v40 = vld [vmem:[%s2] sm:$0x1]
    %v42 = vlaneseq
    %v43 = vshrl.u32 %v42, 7
    %v44 = vsub.s32 0, %v43
    %v45 = vrot.slane %v40, %v44
    %v47 = vadd.f32 %v39, %v45
    %48 = vst [vmem:[#allocation2] sm:$0x3] %v47
    // Predicated region
    $region14: #{_lambda_.23} parent=1 // pred_check
      _
    $region15: #{_lambda_.23} parent=1 // pred_check_branch
      %50 = sbr.rel (0) target = $region17
    $region16: #{_lambda_.23} parent=1 // pred_region
      %s52 = ssub.s32 32, 32
      %53 = vsyncadd [#allocation3], %s52
      %s55 = sshll.u32 [#allocation2], 4
      %s56 = int_to_ptr.vmem [resolvable:$true] %s55
      %58 = dma.vmem_to_hbm [thread:$0]  %s56, 32, %s3, [#allocation3]
    $region17: #{_lambda_.23} parent=1 // pred_fallthru
      _
    // Predicated region
    $region18: #{_lambda_.23} parent=1 // pred_check
      _
    $region19: #{_lambda_.23} parent=1 // pred_check_branch
      %60 = sbr.rel (0) target = $region21
    $region20: #{_lambda_.23} parent=1 // pred_region
      %61 = dma.done [#allocation3], 32
    $region21: #{_lambda_.23} parent=1 // pred_fallthru
      _
    %62 = vsyncpa [#allocation3], 1

// kernel: _lambda_.16
$region0: #{_lambda_.16}
  #allocation0 [shape = 'u32[]', space=smem, size = 0x4, offset = 0x4, fixed_abs, tag = 'smem constant byte address 0x4 - core index']
  #allocation1 [shape = 'u32[144,128]{1,0:T(1,128)}', space=vmem, size = 0x12000, scoped, tag = 'internal scratch']
  %s0 = inlined_call_operand.vmem [shape: bf16[48,128], index: 0, kind: input, shape index: {}]
  %s1 = inlined_call_operand.vmem [shape: f32[1,128], index: 1, kind: input, shape index: {}]
  %s2 = inlined_call_operand.vmem [shape: f32[1,128], index: 2, kind: input, shape index: {}]
  %s3 = inlined_call_operand.vmem [shape: bf16[128,512], index: 3, kind: input, shape index: {}]
  %s4 = inlined_call_operand.vmem [shape: f32[1,512], index: 4, kind: input, shape index: {}]
  %s5 = inlined_call_operand.vmem [shape: bf16[48,512], index: 5, kind: output, shape index: {}]
  %s6 = sld [smem:[#allocation0]]
  $region30: #{_lambda_.16} parent=0
    _
  %s8 = ssub.s32 1, %s6
  %s9 = scalar_select 0, %s8, %s6
  // Predicated region
  $region2: #{_lambda_.16} parent=0 // pred_check
    _
  $region3: #{_lambda_.16} parent=0 // pred_check_branch
    %11 = sbr.rel (0) target = $region5
  $region4: #{_lambda_.16} parent=0 // pred_region
    _
  $region5: #{_lambda_.16} parent=0 // pred_fallthru
    _
  // Predicated region
  $region6: #{_lambda_.16} parent=0 // pred_check
    _
  $region7: #{_lambda_.16} parent=0 // pred_check_branch
    %13 = sbr.rel (0) target = $region9
  $region8: #{_lambda_.16} parent=0 // pred_region
    _
  $region9: #{_lambda_.16} parent=0 // pred_fallthru
    _
  // Predicated region
  $region10: #{_lambda_.16} parent=0 // pred_check
    _
  $region11: #{_lambda_.16} parent=0 // pred_check_branch
    %15 = sbr.rel (0) target = $region13
  $region12: #{_lambda_.16} parent=0 // pred_region
    _
  $region13: #{_lambda_.16} parent=0 // pred_fallthru
    _
  // Predicated region
  $region14: #{_lambda_.16} parent=0 // pred_check
    _
  $region15: #{_lambda_.16} parent=0 // pred_check_branch
    %17 = sbr.rel (0) target = $region17
  $region16: #{_lambda_.16} parent=0 // pred_region
    _
  $region17: #{_lambda_.16} parent=0 // pred_fallthru
    _
  // Predicated region
  $region18: #{_lambda_.16} parent=0 // pred_check
    _
  $region19: #{_lambda_.16} parent=0 // pred_check_branch
    %19 = sbr.rel (0) target = $region21
  $region20: #{_lambda_.16} parent=0 // pred_region
    _
  $region21: #{_lambda_.16} parent=0 // pred_fallthru
    _
  %v21 = vld [vmem:[%s0] sm:$0xf]
  %v22 = vld [vmem:[%s0 + $0x4] sm:$0xf]
  %v23 = vld [vmem:[%s0 + $0x8] sm:$0xf]
  %v24 = vld [vmem:[%s0 + $0xc] sm:$0xf]
  %v25 = vld [vmem:[%s0 + $0x10] sm:$0xf]
  %v26 = vld [vmem:[%s0 + $0x14] sm:$0xf]
  %v27 = vunpack.c.l.bf16 %v21
  %v28 = vunpack.c.l.bf16 %v22
  %v29 = vunpack.c.l.bf16 %v23
  %v30 = vunpack.c.l.bf16 %v24
  %v31 = vunpack.c.l.bf16 %v25
  %v32 = vunpack.c.l.bf16 %v26
  %33 = vadd.xlane.f32.xlu0 %v27
  %v34 = vpop.xlane.xlu0 %33
  %35 = vadd.xlane.f32.xlu0 %v28
  %v36 = vpop.xlane.xlu0 %35
  %37 = vadd.xlane.f32.xlu0 %v29
  %v38 = vpop.xlane.xlu0 %37
  %39 = vadd.xlane.f32.xlu0 %v30
  %v40 = vpop.xlane.xlu0 %39
  %41 = vadd.xlane.f32.xlu0 %v31
  %v42 = vpop.xlane.xlu0 %41
  %43 = vadd.xlane.f32.xlu0 %v32
  %v44 = vpop.xlane.xlu0 %43
  %v45 = vrcp.pop 128.0
  %v46 = vmul.f32 %v34, %v45
  %v47 = vmul.f32 %v36, %v45
  %v48 = vmul.f32 %v38, %v45
  %v49 = vmul.f32 %v40, %v45
  %v50 = vmul.f32 %v42, %v45
  %v51 = vmul.f32 %v44, %v45
  %v52 = vsub.f32 %v27, %v46
  %v53 = vsub.f32 %v28, %v47
  %v54 = vsub.f32 %v29, %v48
  %v55 = vsub.f32 %v30, %v49
  %v56 = vsub.f32 %v31, %v50
  %v57 = vsub.f32 %v32, %v51
  %v58 = vmul.f32 %v52, %v52
  %v59 = vmul.f32 %v53, %v53
  %v60 = vmul.f32 %v54, %v54
  %v61 = vmul.f32 %v55, %v55
  %v62 = vmul.f32 %v56, %v56
  %v63 = vmul.f32 %v57, %v57
  %64 = vadd.xlane.f32.xlu0 %v58
  %v65 = vpop.xlane.xlu0 %64
  %66 = vadd.xlane.f32.xlu0 %v59
  %v67 = vpop.xlane.xlu0 %66
  %68 = vadd.xlane.f32.xlu0 %v60
  %v69 = vpop.xlane.xlu0 %68
  %70 = vadd.xlane.f32.xlu0 %v61
  %v71 = vpop.xlane.xlu0 %70
  %72 = vadd.xlane.f32.xlu0 %v62
  %v73 = vpop.xlane.xlu0 %72
  %74 = vadd.xlane.f32.xlu0 %v63
  %v75 = vpop.xlane.xlu0 %74
  %v76 = vmul.f32 %v65, %v45
  %v77 = vmul.f32 %v67, %v45
  %v78 = vmul.f32 %v69, %v45
  %v79 = vmul.f32 %v71, %v45
  %v80 = vmul.f32 %v73, %v45
  %v81 = vmul.f32 %v75, %v45
  %v82 = vadd.f32 %v76, 1e-06
  %v83 = vadd.f32 %v77, 1e-06
  %v84 = vadd.f32 %v78, 1e-06
  %v85 = vadd.f32 %v79, 1e-06
  %v86 = vadd.f32 %v80, 1e-06
  %v87 = vadd.f32 %v81, 1e-06
  %v88 = vrsqrt.pop %v82
  %v89 = vrsqrt.pop %v83
  %v90 = vrsqrt.pop %v84
  %v91 = vrsqrt.pop %v85
  %v92 = vrsqrt.pop %v86
  %v93 = vrsqrt.pop %v87
  %v94 = vmul.f32 %v52, %v88
  %v95 = vmul.f32 %v53, %v89
  %v96 = vmul.f32 %v54, %v90
  %v97 = vmul.f32 %v55, %v91
  %v98 = vmul.f32 %v56, %v92
  %v99 = vmul.f32 %v57, %v93
  %v100 = vld [vmem:[%s1] sm:$0x1]
  %v102 = vlaneseq
  %v103 = vshrl.u32 %v102, 7
  %v104 = vsub.s32 0, %v103
  %v105 = vrot.slane %v100, %v104
  %v107 = vmul.f32 %v94, %v105
  %v108 = vmul.f32 %v95, %v105
  %v109 = vmul.f32 %v96, %v105
  %v110 = vmul.f32 %v97, %v105
  %v111 = vmul.f32 %v98, %v105
  %v112 = vmul.f32 %v99, %v105
  %v113 = vld [vmem:[%s2] sm:$0x1]
  %v115 = vlaneseq
  %v116 = vshrl.u32 %v115, 7
  %v117 = vsub.s32 0, %v116
  %v118 = vrot.slane %v113, %v117
  %v120 = vadd.f32 %v107, %v118
  %v121 = vadd.f32 %v108, %v118
  %v122 = vadd.f32 %v109, %v118
  %v123 = vadd.f32 %v110, %v118
  %v124 = vadd.f32 %v111, %v118
  %v125 = vadd.f32 %v112, %v118
  %v126 = vpack.c.bf16 %v121, %v120
  %v127 = vpack.c.bf16 %v123, %v122
  %v128 = vpack.c.bf16 %v125, %v124
  %v129 = vld [vmem:[%s3] sm:$0xff]
  %v130 = vld [vmem:[%s3 + $0x8] sm:$0xff]
  %v131 = vld [vmem:[%s3 + $0x10] sm:$0xff]
  %v132 = vld [vmem:[%s3 + $0x18] sm:$0xff]
  %v133 = vld [vmem:[%s3 + $0x20] sm:$0xff]
  %v134 = vld [vmem:[%s3 + $0x28] sm:$0xff]
  %v135 = vld [vmem:[%s3 + $0x30] sm:$0xff]
  %v136 = vld [vmem:[%s3 + $0x38] sm:$0xff]
  %v137 = vld [vmem:[%s3 + $0x40] sm:$0xff]
  %v138 = vld [vmem:[%s3 + $0x48] sm:$0xff]
  %v139 = vld [vmem:[%s3 + $0x50] sm:$0xff]
  %v140 = vld [vmem:[%s3 + $0x58] sm:$0xff]
  %v141 = vld [vmem:[%s3 + $0x60] sm:$0xff]
  %v142 = vld [vmem:[%s3 + $0x68] sm:$0xff]
  %v143 = vld [vmem:[%s3 + $0x70] sm:$0xff]
  %v144 = vld [vmem:[%s3 + $0x78] sm:$0xff]
  %v145 = vld [vmem:[%s3 + $0x80] sm:$0xff]
  %v146 = vld [vmem:[%s3 + $0x88] sm:$0xff]
  %v147 = vld [vmem:[%s3 + $0x90] sm:$0xff]
  %v148 = vld [vmem:[%s3 + $0x98] sm:$0xff]
  %v149 = vld [vmem:[%s3 + $0xa0] sm:$0xff]
  %v150 = vld [vmem:[%s3 + $0xa8] sm:$0xff]
  %v151 = vld [vmem:[%s3 + $0xb0] sm:$0xff]
  %v152 = vld [vmem:[%s3 + $0xb8] sm:$0xff]
  %v153 = vld [vmem:[%s3 + $0xc0] sm:$0xff]
  %v154 = vld [vmem:[%s3 + $0xc8] sm:$0xff]
  %v155 = vld [vmem:[%s3 + $0xd0] sm:$0xff]
  %v156 = vld [vmem:[%s3 + $0xd8] sm:$0xff]
  %v157 = vld [vmem:[%s3 + $0xe0] sm:$0xff]
  %v158 = vld [vmem:[%s3 + $0xe8] sm:$0xff]
  %v159 = vld [vmem:[%s3 + $0xf0] sm:$0xff]
  %v160 = vld [vmem:[%s3 + $0xf8] sm:$0xff]
  %v161 = vld [vmem:[%s4] sm:$0xf]
  %v163 = vlaneseq
  %v164 = vshrl.u32 %v163, 7
  %v165 = vsub.s32 0, %v164
  %v166 = vrot.slane %v161, %v165
  %v167 = vlaneseq
  %v168 = vshrl.u32 %v167, 7
  %v169 = vsub.s32 1, %v168
  %v170 = vrot.slane %v161, %v169
  %v171 = vlaneseq
  %v172 = vshrl.u32 %v171, 7
  %v173 = vsub.s32 2, %v172
  %v174 = vrot.slane %v161, %v173
  %v175 = vlaneseq
  %v176 = vshrl.u32 %v175, 7
  %v177 = vsub.s32 3, %v176
  %v178 = vrot.slane %v161, %v177
  %v215 = vunpack.c.l.b16 %v129
  %v216 = vunpack.c.h.b16 %v129
  %v217 = vunpack.c.l.b16 %v130
  %v218 = vunpack.c.h.b16 %v130
  %v219 = vunpack.c.l.b16 %v131
  %v220 = vunpack.c.h.b16 %v131
  %v221 = vunpack.c.l.b16 %v132
  %v222 = vunpack.c.h.b16 %v132
  %v223 = vunpack.c.l.b16 %v133
  %v224 = vunpack.c.h.b16 %v133
  %v225 = vunpack.c.l.b16 %v134
  %v226 = vunpack.c.h.b16 %v134
  %v227 = vunpack.c.l.b16 %v135
  %v228 = vunpack.c.h.b16 %v135
  %v229 = vunpack.c.l.b16 %v136
  %v230 = vunpack.c.h.b16 %v136
  %v231 = vunpack.c.l.b16 %v137
  %v232 = vunpack.c.h.b16 %v137
  %v233 = vunpack.c.l.b16 %v138
  %v234 = vunpack.c.h.b16 %v138
  %v235 = vunpack.c.l.b16 %v139
  %v236 = vunpack.c.h.b16 %v139
  %v237 = vunpack.c.l.b16 %v140
  %v238 = vunpack.c.h.b16 %v140
  %v239 = vunpack.c.l.b16 %v141
  %v240 = vunpack.c.h.b16 %v141
  %v241 = vunpack.c.l.b16 %v142
  %v242 = vunpack.c.h.b16 %v142
  %v243 = vunpack.c.l.b16 %v143
  %v244 = vunpack.c.h.b16 %v143
  %v245 = vunpack.c.l.b16 %v144
  %v246 = vunpack.c.h.b16 %v144
  %v247 = vunpack.c.l.b16 %v145
  %v248 = vunpack.c.h.b16 %v145
  %v249 = vunpack.c.l.b16 %v146
  %v250 = vunpack.c.h.b16 %v146
  %v251 = vunpack.c.l.b16 %v147
  %v252 = vunpack.c.h.b16 %v147
  %v253 = vunpack.c.l.b16 %v148
  %v254 = vunpack.c.h.b16 %v148
  %v255 = vunpack.c.l.b16 %v149
  %v256 = vunpack.c.h.b16 %v149
  %v257 = vunpack.c.l.b16 %v150
  %v258 = vunpack.c.h.b16 %v150
  %v259 = vunpack.c.l.b16 %v151
  %v260 = vunpack.c.h.b16 %v151
  %v261 = vunpack.c.l.b16 %v152
  %v262 = vunpack.c.h.b16 %v152
  %v263 = vunpack.c.l.b16 %v153
  %v264 = vunpack.c.h.b16 %v153
  %v265 = vunpack.c.l.b16 %v154
  %v266 = vunpack.c.h.b16 %v154
  %v267 = vunpack.c.l.b16 %v155
  %v268 = vunpack.c.h.b16 %v155
  %v269 = vunpack.c.l.b16 %v156
  %v270 = vunpack.c.h.b16 %v156
  %v271 = vunpack.c.l.b16 %v157
  %v272 = vunpack.c.h.b16 %v157
  %v273 = vunpack.c.l.b16 %v158
  %v274 = vunpack.c.h.b16 %v158
  %v275 = vunpack.c.l.b16 %v159
  %v276 = vunpack.c.h.b16 %v159
  %v277 = vunpack.c.l.b16 %v160
  %v278 = vunpack.c.h.b16 %v160
  %v279 = vpack.c.b16 %v219, %v215
  %v280 = vpack.c.b16 %v220, %v216
  %v281 = vpack.c.b16 %v221, %v217
  %v282 = vpack.c.b16 %v222, %v218
  %v283 = vpack.c.b16 %v227, %v223
  %v284 = vpack.c.b16 %v228, %v224
  %v285 = vpack.c.b16 %v229, %v225
  %v286 = vpack.c.b16 %v230, %v226
  %v287 = vpack.c.b16 %v235, %v231
  %v288 = vpack.c.b16 %v236, %v232
  %v289 = vpack.c.b16 %v237, %v233
  %v290 = vpack.c.b16 %v238, %v234
  %v291 = vpack.c.b16 %v243, %v239
  %v292 = vpack.c.b16 %v244, %v240
  %v293 = vpack.c.b16 %v245, %v241
  %v294 = vpack.c.b16 %v246, %v242
  %v295 = vpack.c.b16 %v251, %v247
  %v296 = vpack.c.b16 %v252, %v248
  %v297 = vpack.c.b16 %v253, %v249
  %v298 = vpack.c.b16 %v254, %v250
  %v299 = vpack.c.b16 %v259, %v255
  %v300 = vpack.c.b16 %v260, %v256
  %v301 = vpack.c.b16 %v261, %v257
  %v302 = vpack.c.b16 %v262, %v258
  %v303 = vpack.c.b16 %v267, %v263
  %v304 = vpack.c.b16 %v268, %v264
  %v305 = vpack.c.b16 %v269, %v265
  %v306 = vpack.c.b16 %v270, %v266
  %v307 = vpack.c.b16 %v275, %v271
  %v308 = vpack.c.b16 %v276, %v272
  %v309 = vpack.c.b16 %v277, %v273
  %v310 = vpack.c.b16 %v278, %v274
  %343 = vmatprep.subr.bf16.mxu0 %v280
  %344 = vmatpush1.bf16.msra.mxu0 %v279
  %345 = vmatprep.subr.bf16.mxu0 %v284
  %346 = vmatpush1.bf16.msra.mxu0 %v283
  %347 = vmatprep.subr.bf16.mxu0 %v288
  %348 = vmatpush1.bf16.msra.mxu0 %v287
  %349 = vmatprep.subr.bf16.mxu0 %v292
  %350 = vmatpush1.bf16.msra.mxu0 %v291
  %351 = vmatprep.subr.bf16.mxu0 %v296
  %352 = vmatpush1.bf16.msra.mxu0 %v295
  %353 = vmatprep.subr.bf16.mxu0 %v300
  %354 = vmatpush1.bf16.msra.mxu0 %v299
  %355 = vmatprep.subr.bf16.mxu0 %v304
  %356 = vmatpush1.bf16.msra.mxu0 %v303
  %357 = vmatprep.subr.bf16.mxu0 %v308
  %358 = vmatpush1.bf16.msra.mxu0 %v307
  %359 = vmatprep.subr.bf16.mxu0 0
  %360 = vmatpush1.bf16.msra.mxu0 0
  %361 = vmatprep.subr.bf16.mxu0 0
  %362 = vmatpush1.bf16.msra.mxu0 0
  %363 = vmatprep.subr.bf16.mxu0 0
  %364 = vmatpush1.bf16.msra.mxu0 0
  %365 = vmatprep.subr.bf16.mxu0 0
  %366 = vmatpush1.bf16.msra.mxu0 0
  %367 = vmatprep.subr.bf16.mxu0 0
  %368 = vmatpush1.bf16.msra.mxu0 0
  %369 = vmatprep.subr.bf16.mxu0 0
  %370 = vmatpush1.bf16.msra.mxu0 0
  %371 = vmatprep.subr.bf16.mxu0 0
  %372 = vmatpush1.bf16.msra.mxu0 0
  %373 = vmatprep.subr.bf16.mxu0 0
  %374 = vmatpush1.bf16.msra.mxu0 0
  %375 = vmatprep.mubr.bf16.mxu0 0
  %376 = vmatmul.mubr.bf16.gmra.mrb[0].mxu0 %v126
  %v377 = vpop.f32.mrb[0].mxu0
  %v378 = vadd.f32 %v166, %v377
  %v379 = vpop.f32.mrb[0].mxu0
  %v380 = vadd.f32 %v170, %v379
  %v381 = vpop.f32.mrb[0].mxu0
  %v382 = vadd.f32 %v166, %v381
  %v383 = vpop.f32.mrb[0].mxu0
  %v384 = vadd.f32 %v170, %v383
  %385 = vmatprep.mubr.bf16.mxu0 0
  %386 = vmatmul.mubr.bf16.gmra.mrb[0].mxu0 %v127
  %v387 = vpop.f32.mrb[0].mxu0
  %v388 = vadd.f32 %v166, %v387
  %v389 = vpop.f32.mrb[0].mxu0
  %v390 = vadd.f32 %v170, %v389
  %v391 = vpop.f32.mrb[0].mxu0
  %v392 = vadd.f32 %v166, %v391
  %v393 = vpop.f32.mrb[0].mxu0
  %v394 = vadd.f32 %v170, %v393
  %395 = vmatprep.mubr.bf16.mxu0 0
  %396 = vmatmul.mubr.bf16.gmra.mrb[0].mxu0 %v128
  %v397 = vpop.f32.mrb[0].mxu0
  %v398 = vadd.f32 %v166, %v397
  %v399 = vpop.f32.mrb[0].mxu0
  %v400 = vadd.f32 %v170, %v399
  %v401 = vpop.f32.mrb[0].mxu0
  %v402 = vadd.f32 %v166, %v401
  %v403 = vpop.f32.mrb[0].mxu0
  %v404 = vadd.f32 %v170, %v403
  %405 = vdwg.mxu0
  %406 = vmatprep.subr.bf16.mxu0 %v282
  %407 = vmatpush1.bf16.msra.mxu0 %v281
  %408 = vmatprep.subr.bf16.mxu0 %v286
  %409 = vmatpush1.bf16.msra.mxu0 %v285
  %410 = vmatprep.subr.bf16.mxu0 %v290
  %411 = vmatpush1.bf16.msra.mxu0 %v289
  %412 = vmatprep.subr.bf16.mxu0 %v294
  %413 = vmatpush1.bf16.msra.mxu0 %v293
  %414 = vmatprep.subr.bf16.mxu0 %v298
  %415 = vmatpush1.bf16.msra.mxu0 %v297
  %416 = vmatprep.subr.bf16.mxu0 %v302
  %417 = vmatpush1.bf16.msra.mxu0 %v301
  %418 = vmatprep.subr.bf16.mxu0 %v306
  %419 = vmatpush1.bf16.msra.mxu0 %v305
  %420 = vmatprep.subr.bf16.mxu0 %v310
  %421 = vmatpush1.bf16.msra.mxu0 %v309
  %422 = vmatprep.subr.bf16.mxu0 0
  %423 = vmatpush1.bf16.msra.mxu0 0
  %424 = vmatprep.subr.bf16.mxu0 0
  %425 = vmatpush1.bf16.msra.mxu0 0
  %426 = vmatprep.subr.bf16.mxu0 0
  %427 = vmatpush1.bf16.msra.mxu0 0
  %428 = vmatprep.subr.bf16.mxu0 0
  %429 = vmatpush1.bf16.msra.mxu0 0
  %430 = vmatprep.subr.bf16.mxu0 0
  %431 = vmatpush1.bf16.msra.mxu0 0
  %432 = vmatprep.subr.bf16.mxu0 0
  %433 = vmatpush1.bf16.msra.mxu0 0
  %434 = vmatprep.subr.bf16.mxu0 0
  %435 = vmatpush1.bf16.msra.mxu0 0
  %436 = vmatprep.subr.bf16.mxu0 0
  %437 = vmatpush1.bf16.msra.mxu0 0
  %438 = vmatprep.mubr.bf16.mxu0 0
  %439 = vmatmul.mubr.bf16.gmra.mrb[0].mxu0 %v126
  %v440 = vpop.f32.mrb[0].mxu0
  %v441 = vadd.f32 %v174, %v440
  %v442 = vpop.f32.mrb[0].mxu0
  %v443 = vadd.f32 %v178, %v442
  %v444 = vpop.f32.mrb[0].mxu0
  %v445 = vadd.f32 %v174, %v444
  %v446 = vpop.f32.mrb[0].mxu0
  %v447 = vadd.f32 %v178, %v446
  %448 = vmatprep.mubr.bf16.mxu0 0
  %449 = vmatmul.mubr.bf16.gmra.mrb[0].mxu0 %v127
  %v450 = vpop.f32.mrb[0].mxu0
  %v451 = vadd.f32 %v174, %v450
  %v452 = vpop.f32.mrb[0].mxu0
  %v453 = vadd.f32 %v178, %v452
  %v454 = vpop.f32.mrb[0].mxu0
  %v455 = vadd.f32 %v174, %v454
  %v456 = vpop.f32.mrb[0].mxu0
  %v457 = vadd.f32 %v178, %v456
  %458 = vmatprep.mubr.bf16.mxu0 0
  %459 = vmatmul.mubr.bf16.gmra.mrb[0].mxu0 %v128
  %v460 = vpop.f32.mrb[0].mxu0
  %v461 = vadd.f32 %v174, %v460
  %v462 = vpop.f32.mrb[0].mxu0
  %v463 = vadd.f32 %v178, %v462
  %v464 = vpop.f32.mrb[0].mxu0
  %v465 = vadd.f32 %v174, %v464
  %v466 = vpop.f32.mrb[0].mxu0
  %v467 = vadd.f32 %v178, %v466
  %468 = vdwg.mxu0
  %v469 = vmul.f32 %v378, %v378
  %v470 = vmul.f32 %v380, %v380
  %v471 = vmul.f32 %v441, %v441
  %v472 = vmul.f32 %v443, %v443
  %v473 = vmul.f32 %v382, %v382
  %v474 = vmul.f32 %v384, %v384
  %v475 = vmul.f32 %v445, %v445
  %v476 = vmul.f32 %v447, %v447
  %v477 = vmul.f32 %v388, %v388
  %v478 = vmul.f32 %v390, %v390
  %v479 = vmul.f32 %v451, %v451
  %v480 = vmul.f32 %v453, %v453
  %v481 = vmul.f32 %v392, %v392
  %v482 = vmul.f32 %v394, %v394
  %v483 = vmul.f32 %v455, %v455
  %v484 = vmul.f32 %v457, %v457
  %v485 = vmul.f32 %v398, %v398
  %v486 = vmul.f32 %v400, %v400
  %v487 = vmul.f32 %v461, %v461
  %v488 = vmul.f32 %v463, %v463
  %v489 = vmul.f32 %v402, %v402
  %v490 = vmul.f32 %v404, %v404
  %v491 = vmul.f32 %v465, %v465
  %v492 = vmul.f32 %v467, %v467
  %v493 = vmul.f32 %v378, %v469
  %v494 = vmul.f32 %v380, %v470
  %v495 = vmul.f32 %v441, %v471
  %v496 = vmul.f32 %v443, %v472
  %v497 = vmul.f32 %v382, %v473
  %v498 = vmul.f32 %v384, %v474
  %v499 = vmul.f32 %v445, %v475
  %v500 = vmul.f32 %v447, %v476
  %v501 = vmul.f32 %v388, %v477
  %v502 = vmul.f32 %v390, %v478
  %v503 = vmul.f32 %v451, %v479
  %v504 = vmul.f32 %v453, %v480
  %v505 = vmul.f32 %v392, %v481
  %v506 = vmul.f32 %v394, %v482
  %v507 = vmul.f32 %v455, %v483
  %v508 = vmul.f32 %v457, %v484
  %v509 = vmul.f32 %v398, %v485
  %v510 = vmul.f32 %v400, %v486
  %v511 = vmul.f32 %v461, %v487
  %v512 = vmul.f32 %v463, %v488
  %v513 = vmul.f32 %v402, %v489
  %v514 = vmul.f32 %v404, %v490
  %v515 = vmul.f32 %v465, %v491
  %v516 = vmul.f32 %v467, %v492
  %v517 = vmul.f32 %v493, 0.044715
  %v518 = vmul.f32 %v494, 0.044715
  %v519 = vmul.f32 %v495, 0.044715
  %v520 = vmul.f32 %v496, 0.044715
  %v521 = vmul.f32 %v497, 0.044715
  %v522 = vmul.f32 %v498, 0.044715
  %v523 = vmul.f32 %v499, 0.044715
  %v524 = vmul.f32 %v500, 0.044715
  %v525 = vmul.f32 %v501, 0.044715
  %v526 = vmul.f32 %v502, 0.044715
  %v527 = vmul.f32 %v503, 0.044715
  %v528 = vmul.f32 %v504, 0.044715
  %v529 = vmul.f32 %v505, 0.044715
  %v530 = vmul.f32 %v506, 0.044715
  %v531 = vmul.f32 %v507, 0.044715
  %v532 = vmul.f32 %v508, 0.044715
  %v533 = vmul.f32 %v509, 0.044715
  %v534 = vmul.f32 %v510, 0.044715
  %v535 = vmul.f32 %v511, 0.044715
  %v536 = vmul.f32 %v512, 0.044715
  %v537 = vmul.f32 %v513, 0.044715
  %v538 = vmul.f32 %v514, 0.044715
  %v539 = vmul.f32 %v515, 0.044715
  %v540 = vmul.f32 %v516, 0.044715
  %v541 = vadd.f32 %v378, %v517
  %v542 = vadd.f32 %v380, %v518
  %v543 = vadd.f32 %v441, %v519
  %v544 = vadd.f32 %v443, %v520
  %v545 = vadd.f32 %v382, %v521
  %v546 = vadd.f32 %v384, %v522
  %v547 = vadd.f32 %v445, %v523
  %v548 = vadd.f32 %v447, %v524
  %v549 = vadd.f32 %v388, %v525
  %v550 = vadd.f32 %v390, %v526
  %v551 = vadd.f32 %v451, %v527
  %v552 = vadd.f32 %v453, %v528
  %v553 = vadd.f32 %v392, %v529
  %v554 = vadd.f32 %v394, %v530
  %v555 = vadd.f32 %v455, %v531
  %v556 = vadd.f32 %v457, %v532
  %v557 = vadd.f32 %v398, %v533
  %v558 = vadd.f32 %v400, %v534
  %v559 = vadd.f32 %v461, %v535
  %v560 = vadd.f32 %v463, %v536
  %v561 = vadd.f32 %v402, %v537
  %v562 = vadd.f32 %v404, %v538
  %v563 = vadd.f32 %v465, %v539
  %v564 = vadd.f32 %v467, %v540
  %v565 = vmul.f32 %v541, 0.7978846
  %v566 = vmul.f32 %v542, 0.7978846
  %v567 = vmul.f32 %v543, 0.7978846
  %v568 = vmul.f32 %v544, 0.7978846
  %v569 = vmul.f32 %v545, 0.7978846
  %v570 = vmul.f32 %v546, 0.7978846
  %v571 = vmul.f32 %v547, 0.7978846
  %v572 = vmul.f32 %v548, 0.7978846
  %v573 = vmul.f32 %v549, 0.7978846
  %v574 = vmul.f32 %v550, 0.7978846
  %v575 = vmul.f32 %v551, 0.7978846
  %v576 = vmul.f32 %v552, 0.7978846
  %v577 = vmul.f32 %v553, 0.7978846
  %v578 = vmul.f32 %v554, 0.7978846
  %v579 = vmul.f32 %v555, 0.7978846
  %v580 = vmul.f32 %v556, 0.7978846
  %v581 = vmul.f32 %v557, 0.7978846
  %v582 = vmul.f32 %v558, 0.7978846
  %v583 = vmul.f32 %v559, 0.7978846
  %v584 = vmul.f32 %v560, 0.7978846
  %v585 = vmul.f32 %v561, 0.7978846
  %v586 = vmul.f32 %v562, 0.7978846
  %v587 = vmul.f32 %v563, 0.7978846
  %v588 = vmul.f32 %v564, 0.7978846
  %v589 = vtanh.pop %v565
  %v590 = vtanh.pop %v566
  %v591 = vtanh.pop %v567
  %v592 = vtanh.pop %v568
  %v593 = vtanh.pop %v569
  %v594 = vtanh.pop %v570
  %v595 = vtanh.pop %v571
  %v596 = vtanh.pop %v572
  %v597 = vtanh.pop %v573
  %v598 = vtanh.pop %v574
  %v599 = vtanh.pop %v575
  %v600 = vtanh.pop %v576
  %v601 = vtanh.pop %v577
  %v602 = vtanh.pop %v578
  %v603 = vtanh.pop %v579
  %v604 = vtanh.pop %v580
  %v605 = vtanh.pop %v581
  %v606 = vtanh.pop %v582
  %v607 = vtanh.pop %v583
  %v608 = vtanh.pop %v584
  %v609 = vtanh.pop %v585
  %v610 = vtanh.pop %v586
  %v611 = vtanh.pop %v587
  %v612 = vtanh.pop %v588
  %v613 = vadd.f32 %v589, 1.0
  %v614 = vadd.f32 %v590, 1.0
  %v615 = vadd.f32 %v591, 1.0
  %v616 = vadd.f32 %v592, 1.0
  %v617 = vadd.f32 %v593, 1.0
  %v618 = vadd.f32 %v594, 1.0
  %v619 = vadd.f32 %v595, 1.0
  %v620 = vadd.f32 %v596, 1.0
  %v621 = vadd.f32 %v597, 1.0
  %v622 = vadd.f32 %v598, 1.0
  %v623 = vadd.f32 %v599, 1.0
  %v624 = vadd.f32 %v600, 1.0
  %v625 = vadd.f32 %v601, 1.0
  %v626 = vadd.f32 %v602, 1.0
  %v627 = vadd.f32 %v603, 1.0
  %v628 = vadd.f32 %v604, 1.0
  %v629 = vadd.f32 %v605, 1.0
  %v630 = vadd.f32 %v606, 1.0
  %v631 = vadd.f32 %v607, 1.0
  %v632 = vadd.f32 %v608, 1.0
  %v633 = vadd.f32 %v609, 1.0
  %v634 = vadd.f32 %v610, 1.0
  %v635 = vadd.f32 %v611, 1.0
  %v636 = vadd.f32 %v612, 1.0
  %v637 = vmul.f32 %v613, 0.5
  %v638 = vmul.f32 %v614, 0.5
  %v639 = vmul.f32 %v615, 0.5
  %v640 = vmul.f32 %v616, 0.5
  %v641 = vmul.f32 %v617, 0.5
  %v642 = vmul.f32 %v618, 0.5
  %v643 = vmul.f32 %v619, 0.5
  %v644 = vmul.f32 %v620, 0.5
  %v645 = vmul.f32 %v621, 0.5
  %v646 = vmul.f32 %v622, 0.5
  %v647 = vmul.f32 %v623, 0.5
  %v648 = vmul.f32 %v624, 0.5
  %v649 = vmul.f32 %v625, 0.5
  %v650 = vmul.f32 %v626, 0.5
  %v651 = vmul.f32 %v627, 0.5
  %v652 = vmul.f32 %v628, 0.5
  %v653 = vmul.f32 %v629, 0.5
  %v654 = vmul.f32 %v630, 0.5
  %v655 = vmul.f32 %v631, 0.5
  %v656 = vmul.f32 %v632, 0.5
  %v657 = vmul.f32 %v633, 0.5
  %v658 = vmul.f32 %v634, 0.5
  %v659 = vmul.f32 %v635, 0.5
  %v660 = vmul.f32 %v636, 0.5
  %v661 = vmul.f32 %v378, %v637
  %v662 = vmul.f32 %v380, %v638
  %v663 = vmul.f32 %v441, %v639
  %v664 = vmul.f32 %v443, %v640
  %v665 = vmul.f32 %v382, %v641
  %v666 = vmul.f32 %v384, %v642
  %v667 = vmul.f32 %v445, %v643
  %v668 = vmul.f32 %v447, %v644
  %v669 = vmul.f32 %v388, %v645
  %v670 = vmul.f32 %v390, %v646
  %v671 = vmul.f32 %v451, %v647
  %v672 = vmul.f32 %v453, %v648
  %v673 = vmul.f32 %v392, %v649
  %v674 = vmul.f32 %v394, %v650
  %v675 = vmul.f32 %v455, %v651
  %v676 = vmul.f32 %v457, %v652
  %v677 = vmul.f32 %v398, %v653
  %v678 = vmul.f32 %v400, %v654
  %v679 = vmul.f32 %v461, %v655
  %v680 = vmul.f32 %v463, %v656
  %v681 = vmul.f32 %v402, %v657
  %v682 = vmul.f32 %v404, %v658
  %v683 = vmul.f32 %v465, %v659
  %v684 = vmul.f32 %v467, %v660
  %v685 = vpack.c.bf16 %v665, %v661
  %v686 = vpack.c.bf16 %v666, %v662
  %v687 = vpack.c.bf16 %v667, %v663
  %v688 = vpack.c.bf16 %v668, %v664
  %v689 = vpack.c.bf16 %v673, %v669
  %v690 = vpack.c.bf16 %v674, %v670
  %v691 = vpack.c.bf16 %v675, %v671
  %v692 = vpack.c.bf16 %v676, %v672
  %v693 = vpack.c.bf16 %v681, %v677
  %v694 = vpack.c.bf16 %v682, %v678
  %v695 = vpack.c.bf16 %v683, %v679
  %v696 = vpack.c.bf16 %v684, %v680
  %v709 = vunpack.c.l.b16 %v685
  %v710 = vunpack.c.l.b16 %v686
  %v711 = vunpack.c.l.b16 %v687
  %v712 = vunpack.c.l.b16 %v688
  %v713 = vunpack.c.h.b16 %v685
  %v714 = vunpack.c.h.b16 %v686
  %v715 = vunpack.c.h.b16 %v687
  %v716 = vunpack.c.h.b16 %v688
  %v717 = vunpack.c.l.b16 %v689
  %v718 = vunpack.c.l.b16 %v690
  %v719 = vunpack.c.l.b16 %v691
  %v720 = vunpack.c.l.b16 %v692
  %v721 = vunpack.c.h.b16 %v689
  %v722 = vunpack.c.h.b16 %v690
  %v723 = vunpack.c.h.b16 %v691
  %v724 = vunpack.c.h.b16 %v692
  %v725 = vunpack.c.l.b16 %v693
  %v726 = vunpack.c.l.b16 %v694
  %v727 = vunpack.c.l.b16 %v695
  %v728 = vunpack.c.l.b16 %v696
  %v729 = vunpack.c.h.b16 %v693
  %v730 = vunpack.c.h.b16 %v694
  %v731 = vunpack.c.h.b16 %v695
  %v732 = vunpack.c.h.b16 %v696
  %v733 = vpack.c.b16 %v710, %v709
  %v734 = vpack.c.b16 %v712, %v711
  %v735 = vpack.c.b16 %v714, %v713
  %v736 = vpack.c.b16 %v716, %v715
  %v737 = vpack.c.b16 %v718, %v717
  %v738 = vpack.c.b16 %v720, %v719
  %v739 = vpack.c.b16 %v722, %v721
  %v740 = vpack.c.b16 %v724, %v723
  %v741 = vpack.c.b16 %v726, %v725
  %v742 = vpack.c.b16 %v728, %v727
  %v743 = vpack.c.b16 %v730, %v729
  %v744 = vpack.c.b16 %v732, %v731
  %757 = vst [vmem:[%s5] sm:$0xff] %v733
  %758 = vst [vmem:[%s5 + $0x8] sm:$0xff] %v734
  %759 = vst [vmem:[%s5 + $0x10] sm:$0xff] %v735
  %760 = vst [vmem:[%s5 + $0x18] sm:$0xff] %v736
  %761 = vst [vmem:[%s5 + $0x20] sm:$0xff] %v737
  %762 = vst [vmem:[%s5 + $0x28] sm:$0xff] %v738
  %763 = vst [vmem:[%s5 + $0x30] sm:$0xff] %v739
  %764 = vst [vmem:[%s5 + $0x38] sm:$0xff] %v740
  %765 = vst [vmem:[%s5 + $0x40] sm:$0xff] %v741
  %766 = vst [vmem:[%s5 + $0x48] sm:$0xff] %v742
  %767 = vst [vmem:[%s5 + $0x50] sm:$0xff] %v743
  %768 = vst [vmem:[%s5 + $0x58] sm:$0xff] %v744
  // Predicated region
  $region22: #{_lambda_.16} parent=0 // pred_check
    _
  $region23: #{_lambda_.16} parent=0 // pred_check_branch
    %770 = sbr.rel (0) target = $region25
  $region24: #{_lambda_.16} parent=0 // pred_region
    _
  $region25: #{_lambda_.16} parent=0 // pred_fallthru
    _
  // Predicated region
  $region26: #{_lambda_.16} parent=0 // pred_check
    _
  $region27: #{_lambda_.16} parent=0 // pred_check_branch
    %772 = sbr.rel (0) target = $region29
  $region28: #{_lambda_.16} parent=0 // pred_region
    _
  $region29: #{_lambda_.16} parent=0 // pred_fallthru
    _

// kernel: _lambda_.17
$region0: #{_lambda_.17}
  #allocation0 [shape = 'u32[]', space=smem, size = 0x4, offset = 0x4, fixed_abs, tag = 'smem constant byte address 0x4 - core index']
  #allocation1 [shape = 'u32[144,128]{1,0:T(1,128)}', space=vmem, size = 0x12000, scoped, tag = 'internal scratch']
  %s0 = inlined_call_operand.vmem [shape: bf16[48,512], index: 0, kind: input, shape index: {}]
  %s1 = inlined_call_operand.vmem [shape: bf16[512,128], index: 1, kind: input, shape index: {}]
  %s2 = inlined_call_operand.vmem [shape: f32[1,128], index: 2, kind: input, shape index: {}]
  %s3 = inlined_call_operand.vmem [shape: bf16[48,128], index: 3, kind: input, shape index: {}]
  %s4 = inlined_call_operand.vmem [shape: bf16[48,128], index: 4, kind: output, shape index: {}]
  %s5 = sld [smem:[#allocation0]]
  $region26: #{_lambda_.17} parent=0
    _
  %s7 = ssub.s32 1, %s5
  %s8 = scalar_select 0, %s7, %s5
  // Predicated region
  $region2: #{_lambda_.17} parent=0 // pred_check
    _
  $region3: #{_lambda_.17} parent=0 // pred_check_branch
    %10 = sbr.rel (0) target = $region5
  $region4: #{_lambda_.17} parent=0 // pred_region
    _
  $region5: #{_lambda_.17} parent=0 // pred_fallthru
    _
  // Predicated region
  $region6: #{_lambda_.17} parent=0 // pred_check
    _
  $region7: #{_lambda_.17} parent=0 // pred_check_branch
    %12 = sbr.rel (0) target = $region9
  $region8: #{_lambda_.17} parent=0 // pred_region
    _
  $region9: #{_lambda_.17} parent=0 // pred_fallthru
    _
  // Predicated region
  $region10: #{_lambda_.17} parent=0 // pred_check
    _
  $region11: #{_lambda_.17} parent=0 // pred_check_branch
    %14 = sbr.rel (0) target = $region13
  $region12: #{_lambda_.17} parent=0 // pred_region
    _
  $region13: #{_lambda_.17} parent=0 // pred_fallthru
    _
  // Predicated region
  $region14: #{_lambda_.17} parent=0 // pred_check
    _
  $region15: #{_lambda_.17} parent=0 // pred_check_branch
    %16 = sbr.rel (0) target = $region17
  $region16: #{_lambda_.17} parent=0 // pred_region
    _
  $region17: #{_lambda_.17} parent=0 // pred_fallthru
    _
  %v18 = vld [vmem:[%s0] sm:$0xff]
  %v19 = vld [vmem:[%s0 + $0x8] sm:$0xff]
  %v20 = vld [vmem:[%s0 + $0x10] sm:$0xff]
  %v21 = vld [vmem:[%s0 + $0x18] sm:$0xff]
  %v22 = vld [vmem:[%s0 + $0x20] sm:$0xff]
  %v23 = vld [vmem:[%s0 + $0x28] sm:$0xff]
  %v24 = vld [vmem:[%s0 + $0x30] sm:$0xff]
  %v25 = vld [vmem:[%s0 + $0x38] sm:$0xff]
  %v26 = vld [vmem:[%s0 + $0x40] sm:$0xff]
  %v27 = vld [vmem:[%s0 + $0x48] sm:$0xff]
  %v28 = vld [vmem:[%s0 + $0x50] sm:$0xff]
  %v29 = vld [vmem:[%s0 + $0x58] sm:$0xff]
  %v30 = vld [vmem:[%s1] sm:$0xf]
  %v31 = vld [vmem:[%s1 + $0x4] sm:$0xf]
  %v32 = vld [vmem:[%s1 + $0x8] sm:$0xf]
  %v33 = vld [vmem:[%s1 + $0xc] sm:$0xf]
  %v34 = vld [vmem:[%s1 + $0x10] sm:$0xf]
  %v35 = vld [vmem:[%s1 + $0x14] sm:$0xf]
  %v36 = vld [vmem:[%s1 + $0x18] sm:$0xf]
  %v37 = vld [vmem:[%s1 + $0x1c] sm:$0xf]
  %v38 = vld [vmem:[%s1 + $0x20] sm:$0xf]
  %v39 = vld [vmem:[%s1 + $0x24] sm:$0xf]
  %v40 = vld [vmem:[%s1 + $0x28] sm:$0xf]
  %v41 = vld [vmem:[%s1 + $0x2c] sm:$0xf]
  %v42 = vld [vmem:[%s1 + $0x30] sm:$0xf]
  %v43 = vld [vmem:[%s1 + $0x34] sm:$0xf]
  %v44 = vld [vmem:[%s1 + $0x38] sm:$0xf]
  %v45 = vld [vmem:[%s1 + $0x3c] sm:$0xf]
  %v46 = vld [vmem:[%s1 + $0x40] sm:$0xf]
  %v47 = vld [vmem:[%s1 + $0x44] sm:$0xf]
  %v48 = vld [vmem:[%s1 + $0x48] sm:$0xf]
  %v49 = vld [vmem:[%s1 + $0x4c] sm:$0xf]
  %v50 = vld [vmem:[%s1 + $0x50] sm:$0xf]
  %v51 = vld [vmem:[%s1 + $0x54] sm:$0xf]
  %v52 = vld [vmem:[%s1 + $0x58] sm:$0xf]
  %v53 = vld [vmem:[%s1 + $0x5c] sm:$0xf]
  %v54 = vld [vmem:[%s1 + $0x60] sm:$0xf]
  %v55 = vld [vmem:[%s1 + $0x64] sm:$0xf]
  %v56 = vld [vmem:[%s1 + $0x68] sm:$0xf]
  %v57 = vld [vmem:[%s1 + $0x6c] sm:$0xf]
  %v58 = vld [vmem:[%s1 + $0x70] sm:$0xf]
  %v59 = vld [vmem:[%s1 + $0x74] sm:$0xf]
  %v60 = vld [vmem:[%s1 + $0x78] sm:$0xf]
  %v61 = vld [vmem:[%s1 + $0x7c] sm:$0xf]
  %v62 = vld [vmem:[%s1 + $0x80] sm:$0xf]
  %v63 = vld [vmem:[%s1 + $0x84] sm:$0xf]
  %v64 = vld [vmem:[%s1 + $0x88] sm:$0xf]
  %v65 = vld [vmem:[%s1 + $0x8c] sm:$0xf]
  %v66 = vld [vmem:[%s1 + $0x90] sm:$0xf]
  %v67 = vld [vmem:[%s1 + $0x94] sm:$0xf]
  %v68 = vld [vmem:[%s1 + $0x98] sm:$0xf]
  %v69 = vld [vmem:[%s1 + $0x9c] sm:$0xf]
  %v70 = vld [vmem:[%s1 + $0xa0] sm:$0xf]
  %v71 = vld [vmem:[%s1 + $0xa4] sm:$0xf]
  %v72 = vld [vmem:[%s1 + $0xa8] sm:$0xf]
  %v73 = vld [vmem:[%s1 + $0xac] sm:$0xf]
  %v74 = vld [vmem:[%s1 + $0xb0] sm:$0xf]
  %v75 = vld [vmem:[%s1 + $0xb4] sm:$0xf]
  %v76 = vld [vmem:[%s1 + $0xb8] sm:$0xf]
  %v77 = vld [vmem:[%s1 + $0xbc] sm:$0xf]
  %v78 = vld [vmem:[%s1 + $0xc0] sm:$0xf]
  %v79 = vld [vmem:[%s1 + $0xc4] sm:$0xf]
  %v80 = vld [vmem:[%s1 + $0xc8] sm:$0xf]
  %v81 = vld [vmem:[%s1 + $0xcc] sm:$0xf]
  %v82 = vld [vmem:[%s1 + $0xd0] sm:$0xf]
  %v83 = vld [vmem:[%s1 + $0xd4] sm:$0xf]
  %v84 = vld [vmem:[%s1 + $0xd8] sm:$0xf]
  %v85 = vld [vmem:[%s1 + $0xdc] sm:$0xf]
  %v86 = vld [vmem:[%s1 + $0xe0] sm:$0xf]
  %v87 = vld [vmem:[%s1 + $0xe4] sm:$0xf]
  %v88 = vld [vmem:[%s1 + $0xe8] sm:$0xf]
  %v89 = vld [vmem:[%s1 + $0xec] sm:$0xf]
  %v90 = vld [vmem:[%s1 + $0xf0] sm:$0xf]
  %v91 = vld [vmem:[%s1 + $0xf4] sm:$0xf]
  %v92 = vld [vmem:[%s1 + $0xf8] sm:$0xf]
  %v93 = vld [vmem:[%s1 + $0xfc] sm:$0xf]
  %v94 = vld [vmem:[%s2] sm:$0x1]
  %v96 = vlaneseq
  %v97 = vshrl.u32 %v96, 7
  %v98 = vsub.s32 0, %v97
  %v99 = vrot.slane %v94, %v98
  %v113 = vunpack.c.l.b16 %v18
  %v114 = vunpack.c.h.b16 %v18
  %v115 = vunpack.c.l.b16 %v19
  %v116 = vunpack.c.h.b16 %v19
  %v117 = vunpack.c.l.b16 %v20
  %v118 = vunpack.c.h.b16 %v20
  %v119 = vunpack.c.l.b16 %v21
  %v120 = vunpack.c.h.b16 %v21
  %v121 = vunpack.c.l.b16 %v22
  %v122 = vunpack.c.h.b16 %v22
  %v123 = vunpack.c.l.b16 %v23
  %v124 = vunpack.c.h.b16 %v23
  %v125 = vunpack.c.l.b16 %v24
  %v126 = vunpack.c.h.b16 %v24
  %v127 = vunpack.c.l.b16 %v25
  %v128 = vunpack.c.h.b16 %v25
  %v129 = vunpack.c.l.b16 %v26
  %v130 = vunpack.c.h.b16 %v26
  %v131 = vunpack.c.l.b16 %v27
  %v132 = vunpack.c.h.b16 %v27
  %v133 = vunpack.c.l.b16 %v28
  %v134 = vunpack.c.h.b16 %v28
  %v135 = vunpack.c.l.b16 %v29
  %v136 = vunpack.c.h.b16 %v29
  %v137 = vpack.c.b16 %v117, %v113
  %v138 = vpack.c.b16 %v118, %v114
  %v139 = vpack.c.b16 %v119, %v115
  %v140 = vpack.c.b16 %v120, %v116
  %v141 = vpack.c.b16 %v125, %v121
  %v142 = vpack.c.b16 %v126, %v122
  %v143 = vpack.c.b16 %v127, %v123
  %v144 = vpack.c.b16 %v128, %v124
  %v145 = vpack.c.b16 %v133, %v129
  %v146 = vpack.c.b16 %v134, %v130
  %v147 = vpack.c.b16 %v135, %v131
  %v148 = vpack.c.b16 %v136, %v132
  %v225 = vunpack.c.l.b16 %v30
  %v226 = vunpack.c.l.b16 %v31
  %v227 = vunpack.c.l.b16 %v32
  %v228 = vunpack.c.l.b16 %v33
  %v229 = vunpack.c.l.b16 %v34
  %v230 = vunpack.c.l.b16 %v35
  %v231 = vunpack.c.l.b16 %v36
  %v232 = vunpack.c.l.b16 %v37
  %v233 = vunpack.c.l.b16 %v38
  %v234 = vunpack.c.l.b16 %v39
  %v235 = vunpack.c.l.b16 %v40
  %v236 = vunpack.c.l.b16 %v41
  %v237 = vunpack.c.l.b16 %v42
  %v238 = vunpack.c.l.b16 %v43
  %v239 = vunpack.c.l.b16 %v44
  %v240 = vunpack.c.l.b16 %v45
  %v241 = vunpack.c.l.b16 %v46
  %v242 = vunpack.c.l.b16 %v47
  %v243 = vunpack.c.l.b16 %v48
  %v244 = vunpack.c.l.b16 %v49
  %v245 = vunpack.c.l.b16 %v50
  %v246 = vunpack.c.l.b16 %v51
  %v247 = vunpack.c.l.b16 %v52
  %v248 = vunpack.c.l.b16 %v53
  %v249 = vunpack.c.l.b16 %v54
  %v250 = vunpack.c.l.b16 %v55
  %v251 = vunpack.c.l.b16 %v56
  %v252 = vunpack.c.l.b16 %v57
  %v253 = vunpack.c.l.b16 %v58
  %v254 = vunpack.c.l.b16 %v59
  %v255 = vunpack.c.l.b16 %v60
  %v256 = vunpack.c.l.b16 %v61
  %v257 = vunpack.c.l.b16 %v62
  %v258 = vunpack.c.l.b16 %v63
  %v259 = vunpack.c.l.b16 %v64
  %v260 = vunpack.c.l.b16 %v65
  %v261 = vunpack.c.l.b16 %v66
  %v262 = vunpack.c.l.b16 %v67
  %v263 = vunpack.c.l.b16 %v68
  %v264 = vunpack.c.l.b16 %v69
  %v265 = vunpack.c.l.b16 %v70
  %v266 = vunpack.c.l.b16 %v71
  %v267 = vunpack.c.l.b16 %v72
  %v268 = vunpack.c.l.b16 %v73
  %v269 = vunpack.c.l.b16 %v74
  %v270 = vunpack.c.l.b16 %v75
  %v271 = vunpack.c.l.b16 %v76
  %v272 = vunpack.c.l.b16 %v77
  %v273 = vunpack.c.l.b16 %v78
  %v274 = vunpack.c.l.b16 %v79
  %v275 = vunpack.c.l.b16 %v80
  %v276 = vunpack.c.l.b16 %v81
  %v277 = vunpack.c.l.b16 %v82
  %v278 = vunpack.c.l.b16 %v83
  %v279 = vunpack.c.l.b16 %v84
  %v280 = vunpack.c.l.b16 %v85
  %v281 = vunpack.c.l.b16 %v86
  %v282 = vunpack.c.l.b16 %v87
  %v283 = vunpack.c.l.b16 %v88
  %v284 = vunpack.c.l.b16 %v89
  %v285 = vunpack.c.l.b16 %v90
  %v286 = vunpack.c.l.b16 %v91
  %v287 = vunpack.c.l.b16 %v92
  %v288 = vunpack.c.l.b16 %v93
  %v289 = vpack.c.b16 %v226, %v225
  %v290 = vpack.c.b16 %v228, %v227
  %v291 = vpack.c.b16 %v230, %v229
  %v292 = vpack.c.b16 %v232, %v231
  %v293 = vpack.c.b16 %v234, %v233
  %v294 = vpack.c.b16 %v236, %v235
  %v295 = vpack.c.b16 %v238, %v237
  %v296 = vpack.c.b16 %v240, %v239
  %v297 = vpack.c.b16 %v242, %v241
  %v298 = vpack.c.b16 %v244, %v243
  %v299 = vpack.c.b16 %v246, %v245
  %v300 = vpack.c.b16 %v248, %v247
  %v301 = vpack.c.b16 %v250, %v249
  %v302 = vpack.c.b16 %v252, %v251
  %v303 = vpack.c.b16 %v254, %v253
  %v304 = vpack.c.b16 %v256, %v255
  %v305 = vpack.c.b16 %v258, %v257
  %v306 = vpack.c.b16 %v260, %v259
  %v307 = vpack.c.b16 %v262, %v261
  %v308 = vpack.c.b16 %v264, %v263
  %v309 = vpack.c.b16 %v266, %v265
  %v310 = vpack.c.b16 %v268, %v267
  %v311 = vpack.c.b16 %v270, %v269
  %v312 = vpack.c.b16 %v272, %v271
  %v313 = vpack.c.b16 %v274, %v273
  %v314 = vpack.c.b16 %v276, %v275
  %v315 = vpack.c.b16 %v278, %v277
  %v316 = vpack.c.b16 %v280, %v279
  %v317 = vpack.c.b16 %v282, %v281
  %v318 = vpack.c.b16 %v284, %v283
  %v319 = vpack.c.b16 %v286, %v285
  %v320 = vpack.c.b16 %v288, %v287
  %353 = vmatprep.subr.bf16.mxu0 0
  %354 = vmatpush1.bf16.msra.mxu0 %v289
  %355 = vmatprep.subr.bf16.mxu0 0
  %356 = vmatpush1.bf16.msra.mxu0 %v290
  %357 = vmatprep.subr.bf16.mxu0 0
  %358 = vmatpush1.bf16.msra.mxu0 %v291
  %359 = vmatprep.subr.bf16.mxu0 0
  %360 = vmatpush1.bf16.msra.mxu0 %v292
  %361 = vmatprep.subr.bf16.mxu0 0
  %362 = vmatpush1.bf16.msra.mxu0 %v293
  %363 = vmatprep.subr.bf16.mxu0 0
  %364 = vmatpush1.bf16.msra.mxu0 %v294
  %365 = vmatprep.subr.bf16.mxu0 0
  %366 = vmatpush1.bf16.msra.mxu0 %v295
  %367 = vmatprep.subr.bf16.mxu0 0
  %368 = vmatpush1.bf16.msra.mxu0 %v296
  %369 = vmatprep.subr.bf16.mxu0 0
  %370 = vmatpush1.bf16.msra.mxu0 %v297
  %371 = vmatprep.subr.bf16.mxu0 0
  %372 = vmatpush1.bf16.msra.mxu0 %v298
  %373 = vmatprep.subr.bf16.mxu0 0
  %374 = vmatpush1.bf16.msra.mxu0 %v299
  %375 = vmatprep.subr.bf16.mxu0 0
  %376 = vmatpush1.bf16.msra.mxu0 %v300
  %377 = vmatprep.subr.bf16.mxu0 0
  %378 = vmatpush1.bf16.msra.mxu0 %v301
  %379 = vmatprep.subr.bf16.mxu0 0
  %380 = vmatpush1.bf16.msra.mxu0 %v302
  %381 = vmatprep.subr.bf16.mxu0 0
  %382 = vmatpush1.bf16.msra.mxu0 %v303
  %383 = vmatprep.subr.bf16.mxu0 0
  %384 = vmatpush1.bf16.msra.mxu0 %v304
  %385 = vmatprep.mubr.bf16.mxu0 %v138
  %386 = vmatmul.mubr.bf16.gmra.mrb[0].mxu0 %v137
  %v387 = vpop.f32.mrb[0].mxu0
  %v388 = vadd.f32 %v99, %v387
  %v389 = vpop.f32.mrb[0].mxu0
  %v390 = vpop.f32.mrb[0].mxu0
  %v391 = vadd.f32 %v99, %v390
  %v392 = vpop.f32.mrb[0].mxu0
  %393 = vmatprep.mubr.bf16.mxu0 %v142
  %394 = vmatmul.mubr.bf16.gmra.mrb[0].mxu0 %v141
  %v395 = vpop.f32.mrb[0].mxu0
  %v396 = vadd.f32 %v99, %v395
  %v397 = vpop.f32.mrb[0].mxu0
  %v398 = vpop.f32.mrb[0].mxu0
  %v399 = vadd.f32 %v99, %v398
  %v400 = vpop.f32.mrb[0].mxu0
  %401 = vmatprep.mubr.bf16.mxu0 %v146
  %402 = vmatmul.mubr.bf16.gmra.mrb[0].mxu0 %v145
  %v403 = vpop.f32.mrb[0].mxu0
  %v404 = vadd.f32 %v99, %v403
  %v405 = vpop.f32.mrb[0].mxu0
  %v406 = vpop.f32.mrb[0].mxu0
  %v407 = vadd.f32 %v99, %v406
  %v408 = vpop.f32.mrb[0].mxu0
  %409 = vdwg.mxu0
  %410 = vmatprep.subr.bf16.mxu0 0
  %411 = vmatpush1.bf16.msra.mxu0 %v305
  %412 = vmatprep.subr.bf16.mxu0 0
  %413 = vmatpush1.bf16.msra.mxu0 %v306
  %414 = vmatprep.subr.bf16.mxu0 0
  %415 = vmatpush1.bf16.msra.mxu0 %v307
  %416 = vmatprep.subr.bf16.mxu0 0
  %417 = vmatpush1.bf16.msra.mxu0 %v308
  %418 = vmatprep.subr.bf16.mxu0 0
  %419 = vmatpush1.bf16.msra.mxu0 %v309
  %420 = vmatprep.subr.bf16.mxu0 0
  %421 = vmatpush1.bf16.msra.mxu0 %v310
  %422 = vmatprep.subr.bf16.mxu0 0
  %423 = vmatpush1.bf16.msra.mxu0 %v311
  %424 = vmatprep.subr.bf16.mxu0 0
  %425 = vmatpush1.bf16.msra.mxu0 %v312
  %426 = vmatprep.subr.bf16.mxu0 0
  %427 = vmatpush1.bf16.msra.mxu0 %v313
  %428 = vmatprep.subr.bf16.mxu0 0
  %429 = vmatpush1.bf16.msra.mxu0 %v314
  %430 = vmatprep.subr.bf16.mxu0 0
  %431 = vmatpush1.bf16.msra.mxu0 %v315
  %432 = vmatprep.subr.bf16.mxu0 0
  %433 = vmatpush1.bf16.msra.mxu0 %v316
  %434 = vmatprep.subr.bf16.mxu0 0
  %435 = vmatpush1.bf16.msra.mxu0 %v317
  %436 = vmatprep.subr.bf16.mxu0 0
  %437 = vmatpush1.bf16.msra.mxu0 %v318
  %438 = vmatprep.subr.bf16.mxu0 0
  %439 = vmatpush1.bf16.msra.mxu0 %v319
  %440 = vmatprep.subr.bf16.mxu0 0
  %441 = vmatpush1.bf16.msra.mxu0 %v320
  %442 = vmatprep.mubr.bf16.mxu0 %v140
  %443 = vmatmul.mubr.bf16.gmra.mrb[0].mxu0 %v139
  %v444 = vpop.f32.mrb[0].mxu0
  %v445 = vadd.f32 %v388, %v444
  %v446 = vpop.f32.mrb[0].mxu0
  %v447 = vpop.f32.mrb[0].mxu0
  %v448 = vadd.f32 %v391, %v447
  %v449 = vpop.f32.mrb[0].mxu0
  %450 = vmatprep.mubr.bf16.mxu0 %v144
  %451 = vmatmul.mubr.bf16.gmra.mrb[0].mxu0 %v143
  %v452 = vpop.f32.mrb[0].mxu0
  %v453 = vadd.f32 %v396, %v452
  %v454 = vpop.f32.mrb[0].mxu0
  %v455 = vpop.f32.mrb[0].mxu0
  %v456 = vadd.f32 %v399, %v455
  %v457 = vpop.f32.mrb[0].mxu0
  %458 = vmatprep.mubr.bf16.mxu0 %v148
  %459 = vmatmul.mubr.bf16.gmra.mrb[0].mxu0 %v147
  %v460 = vpop.f32.mrb[0].mxu0
  %v461 = vadd.f32 %v404, %v460
  %v462 = vpop.f32.mrb[0].mxu0
  %v463 = vpop.f32.mrb[0].mxu0
  %v464 = vadd.f32 %v407, %v463
  %v465 = vpop.f32.mrb[0].mxu0
  %466 = vdwg.mxu0
  %v467 = vld [vmem:[%s3] sm:$0xf]
  %v468 = vld [vmem:[%s3 + $0x4] sm:$0xf]
  %v469 = vld [vmem:[%s3 + $0x8] sm:$0xf]
  %v470 = vld [vmem:[%s3 + $0xc] sm:$0xf]
  %v471 = vld [vmem:[%s3 + $0x10] sm:$0xf]
  %v472 = vld [vmem:[%s3 + $0x14] sm:$0xf]
  %v473 = vunpack.c.l.bf16 %v467
  %v474 = vunpack.c.l.bf16 %v468
  %v475 = vunpack.c.l.bf16 %v469
  %v476 = vunpack.c.l.bf16 %v470
  %v477 = vunpack.c.l.bf16 %v471
  %v478 = vunpack.c.l.bf16 %v472
  %v479 = vadd.f32 %v445, %v473
  %v480 = vadd.f32 %v448, %v474
  %v481 = vadd.f32 %v453, %v475
  %v482 = vadd.f32 %v456, %v476
  %v483 = vadd.f32 %v461, %v477
  %v484 = vadd.f32 %v464, %v478
  %v485 = vpack.c.bf16 %v480, %v479
  %v486 = vpack.c.bf16 %v482, %v481
  %v487 = vpack.c.bf16 %v484, %v483
  %v491 = vunpack.c.l.b16 %v485
  %v492 = vunpack.c.h.b16 %v485
  %v493 = vunpack.c.l.b16 %v486
  %v494 = vunpack.c.h.b16 %v486
  %v495 = vunpack.c.l.b16 %v487
  %v496 = vunpack.c.h.b16 %v487
  %v497 = vpack.c.b16 %v491, %v491
  %v498 = vpack.c.b16 %v492, %v492
  %v499 = vpack.c.b16 %v493, %v493
  %v500 = vpack.c.b16 %v494, %v494
  %v501 = vpack.c.b16 %v495, %v495
  %v502 = vpack.c.b16 %v496, %v496
  %509 = vst [vmem:[%s4] sm:$0xf] %v497
  %510 = vst [vmem:[%s4 + $0x4] sm:$0xf] %v498
  %511 = vst [vmem:[%s4 + $0x8] sm:$0xf] %v499
  %512 = vst [vmem:[%s4 + $0xc] sm:$0xf] %v500
  %513 = vst [vmem:[%s4 + $0x10] sm:$0xf] %v501
  %514 = vst [vmem:[%s4 + $0x14] sm:$0xf] %v502
  // Predicated region
  $region18: #{_lambda_.17} parent=0 // pred_check
    _
  $region19: #{_lambda_.17} parent=0 // pred_check_branch
    %516 = sbr.rel (0) target = $region21
  $region20: #{_lambda_.17} parent=0 // pred_region
    _
  $region21: #{_lambda_.17} parent=0 // pred_fallthru
    _
  // Predicated region
  $region22: #{_lambda_.17} parent=0 // pred_check
    _
  $region23: #{_lambda_.17} parent=0 // pred_check_branch
    %518 = sbr.rel (0) target = $region25
  $region24: #{_lambda_.17} parent=0 // pred_region
    _
  $region25: #{_lambda_.17} parent=0 // pred_fallthru
    _

</llo_original>
